<compile_context>
chip_gen: v7x
topology: tpu7x:2x2x1
jax: 0.10.0
libtpu: 0.0.40
codegen_flags: <defaults>
</compile_context>

<pallas_src>
import jax
import jax.numpy as jnp
from jax import lax
from jax.experimental import pallas as pl
from jax.experimental.pallas import tpu as pltpu


# ------------------------------ Pallas kernel -------------------------------

def _navrnn_kernel(img_ref, ques_ref, act_ref, len_ref,
                   wih_img_ref, wih_q_ref, act_proj_ref, b1_ref,
                   whh1_ref, w2_ref, b2_ref, wdec_ref, bdec_ref,
                   out_ref, hn_ref, cn_ref):
    f32 = jnp.float32
    bf16 = jnp.bfloat16

    N, T, _ = out_ref.shape          # out is (N, T, num_actions)
    H = whh1_ref.shape[0]
    G = wih_img_ref.shape[1]         # 4*H
    n_emb = act_proj_ref.shape[0]    # embedding rows (num_actions)
    NT = N * T

    # ---- hoisted layer-1 input projection (all timesteps, lane-dense 4H) ----
    gx = jnp.dot(img_ref[...].astype(bf16), wih_img_ref[...].astype(bf16),
                 preferred_element_type=f32)                       # (NT, 4H)

    # action embedding via one-hot @ (E @ Wih1_a)  (MXU-friendly gather)
    onehot = jnp.where(
        act_ref[...] == lax.broadcasted_iota(jnp.int32, (NT, n_emb), 1),
        1.0, 0.0)                                                  # (NT, n_emb) f32
    gx = gx + jnp.dot(onehot, act_proj_ref[...],
                      preferred_element_type=f32)                  # + action term

    gq = jnp.dot(ques_ref[...].astype(bf16), wih_q_ref[...].astype(bf16),
                 preferred_element_type=f32)                       # (N, 4H)

    # (N, T, 4H): per-timestep pre-activations for layer 1 (bias folded in)
    gx1 = gx.reshape(N, T, G) + gq[:, None, :] + b1_ref[...]

    whh1 = whh1_ref[...].astype(bf16)      # (H, 4H)
    w2 = w2_ref[...].astype(bf16)          # (2H, 4H) = [Wih2; Whh2]
    b2 = b2_ref[...]                       # (1, 4H)
    wdec = wdec_ref[...].astype(bf16)      # (H, num_actions)
    bdec = bdec_ref[...]                   # (1, num_actions)
    lengths = len_ref[...]                 # (N, 1) int32

    def cell(gates, c_prev):               # PyTorch gate order [i, f, g, o]
        i = jax.nn.sigmoid(gates[:, 0 * H:1 * H])
        f = jax.nn.sigmoid(gates[:, 1 * H:2 * H])
        g = jnp.tanh(gates[:, 2 * H:3 * H])
        o = jax.nn.sigmoid(gates[:, 3 * H:4 * H])
        c_new = f * c_prev + i * g
        return o * jnp.tanh(c_new), c_new

    zeros = jnp.zeros((N, H), f32)
    h1 = c1 = h2 = c2 = zeros
    for t in range(T):                      # T is static & small: unrolled
        valid = lengths > t                 # (N, 1): packed-sequence mask
        # layer 1: only the recurrent h @ Whh1 remains in the loop
        g1 = gx1[:, t, :] + jnp.dot(h1.astype(bf16), whh1,
                                    preferred_element_type=f32)
        h1n, c1n = cell(g1, c1)
        # layer 2: single dot on concat([h1, h2]) against stacked weights
        x2 = jnp.concatenate([h1n, h2], axis=1).astype(bf16)       # (N, 2H)
        g2 = jnp.dot(x2, w2, preferred_element_type=f32) + b2
        h2n, c2n = cell(g2, c2)
        # sequences past their length keep frozen states (packed semantics)
        h1 = jnp.where(valid, h1n, h1)
        c1 = jnp.where(valid, c1n, c1)
        h2 = jnp.where(valid, h2n, h2)
        c2 = jnp.where(valid, c2n, c2)
        # pad_packed_sequence zero-pads the rnn output; decoder(0) = bias rows
        out_t = jnp.where(valid, h2n, 0.0)
        out_ref[:, t, :] = (jnp.dot(out_t.astype(bf16), wdec,
                                    preferred_element_type=f32)
                            + bdec).astype(out_ref.dtype)

    hn_ref[0, :, :] = h1
    hn_ref[1, :, :] = h2
    cn_ref[0, :, :] = c1
    cn_ref[1, :, :] = c2


# ------------------------------- JAX wrapper --------------------------------

def navrnn_forward(params, img_feats, question_feats, actions_in, action_lengths):
    """NavRnn.forward (LSTM, 2 layers, image+question+action inputs, eval mode).

    Returns (output, (h_n, c_n)) with output (N*T, num_actions) and
    h_n / c_n of shape (num_layers=2, N, H).
    Assumes max(action_lengths) == T (pad_packed total length == actions_in.size(1)).
    """
    N, T, d_img = img_feats.shape
    d_q = question_feats.shape[1]
    H = params["whh_l0"].shape[1]
    n_actions = params["dec_w"].shape[0]
    f32 = jnp.float32

    # ---- host-side weight-only folds (no activation traffic) ----
    wih1 = params["wih_l0"].T.astype(f32)                 # (Din, 4H), Din = img|q|act
    wih_img = wih1[:d_img]
    wih_q = wih1[d_img:d_img + d_q]
    wih_a = wih1[d_img + d_q:]
    act_proj = jnp.dot(params["action_embed"].astype(f32), wih_a)   # (num_actions, 4H)
    b1 = (params["bih_l0"] + params["bhh_l0"]).reshape(1, -1).astype(f32)
    whh1 = params["whh_l0"].T.astype(f32)                 # (H, 4H)
    w2 = jnp.concatenate([params["wih_l1"].T, params["whh_l1"].T],
                         axis=0).astype(f32)              # (2H, 4H)
    b2 = (params["bih_l1"] + params["bhh_l1"]).reshape(1, -1).astype(f32)
    wdec = params["dec_w"].T.astype(f32)                  # (H, num_actions)
    bdec = params["dec_b"].reshape(1, -1).astype(f32)

    img_flat = img_feats.reshape(N * T, d_img).astype(f32)
    acts_flat = actions_in.astype(jnp.int32).reshape(N * T, 1)
    lengths = action_lengths.astype(jnp.int32).reshape(N, 1)

    vmem = pl.BlockSpec(memory_space=pltpu.MemorySpace.VMEM)
    out, h_n, c_n = pl.pallas_call(
        _navrnn_kernel,
        out_shape=(jax.ShapeDtypeStruct((N, T, n_actions), f32),
                   jax.ShapeDtypeStruct((2, N, H), f32),
                   jax.ShapeDtypeStruct((2, N, H), f32)),
        in_specs=[vmem] * 13,
        out_specs=(vmem, vmem, vmem),
    )(img_flat, question_feats.astype(f32), acts_flat, lengths,
      wih_img, wih_q, act_proj, b1, whh1, w2, b2, wdec, bdec)

    return out.reshape(N * T, n_actions), (h_n, c_n)


# ------------------------------ parameter init ------------------------------

def init_params(key, *, image_feat_dim=128, question_embed_dim=128,
                action_embed_dim=32, num_actions=4, rnn_hidden_dim=128):
    rnn_input_dim = image_feat_dim + question_embed_dim + action_embed_dim
    ks = iter(jax.random.split(key, 16))
    lim = 1.0 / (rnn_hidden_dim ** 0.5)

    def u(shape, lo=-lim, hi=lim):
        return jax.random.uniform(next(ks), shape, jnp.float32, lo, hi)

    return dict(
        action_embed=u((num_actions, action_embed_dim), -0.1, 0.1),
        wih_l0=u((4 * rnn_hidden_dim, rnn_input_dim)),
        whh_l0=u((4 * rnn_hidden_dim, rnn_hidden_dim)),
        bih_l0=u((4 * rnn_hidden_dim,)),
        bhh_l0=u((4 * rnn_hidden_dim,)),
        wih_l1=u((4 * rnn_hidden_dim, rnn_hidden_dim)),
        whh_l1=u((4 * rnn_hidden_dim, rnn_hidden_dim)),
        bih_l1=u((4 * rnn_hidden_dim,)),
        bhh_l1=u((4 * rnn_hidden_dim,)),
        dec_w=u((num_actions, rnn_hidden_dim)),
        dec_b=u((num_actions,)),
    )


if __name__ == "__main__":
    # NavRnn defaults: image_feat_dim=128, question_embed_dim=128,
    # action_embed_dim=32, num_actions=4, rnn_hidden_dim=128, 2 LSTM layers.
    N, T = 2, 8
    IMG_DIM, Q_DIM, ACT_DIM = 128, 128, 32
    HIDDEN, NUM_ACTIONS = 128, 4

    key = jax.random.PRNGKey(0)
    kp, k1, k2, k3 = jax.random.split(key, 4)
    params = init_params(kp, image_feat_dim=IMG_DIM, question_embed_dim=Q_DIM,
                         action_embed_dim=ACT_DIM, num_actions=NUM_ACTIONS,
                         rnn_hidden_dim=HIDDEN)

    img_feats = jax.random.normal(k1, (N, T, IMG_DIM), jnp.float32)
    question_feats = jax.random.normal(k2, (N, Q_DIM), jnp.float32)
    actions_in = jax.random.randint(k3, (N, T), 0, NUM_ACTIONS, jnp.int32)
    # pack_padded_sequence expects descending lengths; max length == T here.
    action_lengths = jnp.array([T, 5], jnp.int32)

    fwd = jax.jit(navrnn_forward)
    output, (h_n, c_n) = fwd(params, img_feats, question_feats,
                             actions_in, action_lengths)
    jax.block_until_ready((output, h_n, c_n))

    assert output.shape == (N * T, NUM_ACTIONS)
    assert h_n.shape == (2, N, HIDDEN)
    assert c_n.shape == (2, N, HIDDEN)
    print("KERNEL_OK")
</pallas_src>

<mosaic_0001>
module attributes {stable_mosaic.version = 11 : i64} {
  func.func @_navrnn_kernel(%arg0: memref<16x128xf32, #tpu.memory_space<vmem>>, %arg1: memref<2x128xf32, #tpu.memory_space<vmem>>, %arg2: memref<16x1xi32, #tpu.memory_space<vmem>>, %arg3: memref<2x1xi32, #tpu.memory_space<vmem>>, %arg4: memref<128x512xf32, #tpu.memory_space<vmem>>, %arg5: memref<128x512xf32, #tpu.memory_space<vmem>>, %arg6: memref<4x512xf32, #tpu.memory_space<vmem>>, %arg7: memref<1x512xf32, #tpu.memory_space<vmem>>, %arg8: memref<128x512xf32, #tpu.memory_space<vmem>>, %arg9: memref<256x512xf32, #tpu.memory_space<vmem>>, %arg10: memref<1x512xf32, #tpu.memory_space<vmem>>, %arg11: memref<128x4xf32, #tpu.memory_space<vmem>>, %arg12: memref<1x4xf32, #tpu.memory_space<vmem>>, %arg13: memref<2x8x4xf32, #tpu.memory_space<vmem>>, %arg14: memref<2x2x128xf32, #tpu.memory_space<vmem>>, %arg15: memref<2x2x128xf32, #tpu.memory_space<vmem>>) attributes {dimension_semantics = [], scalar_prefetch = 0 : i64, scratch_operands = 0 : i64, tpu.core_type = #tpu.core_type<tc>} {
    %c0 = arith.constant 0 : index
    %c0_0 = arith.constant 0 : index
    %0 = vector.load %arg0[%c0, %c0_0] : memref<16x128xf32, #tpu.memory_space<vmem>>, vector<16x128xf32>
    %1 = arith.truncf %0 : vector<16x128xf32> to vector<16x128xbf16>
    %c0_1 = arith.constant 0 : index
    %c0_2 = arith.constant 0 : index
    %2 = vector.load %arg4[%c0_1, %c0_2] : memref<128x512xf32, #tpu.memory_space<vmem>>, vector<128x512xf32>
    %3 = arith.truncf %2 : vector<128x512xf32> to vector<128x512xbf16>
    %cst = arith.constant dense<0.000000e+00> : vector<16x512xf32>
    %4 = tpu.matmul %1, %3, %cst {dimension_numbers = #tpu.dot_dimension_numbers<[1], [0], [0], [1], [0, 0, 1, 1], [], []>} : vector<16x128xbf16>, vector<128x512xbf16>, vector<16x512xf32> -> vector<16x512xf32>
    %c0_3 = arith.constant 0 : index
    %c0_4 = arith.constant 0 : index
    %5 = vector.load %arg2[%c0_3, %c0_4] : memref<16x1xi32, #tpu.memory_space<vmem>>, vector<16x1xi32>
    %6 = tpu.iota {dimensions = array<i32: 1>} : vector<16x4xi32>
    %7 = vector.broadcast %5 : vector<16x1xi32> to vector<16x4xi32>
    %8 = arith.cmpi eq, %7, %6 : vector<16x4xi32>
    %cst_5 = arith.constant 1.000000e+00 : f32
    %cst_6 = arith.constant 0.000000e+00 : f32
    %9 = vector.broadcast %cst_5 : f32 to vector<16x4xf32>
    %10 = vector.broadcast %cst_6 : f32 to vector<16x4xf32>
    %11 = arith.select %8, %9, %10 : vector<16x4xi1>, vector<16x4xf32>
    %c0_7 = arith.constant 0 : index
    %c0_8 = arith.constant 0 : index
    %12 = vector.load %arg6[%c0_7, %c0_8] : memref<4x512xf32, #tpu.memory_space<vmem>>, vector<4x512xf32>
    %cst_9 = arith.constant dense<0.000000e+00> : vector<16x512xf32>
    %13 = tpu.matmul %11, %12, %cst_9 {dimension_numbers = #tpu.dot_dimension_numbers<[1], [0], [0], [1], [0, 0, 1, 1], [], []>} : vector<16x4xf32>, vector<4x512xf32>, vector<16x512xf32> -> vector<16x512xf32>
    %14 = arith.addf %4, %13 : vector<16x512xf32>
    %c0_10 = arith.constant 0 : index
    %c0_11 = arith.constant 0 : index
    %15 = vector.load %arg1[%c0_10, %c0_11] : memref<2x128xf32, #tpu.memory_space<vmem>>, vector<2x128xf32>
    %16 = arith.truncf %15 : vector<2x128xf32> to vector<2x128xbf16>
    %c0_12 = arith.constant 0 : index
    %c0_13 = arith.constant 0 : index
    %17 = vector.load %arg5[%c0_12, %c0_13] : memref<128x512xf32, #tpu.memory_space<vmem>>, vector<128x512xf32>
    %18 = arith.truncf %17 : vector<128x512xf32> to vector<128x512xbf16>
    %cst_14 = arith.constant dense<0.000000e+00> : vector<2x512xf32>
    %19 = tpu.matmul %16, %18, %cst_14 {dimension_numbers = #tpu.dot_dimension_numbers<[1], [0], [0], [1], [0, 0, 1, 1], [], []>} : vector<2x128xbf16>, vector<128x512xbf16>, vector<2x512xf32> -> vector<2x512xf32>
    %20 = vector.shape_cast %14 : vector<16x512xf32> to vector<2x8x512xf32>
    %21 = vector.shape_cast %19 : vector<2x512xf32> to vector<2x1x512xf32>
    %22 = vector.broadcast %21 : vector<2x1x512xf32> to vector<2x8x512xf32>
    %23 = arith.addf %20, %22 : vector<2x8x512xf32>
    %c0_15 = arith.constant 0 : index
    %c0_16 = arith.constant 0 : index
    %24 = vector.load %arg7[%c0_15, %c0_16] : memref<1x512xf32, #tpu.memory_space<vmem>>, vector<1x512xf32>
    %25 = vector.shape_cast %24 : vector<1x512xf32> to vector<1x1x512xf32>
    %26 = vector.broadcast %25 : vector<1x1x512xf32> to vector<2x8x512xf32>
    %27 = arith.addf %23, %26 : vector<2x8x512xf32>
    %c0_17 = arith.constant 0 : index
    %c0_18 = arith.constant 0 : index
    %28 = vector.load %arg8[%c0_17, %c0_18] : memref<128x512xf32, #tpu.memory_space<vmem>>, vector<128x512xf32>
    %29 = arith.truncf %28 : vector<128x512xf32> to vector<128x512xbf16>
    %c0_19 = arith.constant 0 : index
    %c0_20 = arith.constant 0 : index
    %30 = vector.load %arg9[%c0_19, %c0_20] : memref<256x512xf32, #tpu.memory_space<vmem>>, vector<256x512xf32>
    %31 = arith.truncf %30 : vector<256x512xf32> to vector<256x512xbf16>
    %c0_21 = arith.constant 0 : index
    %c0_22 = arith.constant 0 : index
    %32 = vector.load %arg10[%c0_21, %c0_22] : memref<1x512xf32, #tpu.memory_space<vmem>>, vector<1x512xf32>
    %c0_23 = arith.constant 0 : index
    %c0_24 = arith.constant 0 : index
    %33 = vector.load %arg11[%c0_23, %c0_24] : memref<128x4xf32, #tpu.memory_space<vmem>>, vector<128x4xf32>
    %34 = arith.truncf %33 : vector<128x4xf32> to vector<128x4xbf16>
    %c0_25 = arith.constant 0 : index
    %c0_26 = arith.constant 0 : index
    %35 = vector.load %arg12[%c0_25, %c0_26] : memref<1x4xf32, #tpu.memory_space<vmem>>, vector<1x4xf32>
    %c0_27 = arith.constant 0 : index
    %c0_28 = arith.constant 0 : index
    %36 = vector.load %arg3[%c0_27, %c0_28] : memref<2x1xi32, #tpu.memory_space<vmem>>, vector<2x1xi32>
    %cst_29 = arith.constant 0.000000e+00 : f32
    %37 = vector.broadcast %cst_29 : f32 to vector<2x128xf32>
    %c0_i32 = arith.constant 0 : i32
    %38 = vector.broadcast %c0_i32 : i32 to vector<2x1xi32>
    %39 = arith.cmpi sgt, %36, %38 : vector<2x1xi32>
    %40 = vector.extract_strided_slice %27 {offsets = [0, 0, 0], sizes = [2, 1, 512], strides = [1, 1, 1]} : vector<2x8x512xf32> to vector<2x1x512xf32>
    %41 = vector.shape_cast %40 : vector<2x1x512xf32> to vector<2x512xf32>
    %42 = arith.truncf %37 : vector<2x128xf32> to vector<2x128xbf16>
    %cst_30 = arith.constant dense<0.000000e+00> : vector<2x512xf32>
    %43 = tpu.matmul %42, %29, %cst_30 {dimension_numbers = #tpu.dot_dimension_numbers<[1], [0], [0], [1], [0, 0, 1, 1], [], []>} : vector<2x128xbf16>, vector<128x512xbf16>, vector<2x512xf32> -> vector<2x512xf32>
    %44 = arith.addf %41, %43 : vector<2x512xf32>
    %45 = vector.extract_strided_slice %44 {offsets = [0, 0], sizes = [2, 128], strides = [1, 1]} : vector<2x512xf32> to vector<2x128xf32>
    %46 = arith.negf %45 : vector<2x128xf32>
    %47 = math.exp %46 : vector<2x128xf32>
    %cst_31 = arith.constant 1.000000e+00 : f32
    %48 = vector.broadcast %cst_31 : f32 to vector<2x128xf32>
    %49 = arith.addf %48, %47 : vector<2x128xf32>
    %50 = arith.divf %48, %49 : vector<2x128xf32>
    %51 = vector.extract_strided_slice %44 {offsets = [0, 128], sizes = [2, 128], strides = [1, 1]} : vector<2x512xf32> to vector<2x128xf32>
    %52 = arith.negf %51 : vector<2x128xf32>
    %53 = math.exp %52 : vector<2x128xf32>
    %cst_32 = arith.constant 1.000000e+00 : f32
    %54 = vector.broadcast %cst_32 : f32 to vector<2x128xf32>
    %55 = arith.addf %54, %53 : vector<2x128xf32>
    %56 = arith.divf %54, %55 : vector<2x128xf32>
    %57 = vector.extract_strided_slice %44 {offsets = [0, 256], sizes = [2, 128], strides = [1, 1]} : vector<2x512xf32> to vector<2x128xf32>
    %58 = math.tanh %57 : vector<2x128xf32>
    %59 = vector.extract_strided_slice %44 {offsets = [0, 384], sizes = [2, 128], strides = [1, 1]} : vector<2x512xf32> to vector<2x128xf32>
    %60 = arith.negf %59 : vector<2x128xf32>
    %61 = math.exp %60 : vector<2x128xf32>
    %cst_33 = arith.constant 1.000000e+00 : f32
    %62 = vector.broadcast %cst_33 : f32 to vector<2x128xf32>
    %63 = arith.addf %62, %61 : vector<2x128xf32>
    %64 = arith.divf %62, %63 : vector<2x128xf32>
    %65 = arith.mulf %56, %37 : vector<2x128xf32>
    %66 = arith.mulf %50, %58 : vector<2x128xf32>
    %67 = arith.addf %65, %66 : vector<2x128xf32>
    %68 = math.tanh %67 : vector<2x128xf32>
    %69 = arith.mulf %64, %68 : vector<2x128xf32>
    %70 = tpu.concatenate %69, %37 in 1 : vector<2x128xf32>, vector<2x128xf32> -> vector<2x256xf32>
    %71 = arith.truncf %70 : vector<2x256xf32> to vector<2x256xbf16>
    %cst_34 = arith.constant dense<0.000000e+00> : vector<2x512xf32>
    %72 = tpu.matmul %71, %31, %cst_34 {dimension_numbers = #tpu.dot_dimension_numbers<[1], [0], [0], [1], [0, 0, 1, 1], [], []>} : vector<2x256xbf16>, vector<256x512xbf16>, vector<2x512xf32> -> vector<2x512xf32>
    %73 = vector.broadcast %32 : vector<1x512xf32> to vector<2x512xf32>
    %74 = arith.addf %72, %73 : vector<2x512xf32>
    %75 = vector.extract_strided_slice %74 {offsets = [0, 0], sizes = [2, 128], strides = [1, 1]} : vector<2x512xf32> to vector<2x128xf32>
    %76 = arith.negf %75 : vector<2x128xf32>
    %77 = math.exp %76 : vector<2x128xf32>
    %cst_35 = arith.constant 1.000000e+00 : f32
    %78 = vector.broadcast %cst_35 : f32 to vector<2x128xf32>
    %79 = arith.addf %78, %77 : vector<2x128xf32>
    %80 = arith.divf %78, %79 : vector<2x128xf32>
    %81 = vector.extract_strided_slice %74 {offsets = [0, 128], sizes = [2, 128], strides = [1, 1]} : vector<2x512xf32> to vector<2x128xf32>
    %82 = arith.negf %81 : vector<2x128xf32>
    %83 = math.exp %82 : vector<2x128xf32>
    %cst_36 = arith.constant 1.000000e+00 : f32
    %84 = vector.broadcast %cst_36 : f32 to vector<2x128xf32>
    %85 = arith.addf %84, %83 : vector<2x128xf32>
    %86 = arith.divf %84, %85 : vector<2x128xf32>
    %87 = vector.extract_strided_slice %74 {offsets = [0, 256], sizes = [2, 128], strides = [1, 1]} : vector<2x512xf32> to vector<2x128xf32>
    %88 = math.tanh %87 : vector<2x128xf32>
    %89 = vector.extract_strided_slice %74 {offsets = [0, 384], sizes = [2, 128], strides = [1, 1]} : vector<2x512xf32> to vector<2x128xf32>
    %90 = arith.negf %89 : vector<2x128xf32>
    %91 = math.exp %90 : vector<2x128xf32>
    %cst_37 = arith.constant 1.000000e+00 : f32
    %92 = vector.broadcast %cst_37 : f32 to vector<2x128xf32>
    %93 = arith.addf %92, %91 : vector<2x128xf32>
    %94 = arith.divf %92, %93 : vector<2x128xf32>
    %95 = arith.mulf %86, %37 : vector<2x128xf32>
    %96 = arith.mulf %80, %88 : vector<2x128xf32>
    %97 = arith.addf %95, %96 : vector<2x128xf32>
    %98 = math.tanh %97 : vector<2x128xf32>
    %99 = arith.mulf %94, %98 : vector<2x128xf32>
    %100 = vector.shape_cast %39 : vector<2x1xi1> to vector<2x1xi1>
    %101 = vector.broadcast %100 : vector<2x1xi1> to vector<2x128xi1>
    %102 = arith.select %101, %69, %37 : vector<2x128xi1>, vector<2x128xf32>
    %103 = vector.shape_cast %39 : vector<2x1xi1> to vector<2x1xi1>
    %104 = vector.broadcast %103 : vector<2x1xi1> to vector<2x128xi1>
    %105 = arith.select %104, %67, %37 : vector<2x128xi1>, vector<2x128xf32>
    %106 = vector.shape_cast %39 : vector<2x1xi1> to vector<2x1xi1>
    %107 = vector.broadcast %106 : vector<2x1xi1> to vector<2x128xi1>
    %108 = arith.select %107, %99, %37 : vector<2x128xi1>, vector<2x128xf32>
    %109 = vector.shape_cast %39 : vector<2x1xi1> to vector<2x1xi1>
    %110 = vector.broadcast %109 : vector<2x1xi1> to vector<2x128xi1>
    %111 = arith.select %110, %97, %37 : vector<2x128xi1>, vector<2x128xf32>
    %cst_38 = arith.constant 0.000000e+00 : f32
    %112 = vector.shape_cast %39 : vector<2x1xi1> to vector<2x1xi1>
    %113 = vector.broadcast %112 : vector<2x1xi1> to vector<2x128xi1>
    %114 = vector.broadcast %cst_38 : f32 to vector<2x128xf32>
    %115 = arith.select %113, %99, %114 : vector<2x128xi1>, vector<2x128xf32>
    %116 = arith.truncf %115 : vector<2x128xf32> to vector<2x128xbf16>
    %cst_39 = arith.constant dense<0.000000e+00> : vector<2x4xf32>
    %117 = tpu.matmul %116, %34, %cst_39 {dimension_numbers = #tpu.dot_dimension_numbers<[1], [0], [0], [1], [0, 0, 1, 1], [], []>} : vector<2x128xbf16>, vector<128x4xbf16>, vector<2x4xf32> -> vector<2x4xf32>
    %118 = vector.broadcast %35 : vector<1x4xf32> to vector<2x4xf32>
    %119 = arith.addf %117, %118 : vector<2x4xf32>
    %c0_40 = arith.constant 0 : index
    %c0_41 = arith.constant 0 : index
    %c0_42 = arith.constant 0 : index
    %120 = vector.load %arg13[%c0_40, %c0_41, %c0_42] : memref<2x8x4xf32, #tpu.memory_space<vmem>>, vector<2x1x4xf32>
    %121 = vector.shape_cast %120 : vector<2x1x4xf32> to vector<2x4xf32>
    %122 = vector.shape_cast %119 : vector<2x4xf32> to vector<2x1x4xf32>
    tpu.vector_store %arg13[%c0_40, %c0_41, %c0_42], %122 {strides = array<i32>} : memref<2x8x4xf32, #tpu.memory_space<vmem>>, vector<2x1x4xf32>,
    %c1_i32 = arith.constant 1 : i32
    %123 = vector.broadcast %c1_i32 : i32 to vector<2x1xi32>
    %124 = arith.cmpi sgt, %36, %123 : vector<2x1xi32>
    %125 = vector.extract_strided_slice %27 {offsets = [0, 1, 0], sizes = [2, 1, 512], strides = [1, 1, 1]} : vector<2x8x512xf32> to vector<2x1x512xf32>
    %126 = vector.shape_cast %125 : vector<2x1x512xf32> to vector<2x512xf32>
    %127 = arith.truncf %102 : vector<2x128xf32> to vector<2x128xbf16>
    %cst_43 = arith.constant dense<0.000000e+00> : vector<2x512xf32>
    %128 = tpu.matmul %127, %29, %cst_43 {dimension_numbers = #tpu.dot_dimension_numbers<[1], [0], [0], [1], [0, 0, 1, 1], [], []>} : vector<2x128xbf16>, vector<128x512xbf16>, vector<2x512xf32> -> vector<2x512xf32>
    %129 = arith.addf %126, %128 : vector<2x512xf32>
    %130 = vector.extract_strided_slice %129 {offsets = [0, 0], sizes = [2, 128], strides = [1, 1]} : vector<2x512xf32> to vector<2x128xf32>
    %131 = arith.negf %130 : vector<2x128xf32>
    %132 = math.exp %131 : vector<2x128xf32>
    %cst_44 = arith.constant 1.000000e+00 : f32
    %133 = vector.broadcast %cst_44 : f32 to vector<2x128xf32>
    %134 = arith.addf %133, %132 : vector<2x128xf32>
    %135 = arith.divf %133, %134 : vector<2x128xf32>
    %136 = vector.extract_strided_slice %129 {offsets = [0, 128], sizes = [2, 128], strides = [1, 1]} : vector<2x512xf32> to vector<2x128xf32>
    %137 = arith.negf %136 : vector<2x128xf32>
    %138 = math.exp %137 : vector<2x128xf32>
    %cst_45 = arith.constant 1.000000e+00 : f32
    %139 = vector.broadcast %cst_45 : f32 to vector<2x128xf32>
    %140 = arith.addf %139, %138 : vector<2x128xf32>
    %141 = arith.divf %139, %140 : vector<2x128xf32>
    %142 = vector.extract_strided_slice %129 {offsets = [0, 256], sizes = [2, 128], strides = [1, 1]} : vector<2x512xf32> to vector<2x128xf32>
    %143 = math.tanh %142 : vector<2x128xf32>
    %144 = vector.extract_strided_slice %129 {offsets = [0, 384], sizes = [2, 128], strides = [1, 1]} : vector<2x512xf32> to vector<2x128xf32>
    %145 = arith.negf %144 : vector<2x128xf32>
    %146 = math.exp %145 : vector<2x128xf32>
    %cst_46 = arith.constant 1.000000e+00 : f32
    %147 = vector.broadcast %cst_46 : f32 to vector<2x128xf32>
    %148 = arith.addf %147, %146 : vector<2x128xf32>
    %149 = arith.divf %147, %148 : vector<2x128xf32>
    %150 = arith.mulf %141, %105 : vector<2x128xf32>
    %151 = arith.mulf %135, %143 : vector<2x128xf32>
    %152 = arith.addf %150, %151 : vector<2x128xf32>
    %153 = math.tanh %152 : vector<2x128xf32>
    %154 = arith.mulf %149, %153 : vector<2x128xf32>
    %155 = tpu.concatenate %154, %108 in 1 : vector<2x128xf32>, vector<2x128xf32> -> vector<2x256xf32>
    %156 = arith.truncf %155 : vector<2x256xf32> to vector<2x256xbf16>
    %cst_47 = arith.constant dense<0.000000e+00> : vector<2x512xf32>
    %157 = tpu.matmul %156, %31, %cst_47 {dimension_numbers = #tpu.dot_dimension_numbers<[1], [0], [0], [1], [0, 0, 1, 1], [], []>} : vector<2x256xbf16>, vector<256x512xbf16>, vector<2x512xf32> -> vector<2x512xf32>
    %158 = vector.broadcast %32 : vector<1x512xf32> to vector<2x512xf32>
    %159 = arith.addf %157, %158 : vector<2x512xf32>
    %160 = vector.extract_strided_slice %159 {offsets = [0, 0], sizes = [2, 128], strides = [1, 1]} : vector<2x512xf32> to vector<2x128xf32>
    %161 = arith.negf %160 : vector<2x128xf32>
    %162 = math.exp %161 : vector<2x128xf32>
    %cst_48 = arith.constant 1.000000e+00 : f32
    %163 = vector.broadcast %cst_48 : f32 to vector<2x128xf32>
    %164 = arith.addf %163, %162 : vector<2x128xf32>
    %165 = arith.divf %163, %164 : vector<2x128xf32>
    %166 = vector.extract_strided_slice %159 {offsets = [0, 128], sizes = [2, 128], strides = [1, 1]} : vector<2x512xf32> to vector<2x128xf32>
    %167 = arith.negf %166 : vector<2x128xf32>
    %168 = math.exp %167 : vector<2x128xf32>
    %cst_49 = arith.constant 1.000000e+00 : f32
    %169 = vector.broadcast %cst_49 : f32 to vector<2x128xf32>
    %170 = arith.addf %169, %168 : vector<2x128xf32>
    %171 = arith.divf %169, %170 : vector<2x128xf32>
    %172 = vector.extract_strided_slice %159 {offsets = [0, 256], sizes = [2, 128], strides = [1, 1]} : vector<2x512xf32> to vector<2x128xf32>
    %173 = math.tanh %172 : vector<2x128xf32>
    %174 = vector.extract_strided_slice %159 {offsets = [0, 384], sizes = [2, 128], strides = [1, 1]} : vector<2x512xf32> to vector<2x128xf32>
    %175 = arith.negf %174 : vector<2x128xf32>
    %176 = math.exp %175 : vector<2x128xf32>
    %cst_50 = arith.constant 1.000000e+00 : f32
    %177 = vector.broadcast %cst_50 : f32 to vector<2x128xf32>
    %178 = arith.addf %177, %176 : vector<2x128xf32>
    %179 = arith.divf %177, %178 : vector<2x128xf32>
    %180 = arith.mulf %171, %111 : vector<2x128xf32>
    %181 = arith.mulf %165, %173 : vector<2x128xf32>
    %182 = arith.addf %180, %181 : vector<2x128xf32>
    %183 = math.tanh %182 : vector<2x128xf32>
    %184 = arith.mulf %179, %183 : vector<2x128xf32>
    %185 = vector.shape_cast %124 : vector<2x1xi1> to vector<2x1xi1>
    %186 = vector.broadcast %185 : vector<2x1xi1> to vector<2x128xi1>
    %187 = arith.select %186, %154, %102 : vector<2x128xi1>, vector<2x128xf32>
    %188 = vector.shape_cast %124 : vector<2x1xi1> to vector<2x1xi1>
    %189 = vector.broadcast %188 : vector<2x1xi1> to vector<2x128xi1>
    %190 = arith.select %189, %152, %105 : vector<2x128xi1>, vector<2x128xf32>
    %191 = vector.shape_cast %124 : vector<2x1xi1> to vector<2x1xi1>
    %192 = vector.broadcast %191 : vector<2x1xi1> to vector<2x128xi1>
    %193 = arith.select %192, %184, %108 : vector<2x128xi1>, vector<2x128xf32>
    %194 = vector.shape_cast %124 : vector<2x1xi1> to vector<2x1xi1>
    %195 = vector.broadcast %194 : vector<2x1xi1> to vector<2x128xi1>
    %196 = arith.select %195, %182, %111 : vector<2x128xi1>, vector<2x128xf32>
    %cst_51 = arith.constant 0.000000e+00 : f32
    %197 = vector.shape_cast %124 : vector<2x1xi1> to vector<2x1xi1>
    %198 = vector.broadcast %197 : vector<2x1xi1> to vector<2x128xi1>
    %199 = vector.broadcast %cst_51 : f32 to vector<2x128xf32>
    %200 = arith.select %198, %184, %199 : vector<2x128xi1>, vector<2x128xf32>
    %201 = arith.truncf %200 : vector<2x128xf32> to vector<2x128xbf16>
    %cst_52 = arith.constant dense<0.000000e+00> : vector<2x4xf32>
    %202 = tpu.matmul %201, %34, %cst_52 {dimension_numbers = #tpu.dot_dimension_numbers<[1], [0], [0], [1], [0, 0, 1, 1], [], []>} : vector<2x128xbf16>, vector<128x4xbf16>, vector<2x4xf32> -> vector<2x4xf32>
    %203 = vector.broadcast %35 : vector<1x4xf32> to vector<2x4xf32>
    %204 = arith.addf %202, %203 : vector<2x4xf32>
    %c0_53 = arith.constant 0 : index
    %c1 = arith.constant 1 : index
    %c0_54 = arith.constant 0 : index
    %205 = vector.load %arg13[%c0_53, %c1, %c0_54] : memref<2x8x4xf32, #tpu.memory_space<vmem>>, vector<2x1x4xf32>
    %206 = vector.shape_cast %205 : vector<2x1x4xf32> to vector<2x4xf32>
    %207 = vector.shape_cast %204 : vector<2x4xf32> to vector<2x1x4xf32>
    tpu.vector_store %arg13[%c0_53, %c1, %c0_54], %207 {strides = array<i32>} : memref<2x8x4xf32, #tpu.memory_space<vmem>>, vector<2x1x4xf32>,
    %c2_i32 = arith.constant 2 : i32
    %208 = vector.broadcast %c2_i32 : i32 to vector<2x1xi32>
    %209 = arith.cmpi sgt, %36, %208 : vector<2x1xi32>
    %210 = vector.extract_strided_slice %27 {offsets = [0, 2, 0], sizes = [2, 1, 512], strides = [1, 1, 1]} : vector<2x8x512xf32> to vector<2x1x512xf32>
    %211 = vector.shape_cast %210 : vector<2x1x512xf32> to vector<2x512xf32>
    %212 = arith.truncf %187 : vector<2x128xf32> to vector<2x128xbf16>
    %cst_55 = arith.constant dense<0.000000e+00> : vector<2x512xf32>
    %213 = tpu.matmul %212, %29, %cst_55 {dimension_numbers = #tpu.dot_dimension_numbers<[1], [0], [0], [1], [0, 0, 1, 1], [], []>} : vector<2x128xbf16>, vector<128x512xbf16>, vector<2x512xf32> -> vector<2x512xf32>
    %214 = arith.addf %211, %213 : vector<2x512xf32>
    %215 = vector.extract_strided_slice %214 {offsets = [0, 0], sizes = [2, 128], strides = [1, 1]} : vector<2x512xf32> to vector<2x128xf32>
    %216 = arith.negf %215 : vector<2x128xf32>
    %217 = math.exp %216 : vector<2x128xf32>
    %cst_56 = arith.constant 1.000000e+00 : f32
    %218 = vector.broadcast %cst_56 : f32 to vector<2x128xf32>
    %219 = arith.addf %218, %217 : vector<2x128xf32>
    %220 = arith.divf %218, %219 : vector<2x128xf32>
    %221 = vector.extract_strided_slice %214 {offsets = [0, 128], sizes = [2, 128], strides = [1, 1]} : vector<2x512xf32> to vector<2x128xf32>
    %222 = arith.negf %221 : vector<2x128xf32>
    %223 = math.exp %222 : vector<2x128xf32>
    %cst_57 = arith.constant 1.000000e+00 : f32
    %224 = vector.broadcast %cst_57 : f32 to vector<2x128xf32>
    %225 = arith.addf %224, %223 : vector<2x128xf32>
    %226 = arith.divf %224, %225 : vector<2x128xf32>
    %227 = vector.extract_strided_slice %214 {offsets = [0, 256], sizes = [2, 128], strides = [1, 1]} : vector<2x512xf32> to vector<2x128xf32>
    %228 = math.tanh %227 : vector<2x128xf32>
    %229 = vector.extract_strided_slice %214 {offsets = [0, 384], sizes = [2, 128], strides = [1, 1]} : vector<2x512xf32> to vector<2x128xf32>
    %230 = arith.negf %229 : vector<2x128xf32>
    %231 = math.exp %230 : vector<2x128xf32>
    %cst_58 = arith.constant 1.000000e+00 : f32
    %232 = vector.broadcast %cst_58 : f32 to vector<2x128xf32>
    %233 = arith.addf %232, %231 : vector<2x128xf32>
    %234 = arith.divf %232, %233 : vector<2x128xf32>
    %235 = arith.mulf %226, %190 : vector<2x128xf32>
    %236 = arith.mulf %220, %228 : vector<2x128xf32>
    %237 = arith.addf %235, %236 : vector<2x128xf32>
    %238 = math.tanh %237 : vector<2x128xf32>
    %239 = arith.mulf %234, %238 : vector<2x128xf32>
    %240 = tpu.concatenate %239, %193 in 1 : vector<2x128xf32>, vector<2x128xf32> -> vector<2x256xf32>
    %241 = arith.truncf %240 : vector<2x256xf32> to vector<2x256xbf16>
    %cst_59 = arith.constant dense<0.000000e+00> : vector<2x512xf32>
    %242 = tpu.matmul %241, %31, %cst_59 {dimension_numbers = #tpu.dot_dimension_numbers<[1], [0], [0], [1], [0, 0, 1, 1], [], []>} : vector<2x256xbf16>, vector<256x512xbf16>, vector<2x512xf32> -> vector<2x512xf32>
    %243 = vector.broadcast %32 : vector<1x512xf32> to vector<2x512xf32>
    %244 = arith.addf %242, %243 : vector<2x512xf32>
    %245 = vector.extract_strided_slice %244 {offsets = [0, 0], sizes = [2, 128], strides = [1, 1]} : vector<2x512xf32> to vector<2x128xf32>
    %246 = arith.negf %245 : vector<2x128xf32>
    %247 = math.exp %246 : vector<2x128xf32>
    %cst_60 = arith.constant 1.000000e+00 : f32
    %248 = vector.broadcast %cst_60 : f32 to vector<2x128xf32>
    %249 = arith.addf %248, %247 : vector<2x128xf32>
    %250 = arith.divf %248, %249 : vector<2x128xf32>
    %251 = vector.extract_strided_slice %244 {offsets = [0, 128], sizes = [2, 128], strides = [1, 1]} : vector<2x512xf32> to vector<2x128xf32>
    %252 = arith.negf %251 : vector<2x128xf32>
    %253 = math.exp %252 : vector<2x128xf32>
    %cst_61 = arith.constant 1.000000e+00 : f32
    %254 = vector.broadcast %cst_61 : f32 to vector<2x128xf32>
    %255 = arith.addf %254, %253 : vector<2x128xf32>
    %256 = arith.divf %254, %255 : vector<2x128xf32>
    %257 = vector.extract_strided_slice %244 {offsets = [0, 256], sizes = [2, 128], strides = [1, 1]} : vector<2x512xf32> to vector<2x128xf32>
    %258 = math.tanh %257 : vector<2x128xf32>
    %259 = vector.extract_strided_slice %244 {offsets = [0, 384], sizes = [2, 128], strides = [1, 1]} : vector<2x512xf32> to vector<2x128xf32>
    %260 = arith.negf %259 : vector<2x128xf32>
    %261 = math.exp %260 : vector<2x128xf32>
    %cst_62 = arith.constant 1.000000e+00 : f32
    %262 = vector.broadcast %cst_62 : f32 to vector<2x128xf32>
    %263 = arith.addf %262, %261 : vector<2x128xf32>
    %264 = arith.divf %262, %263 : vector<2x128xf32>
    %265 = arith.mulf %256, %196 : vector<2x128xf32>
    %266 = arith.mulf %250, %258 : vector<2x128xf32>
    %267 = arith.addf %265, %266 : vector<2x128xf32>
    %268 = math.tanh %267 : vector<2x128xf32>
    %269 = arith.mulf %264, %268 : vector<2x128xf32>
    %270 = vector.shape_cast %209 : vector<2x1xi1> to vector<2x1xi1>
    %271 = vector.broadcast %270 : vector<2x1xi1> to vector<2x128xi1>
    %272 = arith.select %271, %239, %187 : vector<2x128xi1>, vector<2x128xf32>
    %273 = vector.shape_cast %209 : vector<2x1xi1> to vector<2x1xi1>
    %274 = vector.broadcast %273 : vector<2x1xi1> to vector<2x128xi1>
    %275 = arith.select %274, %237, %190 : vector<2x128xi1>, vector<2x128xf32>
    %276 = vector.shape_cast %209 : vector<2x1xi1> to vector<2x1xi1>
    %277 = vector.broadcast %276 : vector<2x1xi1> to vector<2x128xi1>
    %278 = arith.select %277, %269, %193 : vector<2x128xi1>, vector<2x128xf32>
    %279 = vector.shape_cast %209 : vector<2x1xi1> to vector<2x1xi1>
    %280 = vector.broadcast %279 : vector<2x1xi1> to vector<2x128xi1>
    %281 = arith.select %280, %267, %196 : vector<2x128xi1>, vector<2x128xf32>
    %cst_63 = arith.constant 0.000000e+00 : f32
    %282 = vector.shape_cast %209 : vector<2x1xi1> to vector<2x1xi1>
    %283 = vector.broadcast %282 : vector<2x1xi1> to vector<2x128xi1>
    %284 = vector.broadcast %cst_63 : f32 to vector<2x128xf32>
    %285 = arith.select %283, %269, %284 : vector<2x128xi1>, vector<2x128xf32>
    %286 = arith.truncf %285 : vector<2x128xf32> to vector<2x128xbf16>
    %cst_64 = arith.constant dense<0.000000e+00> : vector<2x4xf32>
    %287 = tpu.matmul %286, %34, %cst_64 {dimension_numbers = #tpu.dot_dimension_numbers<[1], [0], [0], [1], [0, 0, 1, 1], [], []>} : vector<2x128xbf16>, vector<128x4xbf16>, vector<2x4xf32> -> vector<2x4xf32>
    %288 = vector.broadcast %35 : vector<1x4xf32> to vector<2x4xf32>
    %289 = arith.addf %287, %288 : vector<2x4xf32>
    %c0_65 = arith.constant 0 : index
    %c2 = arith.constant 2 : index
    %c0_66 = arith.constant 0 : index
    %290 = vector.load %arg13[%c0_65, %c2, %c0_66] : memref<2x8x4xf32, #tpu.memory_space<vmem>>, vector<2x1x4xf32>
    %291 = vector.shape_cast %290 : vector<2x1x4xf32> to vector<2x4xf32>
    %292 = vector.shape_cast %289 : vector<2x4xf32> to vector<2x1x4xf32>
    tpu.vector_store %arg13[%c0_65, %c2, %c0_66], %292 {strides = array<i32>} : memref<2x8x4xf32, #tpu.memory_space<vmem>>, vector<2x1x4xf32>,
    %c3_i32 = arith.constant 3 : i32
    %293 = vector.broadcast %c3_i32 : i32 to vector<2x1xi32>
    %294 = arith.cmpi sgt, %36, %293 : vector<2x1xi32>
    %295 = vector.extract_strided_slice %27 {offsets = [0, 3, 0], sizes = [2, 1, 512], strides = [1, 1, 1]} : vector<2x8x512xf32> to vector<2x1x512xf32>
    %296 = vector.shape_cast %295 : vector<2x1x512xf32> to vector<2x512xf32>
    %297 = arith.truncf %272 : vector<2x128xf32> to vector<2x128xbf16>
    %cst_67 = arith.constant dense<0.000000e+00> : vector<2x512xf32>
    %298 = tpu.matmul %297, %29, %cst_67 {dimension_numbers = #tpu.dot_dimension_numbers<[1], [0], [0], [1], [0, 0, 1, 1], [], []>} : vector<2x128xbf16>, vector<128x512xbf16>, vector<2x512xf32> -> vector<2x512xf32>
    %299 = arith.addf %296, %298 : vector<2x512xf32>
    %300 = vector.extract_strided_slice %299 {offsets = [0, 0], sizes = [2, 128], strides = [1, 1]} : vector<2x512xf32> to vector<2x128xf32>
    %301 = arith.negf %300 : vector<2x128xf32>
    %302 = math.exp %301 : vector<2x128xf32>
    %cst_68 = arith.constant 1.000000e+00 : f32
    %303 = vector.broadcast %cst_68 : f32 to vector<2x128xf32>
    %304 = arith.addf %303, %302 : vector<2x128xf32>
    %305 = arith.divf %303, %304 : vector<2x128xf32>
    %306 = vector.extract_strided_slice %299 {offsets = [0, 128], sizes = [2, 128], strides = [1, 1]} : vector<2x512xf32> to vector<2x128xf32>
    %307 = arith.negf %306 : vector<2x128xf32>
    %308 = math.exp %307 : vector<2x128xf32>
    %cst_69 = arith.constant 1.000000e+00 : f32
    %309 = vector.broadcast %cst_69 : f32 to vector<2x128xf32>
    %310 = arith.addf %309, %308 : vector<2x128xf32>
    %311 = arith.divf %309, %310 : vector<2x128xf32>
    %312 = vector.extract_strided_slice %299 {offsets = [0, 256], sizes = [2, 128], strides = [1, 1]} : vector<2x512xf32> to vector<2x128xf32>
    %313 = math.tanh %312 : vector<2x128xf32>
    %314 = vector.extract_strided_slice %299 {offsets = [0, 384], sizes = [2, 128], strides = [1, 1]} : vector<2x512xf32> to vector<2x128xf32>
    %315 = arith.negf %314 : vector<2x128xf32>
    %316 = math.exp %315 : vector<2x128xf32>
    %cst_70 = arith.constant 1.000000e+00 : f32
    %317 = vector.broadcast %cst_70 : f32 to vector<2x128xf32>
    %318 = arith.addf %317, %316 : vector<2x128xf32>
    %319 = arith.divf %317, %318 : vector<2x128xf32>
    %320 = arith.mulf %311, %275 : vector<2x128xf32>
    %321 = arith.mulf %305, %313 : vector<2x128xf32>
    %322 = arith.addf %320, %321 : vector<2x128xf32>
    %323 = math.tanh %322 : vector<2x128xf32>
    %324 = arith.mulf %319, %323 : vector<2x128xf32>
    %325 = tpu.concatenate %324, %278 in 1 : vector<2x128xf32>, vector<2x128xf32> -> vector<2x256xf32>
    %326 = arith.truncf %325 : vector<2x256xf32> to vector<2x256xbf16>
    %cst_71 = arith.constant dense<0.000000e+00> : vector<2x512xf32>
    %327 = tpu.matmul %326, %31, %cst_71 {dimension_numbers = #tpu.dot_dimension_numbers<[1], [0], [0], [1], [0, 0, 1, 1], [], []>} : vector<2x256xbf16>, vector<256x512xbf16>, vector<2x512xf32> -> vector<2x512xf32>
    %328 = vector.broadcast %32 : vector<1x512xf32> to vector<2x512xf32>
    %329 = arith.addf %327, %328 : vector<2x512xf32>
    %330 = vector.extract_strided_slice %329 {offsets = [0, 0], sizes = [2, 128], strides = [1, 1]} : vector<2x512xf32> to vector<2x128xf32>
    %331 = arith.negf %330 : vector<2x128xf32>
    %332 = math.exp %331 : vector<2x128xf32>
    %cst_72 = arith.constant 1.000000e+00 : f32
    %333 = vector.broadcast %cst_72 : f32 to vector<2x128xf32>
    %334 = arith.addf %333, %332 : vector<2x128xf32>
    %335 = arith.divf %333, %334 : vector<2x128xf32>
    %336 = vector.extract_strided_slice %329 {offsets = [0, 128], sizes = [2, 128], strides = [1, 1]} : vector<2x512xf32> to vector<2x128xf32>
    %337 = arith.negf %336 : vector<2x128xf32>
    %338 = math.exp %337 : vector<2x128xf32>
    %cst_73 = arith.constant 1.000000e+00 : f32
    %339 = vector.broadcast %cst_73 : f32 to vector<2x128xf32>
    %340 = arith.addf %339, %338 : vector<2x128xf32>
    %341 = arith.divf %339, %340 : vector<2x128xf32>
    %342 = vector.extract_strided_slice %329 {offsets = [0, 256], sizes = [2, 128], strides = [1, 1]} : vector<2x512xf32> to vector<2x128xf32>
    %343 = math.tanh %342 : vector<2x128xf32>
    %344 = vector.extract_strided_slice %329 {offsets = [0, 384], sizes = [2, 128], strides = [1, 1]} : vector<2x512xf32> to vector<2x128xf32>
    %345 = arith.negf %344 : vector<2x128xf32>
    %346 = math.exp %345 : vector<2x128xf32>
    %cst_74 = arith.constant 1.000000e+00 : f32
    %347 = vector.broadcast %cst_74 : f32 to vector<2x128xf32>
    %348 = arith.addf %347, %346 : vector<2x128xf32>
    %349 = arith.divf %347, %348 : vector<2x128xf32>
    %350 = arith.mulf %341, %281 : vector<2x128xf32>
    %351 = arith.mulf %335, %343 : vector<2x128xf32>
    %352 = arith.addf %350, %351 : vector<2x128xf32>
    %353 = math.tanh %352 : vector<2x128xf32>
    %354 = arith.mulf %349, %353 : vector<2x128xf32>
    %355 = vector.shape_cast %294 : vector<2x1xi1> to vector<2x1xi1>
    %356 = vector.broadcast %355 : vector<2x1xi1> to vector<2x128xi1>
    %357 = arith.select %356, %324, %272 : vector<2x128xi1>, vector<2x128xf32>
    %358 = vector.shape_cast %294 : vector<2x1xi1> to vector<2x1xi1>
    %359 = vector.broadcast %358 : vector<2x1xi1> to vector<2x128xi1>
    %360 = arith.select %359, %322, %275 : vector<2x128xi1>, vector<2x128xf32>
    %361 = vector.shape_cast %294 : vector<2x1xi1> to vector<2x1xi1>
    %362 = vector.broadcast %361 : vector<2x1xi1> to vector<2x128xi1>
    %363 = arith.select %362, %354, %278 : vector<2x128xi1>, vector<2x128xf32>
    %364 = vector.shape_cast %294 : vector<2x1xi1> to vector<2x1xi1>
    %365 = vector.broadcast %364 : vector<2x1xi1> to vector<2x128xi1>
    %366 = arith.select %365, %352, %281 : vector<2x128xi1>, vector<2x128xf32>
    %cst_75 = arith.constant 0.000000e+00 : f32
    %367 = vector.shape_cast %294 : vector<2x1xi1> to vector<2x1xi1>
    %368 = vector.broadcast %367 : vector<2x1xi1> to vector<2x128xi1>
    %369 = vector.broadcast %cst_75 : f32 to vector<2x128xf32>
    %370 = arith.select %368, %354, %369 : vector<2x128xi1>, vector<2x128xf32>
    %371 = arith.truncf %370 : vector<2x128xf32> to vector<2x128xbf16>
    %cst_76 = arith.constant dense<0.000000e+00> : vector<2x4xf32>
    %372 = tpu.matmul %371, %34, %cst_76 {dimension_numbers = #tpu.dot_dimension_numbers<[1], [0], [0], [1], [0, 0, 1, 1], [], []>} : vector<2x128xbf16>, vector<128x4xbf16>, vector<2x4xf32> -> vector<2x4xf32>
    %373 = vector.broadcast %35 : vector<1x4xf32> to vector<2x4xf32>
    %374 = arith.addf %372, %373 : vector<2x4xf32>
    %c0_77 = arith.constant 0 : index
    %c3 = arith.constant 3 : index
    %c0_78 = arith.constant 0 : index
    %375 = vector.load %arg13[%c0_77, %c3, %c0_78] : memref<2x8x4xf32, #tpu.memory_space<vmem>>, vector<2x1x4xf32>
    %376 = vector.shape_cast %375 : vector<2x1x4xf32> to vector<2x4xf32>
    %377 = vector.shape_cast %374 : vector<2x4xf32> to vector<2x1x4xf32>
    tpu.vector_store %arg13[%c0_77, %c3, %c0_78], %377 {strides = array<i32>} : memref<2x8x4xf32, #tpu.memory_space<vmem>>, vector<2x1x4xf32>,
    %c4_i32 = arith.constant 4 : i32
    %378 = vector.broadcast %c4_i32 : i32 to vector<2x1xi32>
    %379 = arith.cmpi sgt, %36, %378 : vector<2x1xi32>
    %380 = vector.extract_strided_slice %27 {offsets = [0, 4, 0], sizes = [2, 1, 512], strides = [1, 1, 1]} : vector<2x8x512xf32> to vector<2x1x512xf32>
    %381 = vector.shape_cast %380 : vector<2x1x512xf32> to vector<2x512xf32>
    %382 = arith.truncf %357 : vector<2x128xf32> to vector<2x128xbf16>
    %cst_79 = arith.constant dense<0.000000e+00> : vector<2x512xf32>
    %383 = tpu.matmul %382, %29, %cst_79 {dimension_numbers = #tpu.dot_dimension_numbers<[1], [0], [0], [1], [0, 0, 1, 1], [], []>} : vector<2x128xbf16>, vector<128x512xbf16>, vector<2x512xf32> -> vector<2x512xf32>
    %384 = arith.addf %381, %383 : vector<2x512xf32>
    %385 = vector.extract_strided_slice %384 {offsets = [0, 0], sizes = [2, 128], strides = [1, 1]} : vector<2x512xf32> to vector<2x128xf32>
    %386 = arith.negf %385 : vector<2x128xf32>
    %387 = math.exp %386 : vector<2x128xf32>
    %cst_80 = arith.constant 1.000000e+00 : f32
    %388 = vector.broadcast %cst_80 : f32 to vector<2x128xf32>
    %389 = arith.addf %388, %387 : vector<2x128xf32>
    %390 = arith.divf %388, %389 : vector<2x128xf32>
    %391 = vector.extract_strided_slice %384 {offsets = [0, 128], sizes = [2, 128], strides = [1, 1]} : vector<2x512xf32> to vector<2x128xf32>
    %392 = arith.negf %391 : vector<2x128xf32>
    %393 = math.exp %392 : vector<2x128xf32>
    %cst_81 = arith.constant 1.000000e+00 : f32
    %394 = vector.broadcast %cst_81 : f32 to vector<2x128xf32>
    %395 = arith.addf %394, %393 : vector<2x128xf32>
    %396 = arith.divf %394, %395 : vector<2x128xf32>
    %397 = vector.extract_strided_slice %384 {offsets = [0, 256], sizes = [2, 128], strides = [1, 1]} : vector<2x512xf32> to vector<2x128xf32>
    %398 = math.tanh %397 : vector<2x128xf32>
    %399 = vector.extract_strided_slice %384 {offsets = [0, 384], sizes = [2, 128], strides = [1, 1]} : vector<2x512xf32> to vector<2x128xf32>
    %400 = arith.negf %399 : vector<2x128xf32>
    %401 = math.exp %400 : vector<2x128xf32>
    %cst_82 = arith.constant 1.000000e+00 : f32
    %402 = vector.broadcast %cst_82 : f32 to vector<2x128xf32>
    %403 = arith.addf %402, %401 : vector<2x128xf32>
    %404 = arith.divf %402, %403 : vector<2x128xf32>
    %405 = arith.mulf %396, %360 : vector<2x128xf32>
    %406 = arith.mulf %390, %398 : vector<2x128xf32>
    %407 = arith.addf %405, %406 : vector<2x128xf32>
    %408 = math.tanh %407 : vector<2x128xf32>
    %409 = arith.mulf %404, %408 : vector<2x128xf32>
    %410 = tpu.concatenate %409, %363 in 1 : vector<2x128xf32>, vector<2x128xf32> -> vector<2x256xf32>
    %411 = arith.truncf %410 : vector<2x256xf32> to vector<2x256xbf16>
    %cst_83 = arith.constant dense<0.000000e+00> : vector<2x512xf32>
    %412 = tpu.matmul %411, %31, %cst_83 {dimension_numbers = #tpu.dot_dimension_numbers<[1], [0], [0], [1], [0, 0, 1, 1], [], []>} : vector<2x256xbf16>, vector<256x512xbf16>, vector<2x512xf32> -> vector<2x512xf32>
    %413 = vector.broadcast %32 : vector<1x512xf32> to vector<2x512xf32>
    %414 = arith.addf %412, %413 : vector<2x512xf32>
    %415 = vector.extract_strided_slice %414 {offsets = [0, 0], sizes = [2, 128], strides = [1, 1]} : vector<2x512xf32> to vector<2x128xf32>
    %416 = arith.negf %415 : vector<2x128xf32>
    %417 = math.exp %416 : vector<2x128xf32>
    %cst_84 = arith.constant 1.000000e+00 : f32
    %418 = vector.broadcast %cst_84 : f32 to vector<2x128xf32>
    %419 = arith.addf %418, %417 : vector<2x128xf32>
    %420 = arith.divf %418, %419 : vector<2x128xf32>
    %421 = vector.extract_strided_slice %414 {offsets = [0, 128], sizes = [2, 128], strides = [1, 1]} : vector<2x512xf32> to vector<2x128xf32>
    %422 = arith.negf %421 : vector<2x128xf32>
    %423 = math.exp %422 : vector<2x128xf32>
    %cst_85 = arith.constant 1.000000e+00 : f32
    %424 = vector.broadcast %cst_85 : f32 to vector<2x128xf32>
    %425 = arith.addf %424, %423 : vector<2x128xf32>
    %426 = arith.divf %424, %425 : vector<2x128xf32>
    %427 = vector.extract_strided_slice %414 {offsets = [0, 256], sizes = [2, 128], strides = [1, 1]} : vector<2x512xf32> to vector<2x128xf32>
    %428 = math.tanh %427 : vector<2x128xf32>
    %429 = vector.extract_strided_slice %414 {offsets = [0, 384], sizes = [2, 128], strides = [1, 1]} : vector<2x512xf32> to vector<2x128xf32>
    %430 = arith.negf %429 : vector<2x128xf32>
    %431 = math.exp %430 : vector<2x128xf32>
    %cst_86 = arith.constant 1.000000e+00 : f32
    %432 = vector.broadcast %cst_86 : f32 to vector<2x128xf32>
    %433 = arith.addf %432, %431 : vector<2x128xf32>
    %434 = arith.divf %432, %433 : vector<2x128xf32>
    %435 = arith.mulf %426, %366 : vector<2x128xf32>
    %436 = arith.mulf %420, %428 : vector<2x128xf32>
    %437 = arith.addf %435, %436 : vector<2x128xf32>
    %438 = math.tanh %437 : vector<2x128xf32>
    %439 = arith.mulf %434, %438 : vector<2x128xf32>
    %440 = vector.shape_cast %379 : vector<2x1xi1> to vector<2x1xi1>
    %441 = vector.broadcast %440 : vector<2x1xi1> to vector<2x128xi1>
    %442 = arith.select %441, %409, %357 : vector<2x128xi1>, vector<2x128xf32>
    %443 = vector.shape_cast %379 : vector<2x1xi1> to vector<2x1xi1>
    %444 = vector.broadcast %443 : vector<2x1xi1> to vector<2x128xi1>
    %445 = arith.select %444, %407, %360 : vector<2x128xi1>, vector<2x128xf32>
    %446 = vector.shape_cast %379 : vector<2x1xi1> to vector<2x1xi1>
    %447 = vector.broadcast %446 : vector<2x1xi1> to vector<2x128xi1>
    %448 = arith.select %447, %439, %363 : vector<2x128xi1>, vector<2x128xf32>
    %449 = vector.shape_cast %379 : vector<2x1xi1> to vector<2x1xi1>
    %450 = vector.broadcast %449 : vector<2x1xi1> to vector<2x128xi1>
    %451 = arith.select %450, %437, %366 : vector<2x128xi1>, vector<2x128xf32>
    %cst_87 = arith.constant 0.000000e+00 : f32
    %452 = vector.shape_cast %379 : vector<2x1xi1> to vector<2x1xi1>
    %453 = vector.broadcast %452 : vector<2x1xi1> to vector<2x128xi1>
    %454 = vector.broadcast %cst_87 : f32 to vector<2x128xf32>
    %455 = arith.select %453, %439, %454 : vector<2x128xi1>, vector<2x128xf32>
    %456 = arith.truncf %455 : vector<2x128xf32> to vector<2x128xbf16>
    %cst_88 = arith.constant dense<0.000000e+00> : vector<2x4xf32>
    %457 = tpu.matmul %456, %34, %cst_88 {dimension_numbers = #tpu.dot_dimension_numbers<[1], [0], [0], [1], [0, 0, 1, 1], [], []>} : vector<2x128xbf16>, vector<128x4xbf16>, vector<2x4xf32> -> vector<2x4xf32>
    %458 = vector.broadcast %35 : vector<1x4xf32> to vector<2x4xf32>
    %459 = arith.addf %457, %458 : vector<2x4xf32>
    %c0_89 = arith.constant 0 : index
    %c4 = arith.constant 4 : index
    %c0_90 = arith.constant 0 : index
    %460 = vector.load %arg13[%c0_89, %c4, %c0_90] : memref<2x8x4xf32, #tpu.memory_space<vmem>>, vector<2x1x4xf32>
    %461 = vector.shape_cast %460 : vector<2x1x4xf32> to vector<2x4xf32>
    %462 = vector.shape_cast %459 : vector<2x4xf32> to vector<2x1x4xf32>
    tpu.vector_store %arg13[%c0_89, %c4, %c0_90], %462 {strides = array<i32>} : memref<2x8x4xf32, #tpu.memory_space<vmem>>, vector<2x1x4xf32>,
    %c5_i32 = arith.constant 5 : i32
    %463 = vector.broadcast %c5_i32 : i32 to vector<2x1xi32>
    %464 = arith.cmpi sgt, %36, %463 : vector<2x1xi32>
    %465 = vector.extract_strided_slice %27 {offsets = [0, 5, 0], sizes = [2, 1, 512], strides = [1, 1, 1]} : vector<2x8x512xf32> to vector<2x1x512xf32>
    %466 = vector.shape_cast %465 : vector<2x1x512xf32> to vector<2x512xf32>
    %467 = arith.truncf %442 : vector<2x128xf32> to vector<2x128xbf16>
    %cst_91 = arith.constant dense<0.000000e+00> : vector<2x512xf32>
    %468 = tpu.matmul %467, %29, %cst_91 {dimension_numbers = #tpu.dot_dimension_numbers<[1], [0], [0], [1], [0, 0, 1, 1], [], []>} : vector<2x128xbf16>, vector<128x512xbf16>, vector<2x512xf32> -> vector<2x512xf32>
    %469 = arith.addf %466, %468 : vector<2x512xf32>
    %470 = vector.extract_strided_slice %469 {offsets = [0, 0], sizes = [2, 128], strides = [1, 1]} : vector<2x512xf32> to vector<2x128xf32>
    %471 = arith.negf %470 : vector<2x128xf32>
    %472 = math.exp %471 : vector<2x128xf32>
    %cst_92 = arith.constant 1.000000e+00 : f32
    %473 = vector.broadcast %cst_92 : f32 to vector<2x128xf32>
    %474 = arith.addf %473, %472 : vector<2x128xf32>
    %475 = arith.divf %473, %474 : vector<2x128xf32>
    %476 = vector.extract_strided_slice %469 {offsets = [0, 128], sizes = [2, 128], strides = [1, 1]} : vector<2x512xf32> to vector<2x128xf32>
    %477 = arith.negf %476 : vector<2x128xf32>
    %478 = math.exp %477 : vector<2x128xf32>
    %cst_93 = arith.constant 1.000000e+00 : f32
    %479 = vector.broadcast %cst_93 : f32 to vector<2x128xf32>
    %480 = arith.addf %479, %478 : vector<2x128xf32>
    %481 = arith.divf %479, %480 : vector<2x128xf32>
    %482 = vector.extract_strided_slice %469 {offsets = [0, 256], sizes = [2, 128], strides = [1, 1]} : vector<2x512xf32> to vector<2x128xf32>
    %483 = math.tanh %482 : vector<2x128xf32>
    %484 = vector.extract_strided_slice %469 {offsets = [0, 384], sizes = [2, 128], strides = [1, 1]} : vector<2x512xf32> to vector<2x128xf32>
    %485 = arith.negf %484 : vector<2x128xf32>
    %486 = math.exp %485 : vector<2x128xf32>
    %cst_94 = arith.constant 1.000000e+00 : f32
    %487 = vector.broadcast %cst_94 : f32 to vector<2x128xf32>
    %488 = arith.addf %487, %486 : vector<2x128xf32>
    %489 = arith.divf %487, %488 : vector<2x128xf32>
    %490 = arith.mulf %481, %445 : vector<2x128xf32>
    %491 = arith.mulf %475, %483 : vector<2x128xf32>
    %492 = arith.addf %490, %491 : vector<2x128xf32>
    %493 = math.tanh %492 : vector<2x128xf32>
    %494 = arith.mulf %489, %493 : vector<2x128xf32>
    %495 = tpu.concatenate %494, %448 in 1 : vector<2x128xf32>, vector<2x128xf32> -> vector<2x256xf32>
    %496 = arith.truncf %495 : vector<2x256xf32> to vector<2x256xbf16>
    %cst_95 = arith.constant dense<0.000000e+00> : vector<2x512xf32>
    %497 = tpu.matmul %496, %31, %cst_95 {dimension_numbers = #tpu.dot_dimension_numbers<[1], [0], [0], [1], [0, 0, 1, 1], [], []>} : vector<2x256xbf16>, vector<256x512xbf16>, vector<2x512xf32> -> vector<2x512xf32>
    %498 = vector.broadcast %32 : vector<1x512xf32> to vector<2x512xf32>
    %499 = arith.addf %497, %498 : vector<2x512xf32>
    %500 = vector.extract_strided_slice %499 {offsets = [0, 0], sizes = [2, 128], strides = [1, 1]} : vector<2x512xf32> to vector<2x128xf32>
    %501 = arith.negf %500 : vector<2x128xf32>
    %502 = math.exp %501 : vector<2x128xf32>
    %cst_96 = arith.constant 1.000000e+00 : f32
    %503 = vector.broadcast %cst_96 : f32 to vector<2x128xf32>
    %504 = arith.addf %503, %502 : vector<2x128xf32>
    %505 = arith.divf %503, %504 : vector<2x128xf32>
    %506 = vector.extract_strided_slice %499 {offsets = [0, 128], sizes = [2, 128], strides = [1, 1]} : vector<2x512xf32> to vector<2x128xf32>
    %507 = arith.negf %506 : vector<2x128xf32>
    %508 = math.exp %507 : vector<2x128xf32>
    %cst_97 = arith.constant 1.000000e+00 : f32
    %509 = vector.broadcast %cst_97 : f32 to vector<2x128xf32>
    %510 = arith.addf %509, %508 : vector<2x128xf32>
    %511 = arith.divf %509, %510 : vector<2x128xf32>
    %512 = vector.extract_strided_slice %499 {offsets = [0, 256], sizes = [2, 128], strides = [1, 1]} : vector<2x512xf32> to vector<2x128xf32>
    %513 = math.tanh %512 : vector<2x128xf32>
    %514 = vector.extract_strided_slice %499 {offsets = [0, 384], sizes = [2, 128], strides = [1, 1]} : vector<2x512xf32> to vector<2x128xf32>
    %515 = arith.negf %514 : vector<2x128xf32>
    %516 = math.exp %515 : vector<2x128xf32>
    %cst_98 = arith.constant 1.000000e+00 : f32
    %517 = vector.broadcast %cst_98 : f32 to vector<2x128xf32>
    %518 = arith.addf %517, %516 : vector<2x128xf32>
    %519 = arith.divf %517, %518 : vector<2x128xf32>
    %520 = arith.mulf %511, %451 : vector<2x128xf32>
    %521 = arith.mulf %505, %513 : vector<2x128xf32>
    %522 = arith.addf %520, %521 : vector<2x128xf32>
    %523 = math.tanh %522 : vector<2x128xf32>
    %524 = arith.mulf %519, %523 : vector<2x128xf32>
    %525 = vector.shape_cast %464 : vector<2x1xi1> to vector<2x1xi1>
    %526 = vector.broadcast %525 : vector<2x1xi1> to vector<2x128xi1>
    %527 = arith.select %526, %494, %442 : vector<2x128xi1>, vector<2x128xf32>
    %528 = vector.shape_cast %464 : vector<2x1xi1> to vector<2x1xi1>
    %529 = vector.broadcast %528 : vector<2x1xi1> to vector<2x128xi1>
    %530 = arith.select %529, %492, %445 : vector<2x128xi1>, vector<2x128xf32>
    %531 = vector.shape_cast %464 : vector<2x1xi1> to vector<2x1xi1>
    %532 = vector.broadcast %531 : vector<2x1xi1> to vector<2x128xi1>
    %533 = arith.select %532, %524, %448 : vector<2x128xi1>, vector<2x128xf32>
    %534 = vector.shape_cast %464 : vector<2x1xi1> to vector<2x1xi1>
    %535 = vector.broadcast %534 : vector<2x1xi1> to vector<2x128xi1>
    %536 = arith.select %535, %522, %451 : vector<2x128xi1>, vector<2x128xf32>
    %cst_99 = arith.constant 0.000000e+00 : f32
    %537 = vector.shape_cast %464 : vector<2x1xi1> to vector<2x1xi1>
    %538 = vector.broadcast %537 : vector<2x1xi1> to vector<2x128xi1>
    %539 = vector.broadcast %cst_99 : f32 to vector<2x128xf32>
    %540 = arith.select %538, %524, %539 : vector<2x128xi1>, vector<2x128xf32>
    %541 = arith.truncf %540 : vector<2x128xf32> to vector<2x128xbf16>
    %cst_100 = arith.constant dense<0.000000e+00> : vector<2x4xf32>
    %542 = tpu.matmul %541, %34, %cst_100 {dimension_numbers = #tpu.dot_dimension_numbers<[1], [0], [0], [1], [0, 0, 1, 1], [], []>} : vector<2x128xbf16>, vector<128x4xbf16>, vector<2x4xf32> -> vector<2x4xf32>
    %543 = vector.broadcast %35 : vector<1x4xf32> to vector<2x4xf32>
    %544 = arith.addf %542, %543 : vector<2x4xf32>
    %c0_101 = arith.constant 0 : index
    %c5 = arith.constant 5 : index
    %c0_102 = arith.constant 0 : index
    %545 = vector.load %arg13[%c0_101, %c5, %c0_102] : memref<2x8x4xf32, #tpu.memory_space<vmem>>, vector<2x1x4xf32>
    %546 = vector.shape_cast %545 : vector<2x1x4xf32> to vector<2x4xf32>
    %547 = vector.shape_cast %544 : vector<2x4xf32> to vector<2x1x4xf32>
    tpu.vector_store %arg13[%c0_101, %c5, %c0_102], %547 {strides = array<i32>} : memref<2x8x4xf32, #tpu.memory_space<vmem>>, vector<2x1x4xf32>,
    %c6_i32 = arith.constant 6 : i32
    %548 = vector.broadcast %c6_i32 : i32 to vector<2x1xi32>
    %549 = arith.cmpi sgt, %36, %548 : vector<2x1xi32>
    %550 = vector.extract_strided_slice %27 {offsets = [0, 6, 0], sizes = [2, 1, 512], strides = [1, 1, 1]} : vector<2x8x512xf32> to vector<2x1x512xf32>
    %551 = vector.shape_cast %550 : vector<2x1x512xf32> to vector<2x512xf32>
    %552 = arith.truncf %527 : vector<2x128xf32> to vector<2x128xbf16>
    %cst_103 = arith.constant dense<0.000000e+00> : vector<2x512xf32>
    %553 = tpu.matmul %552, %29, %cst_103 {dimension_numbers = #tpu.dot_dimension_numbers<[1], [0], [0], [1], [0, 0, 1, 1], [], []>} : vector<2x128xbf16>, vector<128x512xbf16>, vector<2x512xf32> -> vector<2x512xf32>
    %554 = arith.addf %551, %553 : vector<2x512xf32>
    %555 = vector.extract_strided_slice %554 {offsets = [0, 0], sizes = [2, 128], strides = [1, 1]} : vector<2x512xf32> to vector<2x128xf32>
    %556 = arith.negf %555 : vector<2x128xf32>
    %557 = math.exp %556 : vector<2x128xf32>
    %cst_104 = arith.constant 1.000000e+00 : f32
    %558 = vector.broadcast %cst_104 : f32 to vector<2x128xf32>
    %559 = arith.addf %558, %557 : vector<2x128xf32>
    %560 = arith.divf %558, %559 : vector<2x128xf32>
    %561 = vector.extract_strided_slice %554 {offsets = [0, 128], sizes = [2, 128], strides = [1, 1]} : vector<2x512xf32> to vector<2x128xf32>
    %562 = arith.negf %561 : vector<2x128xf32>
    %563 = math.exp %562 : vector<2x128xf32>
    %cst_105 = arith.constant 1.000000e+00 : f32
    %564 = vector.broadcast %cst_105 : f32 to vector<2x128xf32>
    %565 = arith.addf %564, %563 : vector<2x128xf32>
    %566 = arith.divf %564, %565 : vector<2x128xf32>
    %567 = vector.extract_strided_slice %554 {offsets = [0, 256], sizes = [2, 128], strides = [1, 1]} : vector<2x512xf32> to vector<2x128xf32>
    %568 = math.tanh %567 : vector<2x128xf32>
    %569 = vector.extract_strided_slice %554 {offsets = [0, 384], sizes = [2, 128], strides = [1, 1]} : vector<2x512xf32> to vector<2x128xf32>
    %570 = arith.negf %569 : vector<2x128xf32>
    %571 = math.exp %570 : vector<2x128xf32>
    %cst_106 = arith.constant 1.000000e+00 : f32
    %572 = vector.broadcast %cst_106 : f32 to vector<2x128xf32>
    %573 = arith.addf %572, %571 : vector<2x128xf32>
    %574 = arith.divf %572, %573 : vector<2x128xf32>
    %575 = arith.mulf %566, %530 : vector<2x128xf32>
    %576 = arith.mulf %560, %568 : vector<2x128xf32>
    %577 = arith.addf %575, %576 : vector<2x128xf32>
    %578 = math.tanh %577 : vector<2x128xf32>
    %579 = arith.mulf %574, %578 : vector<2x128xf32>
    %580 = tpu.concatenate %579, %533 in 1 : vector<2x128xf32>, vector<2x128xf32> -> vector<2x256xf32>
    %581 = arith.truncf %580 : vector<2x256xf32> to vector<2x256xbf16>
    %cst_107 = arith.constant dense<0.000000e+00> : vector<2x512xf32>
    %582 = tpu.matmul %581, %31, %cst_107 {dimension_numbers = #tpu.dot_dimension_numbers<[1], [0], [0], [1], [0, 0, 1, 1], [], []>} : vector<2x256xbf16>, vector<256x512xbf16>, vector<2x512xf32> -> vector<2x512xf32>
    %583 = vector.broadcast %32 : vector<1x512xf32> to vector<2x512xf32>
    %584 = arith.addf %582, %583 : vector<2x512xf32>
    %585 = vector.extract_strided_slice %584 {offsets = [0, 0], sizes = [2, 128], strides = [1, 1]} : vector<2x512xf32> to vector<2x128xf32>
    %586 = arith.negf %585 : vector<2x128xf32>
    %587 = math.exp %586 : vector<2x128xf32>
    %cst_108 = arith.constant 1.000000e+00 : f32
    %588 = vector.broadcast %cst_108 : f32 to vector<2x128xf32>
    %589 = arith.addf %588, %587 : vector<2x128xf32>
    %590 = arith.divf %588, %589 : vector<2x128xf32>
    %591 = vector.extract_strided_slice %584 {offsets = [0, 128], sizes = [2, 128], strides = [1, 1]} : vector<2x512xf32> to vector<2x128xf32>
    %592 = arith.negf %591 : vector<2x128xf32>
    %593 = math.exp %592 : vector<2x128xf32>
    %cst_109 = arith.constant 1.000000e+00 : f32
    %594 = vector.broadcast %cst_109 : f32 to vector<2x128xf32>
    %595 = arith.addf %594, %593 : vector<2x128xf32>
    %596 = arith.divf %594, %595 : vector<2x128xf32>
    %597 = vector.extract_strided_slice %584 {offsets = [0, 256], sizes = [2, 128], strides = [1, 1]} : vector<2x512xf32> to vector<2x128xf32>
    %598 = math.tanh %597 : vector<2x128xf32>
    %599 = vector.extract_strided_slice %584 {offsets = [0, 384], sizes = [2, 128], strides = [1, 1]} : vector<2x512xf32> to vector<2x128xf32>
    %600 = arith.negf %599 : vector<2x128xf32>
    %601 = math.exp %600 : vector<2x128xf32>
    %cst_110 = arith.constant 1.000000e+00 : f32
    %602 = vector.broadcast %cst_110 : f32 to vector<2x128xf32>
    %603 = arith.addf %602, %601 : vector<2x128xf32>
    %604 = arith.divf %602, %603 : vector<2x128xf32>
    %605 = arith.mulf %596, %536 : vector<2x128xf32>
    %606 = arith.mulf %590, %598 : vector<2x128xf32>
    %607 = arith.addf %605, %606 : vector<2x128xf32>
    %608 = math.tanh %607 : vector<2x128xf32>
    %609 = arith.mulf %604, %608 : vector<2x128xf32>
    %610 = vector.shape_cast %549 : vector<2x1xi1> to vector<2x1xi1>
    %611 = vector.broadcast %610 : vector<2x1xi1> to vector<2x128xi1>
    %612 = arith.select %611, %579, %527 : vector<2x128xi1>, vector<2x128xf32>
    %613 = vector.shape_cast %549 : vector<2x1xi1> to vector<2x1xi1>
    %614 = vector.broadcast %613 : vector<2x1xi1> to vector<2x128xi1>
    %615 = arith.select %614, %577, %530 : vector<2x128xi1>, vector<2x128xf32>
    %616 = vector.shape_cast %549 : vector<2x1xi1> to vector<2x1xi1>
    %617 = vector.broadcast %616 : vector<2x1xi1> to vector<2x128xi1>
    %618 = arith.select %617, %609, %533 : vector<2x128xi1>, vector<2x128xf32>
    %619 = vector.shape_cast %549 : vector<2x1xi1> to vector<2x1xi1>
    %620 = vector.broadcast %619 : vector<2x1xi1> to vector<2x128xi1>
    %621 = arith.select %620, %607, %536 : vector<2x128xi1>, vector<2x128xf32>
    %cst_111 = arith.constant 0.000000e+00 : f32
    %622 = vector.shape_cast %549 : vector<2x1xi1> to vector<2x1xi1>
    %623 = vector.broadcast %622 : vector<2x1xi1> to vector<2x128xi1>
    %624 = vector.broadcast %cst_111 : f32 to vector<2x128xf32>
    %625 = arith.select %623, %609, %624 : vector<2x128xi1>, vector<2x128xf32>
    %626 = arith.truncf %625 : vector<2x128xf32> to vector<2x128xbf16>
    %cst_112 = arith.constant dense<0.000000e+00> : vector<2x4xf32>
    %627 = tpu.matmul %626, %34, %cst_112 {dimension_numbers = #tpu.dot_dimension_numbers<[1], [0], [0], [1], [0, 0, 1, 1], [], []>} : vector<2x128xbf16>, vector<128x4xbf16>, vector<2x4xf32> -> vector<2x4xf32>
    %628 = vector.broadcast %35 : vector<1x4xf32> to vector<2x4xf32>
    %629 = arith.addf %627, %628 : vector<2x4xf32>
    %c0_113 = arith.constant 0 : index
    %c6 = arith.constant 6 : index
    %c0_114 = arith.constant 0 : index
    %630 = vector.load %arg13[%c0_113, %c6, %c0_114] : memref<2x8x4xf32, #tpu.memory_space<vmem>>, vector<2x1x4xf32>
    %631 = vector.shape_cast %630 : vector<2x1x4xf32> to vector<2x4xf32>
    %632 = vector.shape_cast %629 : vector<2x4xf32> to vector<2x1x4xf32>
    tpu.vector_store %arg13[%c0_113, %c6, %c0_114], %632 {strides = array<i32>} : memref<2x8x4xf32, #tpu.memory_space<vmem>>, vector<2x1x4xf32>,
    %c7_i32 = arith.constant 7 : i32
    %633 = vector.broadcast %c7_i32 : i32 to vector<2x1xi32>
    %634 = arith.cmpi sgt, %36, %633 : vector<2x1xi32>
    %635 = vector.extract_strided_slice %27 {offsets = [0, 7, 0], sizes = [2, 1, 512], strides = [1, 1, 1]} : vector<2x8x512xf32> to vector<2x1x512xf32>
    %636 = vector.shape_cast %635 : vector<2x1x512xf32> to vector<2x512xf32>
    %637 = arith.truncf %612 : vector<2x128xf32> to vector<2x128xbf16>
    %cst_115 = arith.constant dense<0.000000e+00> : vector<2x512xf32>
    %638 = tpu.matmul %637, %29, %cst_115 {dimension_numbers = #tpu.dot_dimension_numbers<[1], [0], [0], [1], [0, 0, 1, 1], [], []>} : vector<2x128xbf16>, vector<128x512xbf16>, vector<2x512xf32> -> vector<2x512xf32>
    %639 = arith.addf %636, %638 : vector<2x512xf32>
    %640 = vector.extract_strided_slice %639 {offsets = [0, 0], sizes = [2, 128], strides = [1, 1]} : vector<2x512xf32> to vector<2x128xf32>
    %641 = arith.negf %640 : vector<2x128xf32>
    %642 = math.exp %641 : vector<2x128xf32>
    %cst_116 = arith.constant 1.000000e+00 : f32
    %643 = vector.broadcast %cst_116 : f32 to vector<2x128xf32>
    %644 = arith.addf %643, %642 : vector<2x128xf32>
    %645 = arith.divf %643, %644 : vector<2x128xf32>
    %646 = vector.extract_strided_slice %639 {offsets = [0, 128], sizes = [2, 128], strides = [1, 1]} : vector<2x512xf32> to vector<2x128xf32>
    %647 = arith.negf %646 : vector<2x128xf32>
    %648 = math.exp %647 : vector<2x128xf32>
    %cst_117 = arith.constant 1.000000e+00 : f32
    %649 = vector.broadcast %cst_117 : f32 to vector<2x128xf32>
    %650 = arith.addf %649, %648 : vector<2x128xf32>
    %651 = arith.divf %649, %650 : vector<2x128xf32>
    %652 = vector.extract_strided_slice %639 {offsets = [0, 256], sizes = [2, 128], strides = [1, 1]} : vector<2x512xf32> to vector<2x128xf32>
    %653 = math.tanh %652 : vector<2x128xf32>
    %654 = vector.extract_strided_slice %639 {offsets = [0, 384], sizes = [2, 128], strides = [1, 1]} : vector<2x512xf32> to vector<2x128xf32>
    %655 = arith.negf %654 : vector<2x128xf32>
    %656 = math.exp %655 : vector<2x128xf32>
    %cst_118 = arith.constant 1.000000e+00 : f32
    %657 = vector.broadcast %cst_118 : f32 to vector<2x128xf32>
    %658 = arith.addf %657, %656 : vector<2x128xf32>
    %659 = arith.divf %657, %658 : vector<2x128xf32>
    %660 = arith.mulf %651, %615 : vector<2x128xf32>
    %661 = arith.mulf %645, %653 : vector<2x128xf32>
    %662 = arith.addf %660, %661 : vector<2x128xf32>
    %663 = math.tanh %662 : vector<2x128xf32>
    %664 = arith.mulf %659, %663 : vector<2x128xf32>
    %665 = tpu.concatenate %664, %618 in 1 : vector<2x128xf32>, vector<2x128xf32> -> vector<2x256xf32>
    %666 = arith.truncf %665 : vector<2x256xf32> to vector<2x256xbf16>
    %cst_119 = arith.constant dense<0.000000e+00> : vector<2x512xf32>
    %667 = tpu.matmul %666, %31, %cst_119 {dimension_numbers = #tpu.dot_dimension_numbers<[1], [0], [0], [1], [0, 0, 1, 1], [], []>} : vector<2x256xbf16>, vector<256x512xbf16>, vector<2x512xf32> -> vector<2x512xf32>
    %668 = vector.broadcast %32 : vector<1x512xf32> to vector<2x512xf32>
    %669 = arith.addf %667, %668 : vector<2x512xf32>
    %670 = vector.extract_strided_slice %669 {offsets = [0, 0], sizes = [2, 128], strides = [1, 1]} : vector<2x512xf32> to vector<2x128xf32>
    %671 = arith.negf %670 : vector<2x128xf32>
    %672 = math.exp %671 : vector<2x128xf32>
    %cst_120 = arith.constant 1.000000e+00 : f32
    %673 = vector.broadcast %cst_120 : f32 to vector<2x128xf32>
    %674 = arith.addf %673, %672 : vector<2x128xf32>
    %675 = arith.divf %673, %674 : vector<2x128xf32>
    %676 = vector.extract_strided_slice %669 {offsets = [0, 128], sizes = [2, 128], strides = [1, 1]} : vector<2x512xf32> to vector<2x128xf32>
    %677 = arith.negf %676 : vector<2x128xf32>
    %678 = math.exp %677 : vector<2x128xf32>
    %cst_121 = arith.constant 1.000000e+00 : f32
    %679 = vector.broadcast %cst_121 : f32 to vector<2x128xf32>
    %680 = arith.addf %679, %678 : vector<2x128xf32>
    %681 = arith.divf %679, %680 : vector<2x128xf32>
    %682 = vector.extract_strided_slice %669 {offsets = [0, 256], sizes = [2, 128], strides = [1, 1]} : vector<2x512xf32> to vector<2x128xf32>
    %683 = math.tanh %682 : vector<2x128xf32>
    %684 = vector.extract_strided_slice %669 {offsets = [0, 384], sizes = [2, 128], strides = [1, 1]} : vector<2x512xf32> to vector<2x128xf32>
    %685 = arith.negf %684 : vector<2x128xf32>
    %686 = math.exp %685 : vector<2x128xf32>
    %cst_122 = arith.constant 1.000000e+00 : f32
    %687 = vector.broadcast %cst_122 : f32 to vector<2x128xf32>
    %688 = arith.addf %687, %686 : vector<2x128xf32>
    %689 = arith.divf %687, %688 : vector<2x128xf32>
    %690 = arith.mulf %681, %621 : vector<2x128xf32>
    %691 = arith.mulf %675, %683 : vector<2x128xf32>
    %692 = arith.addf %690, %691 : vector<2x128xf32>
    %693 = math.tanh %692 : vector<2x128xf32>
    %694 = arith.mulf %689, %693 : vector<2x128xf32>
    %695 = vector.shape_cast %634 : vector<2x1xi1> to vector<2x1xi1>
    %696 = vector.broadcast %695 : vector<2x1xi1> to vector<2x128xi1>
    %697 = arith.select %696, %664, %612 : vector<2x128xi1>, vector<2x128xf32>
    %698 = vector.shape_cast %634 : vector<2x1xi1> to vector<2x1xi1>
    %699 = vector.broadcast %698 : vector<2x1xi1> to vector<2x128xi1>
    %700 = arith.select %699, %662, %615 : vector<2x128xi1>, vector<2x128xf32>
    %701 = vector.shape_cast %634 : vector<2x1xi1> to vector<2x1xi1>
    %702 = vector.broadcast %701 : vector<2x1xi1> to vector<2x128xi1>
    %703 = arith.select %702, %694, %618 : vector<2x128xi1>, vector<2x128xf32>
    %704 = vector.shape_cast %634 : vector<2x1xi1> to vector<2x1xi1>
    %705 = vector.broadcast %704 : vector<2x1xi1> to vector<2x128xi1>
    %706 = arith.select %705, %692, %621 : vector<2x128xi1>, vector<2x128xf32>
    %cst_123 = arith.constant 0.000000e+00 : f32
    %707 = vector.shape_cast %634 : vector<2x1xi1> to vector<2x1xi1>
    %708 = vector.broadcast %707 : vector<2x1xi1> to vector<2x128xi1>
    %709 = vector.broadcast %cst_123 : f32 to vector<2x128xf32>
    %710 = arith.select %708, %694, %709 : vector<2x128xi1>, vector<2x128xf32>
    %711 = arith.truncf %710 : vector<2x128xf32> to vector<2x128xbf16>
    %cst_124 = arith.constant dense<0.000000e+00> : vector<2x4xf32>
    %712 = tpu.matmul %711, %34, %cst_124 {dimension_numbers = #tpu.dot_dimension_numbers<[1], [0], [0], [1], [0, 0, 1, 1], [], []>} : vector<2x128xbf16>, vector<128x4xbf16>, vector<2x4xf32> -> vector<2x4xf32>
    %713 = vector.broadcast %35 : vector<1x4xf32> to vector<2x4xf32>
    %714 = arith.addf %712, %713 : vector<2x4xf32>
    %c0_125 = arith.constant 0 : index
    %c7 = arith.constant 7 : index
    %c0_126 = arith.constant 0 : index
    %715 = vector.load %arg13[%c0_125, %c7, %c0_126] : memref<2x8x4xf32, #tpu.memory_space<vmem>>, vector<2x1x4xf32>
    %716 = vector.shape_cast %715 : vector<2x1x4xf32> to vector<2x4xf32>
    %717 = vector.shape_cast %714 : vector<2x4xf32> to vector<2x1x4xf32>
    tpu.vector_store %arg13[%c0_125, %c7, %c0_126], %717 {strides = array<i32>} : memref<2x8x4xf32, #tpu.memory_space<vmem>>, vector<2x1x4xf32>,
    %c0_127 = arith.constant 0 : index
    %c0_128 = arith.constant 0 : index
    %c0_129 = arith.constant 0 : index
    %718 = vector.load %arg14[%c0_127, %c0_128, %c0_129] : memref<2x2x128xf32, #tpu.memory_space<vmem>>, vector<1x2x128xf32>
    %719 = vector.shape_cast %718 : vector<1x2x128xf32> to vector<2x128xf32>
    %720 = vector.shape_cast %697 : vector<2x128xf32> to vector<1x2x128xf32>
    tpu.vector_store %arg14[%c0_127, %c0_128, %c0_129], %720 {strides = array<i32>} : memref<2x2x128xf32, #tpu.memory_space<vmem>>, vector<1x2x128xf32>,
    %c1_130 = arith.constant 1 : index
    %c0_131 = arith.constant 0 : index
    %c0_132 = arith.constant 0 : index
    %721 = vector.load %arg14[%c1_130, %c0_131, %c0_132] : memref<2x2x128xf32, #tpu.memory_space<vmem>>, vector<1x2x128xf32>
    %722 = vector.shape_cast %721 : vector<1x2x128xf32> to vector<2x128xf32>
    %723 = vector.shape_cast %703 : vector<2x128xf32> to vector<1x2x128xf32>
    tpu.vector_store %arg14[%c1_130, %c0_131, %c0_132], %723 {strides = array<i32>} : memref<2x2x128xf32, #tpu.memory_space<vmem>>, vector<1x2x128xf32>,
    %c0_133 = arith.constant 0 : index
    %c0_134 = arith.constant 0 : index
    %c0_135 = arith.constant 0 : index
    %724 = vector.load %arg15[%c0_133, %c0_134, %c0_135] : memref<2x2x128xf32, #tpu.memory_space<vmem>>, vector<1x2x128xf32>
    %725 = vector.shape_cast %724 : vector<1x2x128xf32> to vector<2x128xf32>
    %726 = vector.shape_cast %700 : vector<2x128xf32> to vector<1x2x128xf32>
    tpu.vector_store %arg15[%c0_133, %c0_134, %c0_135], %726 {strides = array<i32>} : memref<2x2x128xf32, #tpu.memory_space<vmem>>, vector<1x2x128xf32>,
    %c1_136 = arith.constant 1 : index
    %c0_137 = arith.constant 0 : index
    %c0_138 = arith.constant 0 : index
    %727 = vector.load %arg15[%c1_136, %c0_137, %c0_138] : memref<2x2x128xf32, #tpu.memory_space<vmem>>, vector<1x2x128xf32>
    %728 = vector.shape_cast %727 : vector<1x2x128xf32> to vector<2x128xf32>
    %729 = vector.shape_cast %706 : vector<2x128xf32> to vector<1x2x128xf32>
    tpu.vector_store %arg15[%c1_136, %c0_137, %c0_138], %729 {strides = array<i32>} : memref<2x2x128xf32, #tpu.memory_space<vmem>>, vector<1x2x128xf32>,
    return
  }
}

</mosaic_0001>

<llo_original>
// kernel: navrnn_forward.1
$region0: #{navrnn_forward.1}
  #allocation0 [shape = 'u32[]', space=smem, size = 0x4, offset = 0x4, fixed_abs, tag = 'smem constant byte address 0x4 - core index']
  #allocation1 [shape = 'u32[144,128]{1,0:T(1,128)}', space=vmem, size = 0x12000, scoped, tag = 'internal scratch']
  %s0 = inlined_call_operand.vmem [shape: f32[16,128], index: 0, kind: input, shape index: {}]
  %s1 = inlined_call_operand.vmem [shape: f32[2,128], index: 1, kind: input, shape index: {}]
  %s2 = inlined_call_operand.vmem [shape: s32[16,1], index: 2, kind: input, shape index: {}]
  %s3 = inlined_call_operand.vmem [shape: s32[2,1], index: 3, kind: input, shape index: {}]
  %s4 = inlined_call_operand.vmem [shape: f32[128,512], index: 4, kind: input, shape index: {}]
  %s5 = inlined_call_operand.vmem [shape: f32[128,512], index: 5, kind: input, shape index: {}]
  %s6 = inlined_call_operand.vmem [shape: f32[4,512], index: 6, kind: input, shape index: {}]
  %s7 = inlined_call_operand.vmem [shape: f32[1,512], index: 7, kind: input, shape index: {}]
  %s8 = inlined_call_operand.vmem [shape: f32[128,512], index: 8, kind: input, shape index: {}]
  %s9 = inlined_call_operand.vmem [shape: f32[256,512], index: 9, kind: input, shape index: {}]
  %s10 = inlined_call_operand.vmem [shape: f32[1,512], index: 10, kind: input, shape index: {}]
  %s11 = inlined_call_operand.vmem [shape: f32[128,4], index: 11, kind: input, shape index: {}]
  %s12 = inlined_call_operand.vmem [shape: f32[1,4], index: 12, kind: input, shape index: {}]
  %s13 = inlined_call_operand.vmem [shape: f32[2,8,4], index: 13, kind: output, shape index: {0}]
  %s14 = inlined_call_operand.hbm [shape: f32[2,2,128], index: 14, kind: output, shape index: {1}]
  %s15 = inlined_call_operand.hbm [shape: f32[2,2,128], index: 15, kind: output, shape index: {2}]
  %16 = xla_tuple %s13, %s14, %s15
  %s17 = sld [smem:[#allocation0]]
  $region78: #{navrnn_forward.1} parent=0
    _
  %s19 = ssub.s32 1, %s17
  %s20 = scalar_select 0, %s19, %s17
  $region1: #{navrnn_forward.1} parent=0
    #allocation2 [shape = 'u8[2048]{0}', space=vmem, size = 0x800, scoped, tag = 'output window, operand 1, single buffered']
    #allocation3 [shape = 's32[1]{0}', space=sflag, size = 0x4, scoped, tag = 'scoped memory for navrnn_forward.1']
    #allocation4 [shape = 'u8[2048]{0}', space=vmem, size = 0x800, scoped, tag = 'output window, operand 2, single buffered']
    #allocation5 [shape = 's32[1]{0}', space=sflag, size = 0x4, scoped, tag = 'scoped memory for navrnn_forward.1']
    %21 = vsyncpa [#allocation3], 0
    %22 = vsyncpa [#allocation5], 0
    // Predicated region
    $region2: #{navrnn_forward.1} parent=1 // pred_check
      _
    $region3: #{navrnn_forward.1} parent=1 // pred_check_branch
      %24 = sbr.rel (0) target = $region5
    $region4: #{navrnn_forward.1} parent=1 // pred_region
      _
    $region5: #{navrnn_forward.1} parent=1 // pred_fallthru
      _
    // Predicated region
    $region6: #{navrnn_forward.1} parent=1 // pred_check
      _
    $region7: #{navrnn_forward.1} parent=1 // pred_check_branch
      %26 = sbr.rel (0) target = $region9
    $region8: #{navrnn_forward.1} parent=1 // pred_region
      _
    $region9: #{navrnn_forward.1} parent=1 // pred_fallthru
      _
    // Predicated region
    $region10: #{navrnn_forward.1} parent=1 // pred_check
      _
    $region11: #{navrnn_forward.1} parent=1 // pred_check_branch
      %28 = sbr.rel (0) target = $region13
    $region12: #{navrnn_forward.1} parent=1 // pred_region
      _
    $region13: #{navrnn_forward.1} parent=1 // pred_fallthru
      _
    // Predicated region
    $region14: #{navrnn_forward.1} parent=1 // pred_check
      _
    $region15: #{navrnn_forward.1} parent=1 // pred_check_branch
      %30 = sbr.rel (0) target = $region17
    $region16: #{navrnn_forward.1} parent=1 // pred_region
      _
    $region17: #{navrnn_forward.1} parent=1 // pred_fallthru
      _
    // Predicated region
    $region18: #{navrnn_forward.1} parent=1 // pred_check
      _
    $region19: #{navrnn_forward.1} parent=1 // pred_check_branch
      %32 = sbr.rel (0) target = $region21
    $region20: #{navrnn_forward.1} parent=1 // pred_region
      _
    $region21: #{navrnn_forward.1} parent=1 // pred_fallthru
      _
    // Predicated region
    $region22: #{navrnn_forward.1} parent=1 // pred_check
      _
    $region23: #{navrnn_forward.1} parent=1 // pred_check_branch
      %34 = sbr.rel (0) target = $region25
    $region24: #{navrnn_forward.1} parent=1 // pred_region
      _
    $region25: #{navrnn_forward.1} parent=1 // pred_fallthru
      _
    // Predicated region
    $region26: #{navrnn_forward.1} parent=1 // pred_check
      _
    $region27: #{navrnn_forward.1} parent=1 // pred_check_branch
      %36 = sbr.rel (0) target = $region29
    $region28: #{navrnn_forward.1} parent=1 // pred_region
      _
    $region29: #{navrnn_forward.1} parent=1 // pred_fallthru
      _
    // Predicated region
    $region30: #{navrnn_forward.1} parent=1 // pred_check
      _
    $region31: #{navrnn_forward.1} parent=1 // pred_check_branch
      %38 = sbr.rel (0) target = $region33
    $region32: #{navrnn_forward.1} parent=1 // pred_region
      _
    $region33: #{navrnn_forward.1} parent=1 // pred_fallthru
      _
    // Predicated region
    $region34: #{navrnn_forward.1} parent=1 // pred_check
      _
    $region35: #{navrnn_forward.1} parent=1 // pred_check_branch
      %40 = sbr.rel (0) target = $region37
    $region36: #{navrnn_forward.1} parent=1 // pred_region
      _
    $region37: #{navrnn_forward.1} parent=1 // pred_fallthru
      _
    // Predicated region
    $region38: #{navrnn_forward.1} parent=1 // pred_check
      _
    $region39: #{navrnn_forward.1} parent=1 // pred_check_branch
      %42 = sbr.rel (0) target = $region41
    $region40: #{navrnn_forward.1} parent=1 // pred_region
      _
    $region41: #{navrnn_forward.1} parent=1 // pred_fallthru
      _
    // Predicated region
    $region42: #{navrnn_forward.1} parent=1 // pred_check
      _
    $region43: #{navrnn_forward.1} parent=1 // pred_check_branch
      %44 = sbr.rel (0) target = $region45
    $region44: #{navrnn_forward.1} parent=1 // pred_region
      _
    $region45: #{navrnn_forward.1} parent=1 // pred_fallthru
      _
    // Predicated region
    $region46: #{navrnn_forward.1} parent=1 // pred_check
      _
    $region47: #{navrnn_forward.1} parent=1 // pred_check_branch
      %46 = sbr.rel (0) target = $region49
    $region48: #{navrnn_forward.1} parent=1 // pred_region
      _
    $region49: #{navrnn_forward.1} parent=1 // pred_fallthru
      _
    // Predicated region
    $region50: #{navrnn_forward.1} parent=1 // pred_check
      _
    $region51: #{navrnn_forward.1} parent=1 // pred_check_branch
      %48 = sbr.rel (0) target = $region53
    $region52: #{navrnn_forward.1} parent=1 // pred_region
      _
    $region53: #{navrnn_forward.1} parent=1 // pred_fallthru
      _
    %v50 = vld [vmem:[%s0] sm:$0xff]
    %v51 = vld [vmem:[%s0 + $0x8] sm:$0xff]
    %v52 = vpack.c.bf16 %v51, %v50
    %v53 = vld [vmem:[%s4] sm:$0xff]
    %v54 = vld [vmem:[%s4 + $0x8] sm:$0xff]
    %v55 = vld [vmem:[%s4 + $0x10] sm:$0xff]
    %v56 = vld [vmem:[%s4 + $0x18] sm:$0xff]
    %v57 = vld [vmem:[%s4 + $0x20] sm:$0xff]
    %v58 = vld [vmem:[%s4 + $0x28] sm:$0xff]
    %v59 = vld [vmem:[%s4 + $0x30] sm:$0xff]
    %v60 = vld [vmem:[%s4 + $0x38] sm:$0xff]
    %v61 = vld [vmem:[%s4 + $0x40] sm:$0xff]
    %v62 = vld [vmem:[%s4 + $0x48] sm:$0xff]
    %v63 = vld [vmem:[%s4 + $0x50] sm:$0xff]
    %v64 = vld [vmem:[%s4 + $0x58] sm:$0xff]
    %v65 = vld [vmem:[%s4 + $0x60] sm:$0xff]
    %v66 = vld [vmem:[%s4 + $0x68] sm:$0xff]
    %v67 = vld [vmem:[%s4 + $0x70] sm:$0xff]
    %v68 = vld [vmem:[%s4 + $0x78] sm:$0xff]
    %v69 = vld [vmem:[%s4 + $0x80] sm:$0xff]
    %v70 = vld [vmem:[%s4 + $0x88] sm:$0xff]
    %v71 = vld [vmem:[%s4 + $0x90] sm:$0xff]
    %v72 = vld [vmem:[%s4 + $0x98] sm:$0xff]
    %v73 = vld [vmem:[%s4 + $0xa0] sm:$0xff]
    %v74 = vld [vmem:[%s4 + $0xa8] sm:$0xff]
    %v75 = vld [vmem:[%s4 + $0xb0] sm:$0xff]
    %v76 = vld [vmem:[%s4 + $0xb8] sm:$0xff]
    %v77 = vld [vmem:[%s4 + $0xc0] sm:$0xff]
    %v78 = vld [vmem:[%s4 + $0xc8] sm:$0xff]
    %v79 = vld [vmem:[%s4 + $0xd0] sm:$0xff]
    %v80 = vld [vmem:[%s4 + $0xd8] sm:$0xff]
    %v81 = vld [vmem:[%s4 + $0xe0] sm:$0xff]
    %v82 = vld [vmem:[%s4 + $0xe8] sm:$0xff]
    %v83 = vld [vmem:[%s4 + $0xf0] sm:$0xff]
    %v84 = vld [vmem:[%s4 + $0xf8] sm:$0xff]
    %v85 = vld [vmem:[%s4 + $0x100] sm:$0xff]
    %v86 = vld [vmem:[%s4 + $0x108] sm:$0xff]
    %v87 = vld [vmem:[%s4 + $0x110] sm:$0xff]
    %v88 = vld [vmem:[%s4 + $0x118] sm:$0xff]
    %v89 = vld [vmem:[%s4 + $0x120] sm:$0xff]
    %v90 = vld [vmem:[%s4 + $0x128] sm:$0xff]
    %v91 = vld [vmem:[%s4 + $0x130] sm:$0xff]
    %v92 = vld [vmem:[%s4 + $0x138] sm:$0xff]
    %v93 = vld [vmem:[%s4 + $0x140] sm:$0xff]
    %v94 = vld [vmem:[%s4 + $0x148] sm:$0xff]
    %v95 = vld [vmem:[%s4 + $0x150] sm:$0xff]
    %v96 = vld [vmem:[%s4 + $0x158] sm:$0xff]
    %v97 = vld [vmem:[%s4 + $0x160] sm:$0xff]
    %v98 = vld [vmem:[%s4 + $0x168] sm:$0xff]
    %v99 = vld [vmem:[%s4 + $0x170] sm:$0xff]
    %v100 = vld [vmem:[%s4 + $0x178] sm:$0xff]
    %v101 = vld [vmem:[%s4 + $0x180] sm:$0xff]
    %v102 = vld [vmem:[%s4 + $0x188] sm:$0xff]
    %v103 = vld [vmem:[%s4 + $0x190] sm:$0xff]
    %v104 = vld [vmem:[%s4 + $0x198] sm:$0xff]
    %v105 = vld [vmem:[%s4 + $0x1a0] sm:$0xff]
    %v106 = vld [vmem:[%s4 + $0x1a8] sm:$0xff]
    %v107 = vld [vmem:[%s4 + $0x1b0] sm:$0xff]
    %v108 = vld [vmem:[%s4 + $0x1b8] sm:$0xff]
    %v109 = vld [vmem:[%s4 + $0x1c0] sm:$0xff]
    %v110 = vld [vmem:[%s4 + $0x1c8] sm:$0xff]
    %v111 = vld [vmem:[%s4 + $0x1d0] sm:$0xff]
    %v112 = vld [vmem:[%s4 + $0x1d8] sm:$0xff]
    %v113 = vld [vmem:[%s4 + $0x1e0] sm:$0xff]
    %v114 = vld [vmem:[%s4 + $0x1e8] sm:$0xff]
    %v115 = vld [vmem:[%s4 + $0x1f0] sm:$0xff]
    %v116 = vld [vmem:[%s4 + $0x1f8] sm:$0xff]
    %v117 = vpack.c.bf16 %v57, %v53
    %v118 = vpack.c.bf16 %v58, %v54
    %v119 = vpack.c.bf16 %v59, %v55
    %v120 = vpack.c.bf16 %v60, %v56
    %v121 = vpack.c.bf16 %v65, %v61
    %v122 = vpack.c.bf16 %v66, %v62
    %v123 = vpack.c.bf16 %v67, %v63
    %v124 = vpack.c.bf16 %v68, %v64
    %v125 = vpack.c.bf16 %v73, %v69
    %v126 = vpack.c.bf16 %v74, %v70
    %v127 = vpack.c.bf16 %v75, %v71
    %v128 = vpack.c.bf16 %v76, %v72
    %v129 = vpack.c.bf16 %v81, %v77
    %v130 = vpack.c.bf16 %v82, %v78
    %v131 = vpack.c.bf16 %v83, %v79
    %v132 = vpack.c.bf16 %v84, %v80
    %v133 = vpack.c.bf16 %v89, %v85
    %v134 = vpack.c.bf16 %v90, %v86
    %v135 = vpack.c.bf16 %v91, %v87
    %v136 = vpack.c.bf16 %v92, %v88
    %v137 = vpack.c.bf16 %v97, %v93
    %v138 = vpack.c.bf16 %v98, %v94
    %v139 = vpack.c.bf16 %v99, %v95
    %v140 = vpack.c.bf16 %v100, %v96
    %v141 = vpack.c.bf16 %v105, %v101
    %v142 = vpack.c.bf16 %v106, %v102
    %v143 = vpack.c.bf16 %v107, %v103
    %v144 = vpack.c.bf16 %v108, %v104
    %v145 = vpack.c.bf16 %v113, %v109
    %v146 = vpack.c.bf16 %v114, %v110
    %v147 = vpack.c.bf16 %v115, %v111
    %v148 = vpack.c.bf16 %v116, %v112
    %v149 = vld [vmem:[%s2] sm:$0xff]
    %v150 = vld [vmem:[%s2 + $0x8] sm:$0xff]
    %v151 = vlaneseq
    %v152 = vand.u32 %v151, 127
    %153 = vset.pattern.permute.xlu0 0
    %154 = vperm.xlu0 %153, %v149
    %v155 = vpop.permute.xlu0 %154
    %156 = vset.pattern.permute.xlu0 0
    %157 = vperm.xlu0 %156, %v150
    %v158 = vpop.permute.xlu0 %157
    %vm159 = vcmp.eq.s32.totalorder %v155, %v152
    %vm160 = vcmp.eq.s32.totalorder %v158, %v152
    %v161 = vsel %vm159, 1.0, 0.0
    %v162 = vsel %vm160, 1.0, 0.0
    %v163 = vld [vmem:[%s6] sm:$0xff]
    %v164 = vld [vmem:[%s6 + $0x8] sm:$0xff]
    %v167 = vcombine.high %v163, %v163
    %v168 = vcombine.high %v164, %v164
    %vm169 = vcmask 31744
    %v171 = vsel %vm169, %v161, 0
    %v174 = vsel %vm169, %v162, 0
    %vm176 = vcmask 1043456
    %v177 = vsel %vm176, %v163, 0
    %v179 = vsel %vm176, %v167, 0
    %v181 = vsel %vm176, %v164, 0
    %v183 = vsel %vm176, %v168, 0
    %185 = vmatprep.subr.mxu0 %v179
    %186 = vmatpush1.msra.mxu0 %v177
    %187 = vmatprep.subr.mxu0 0.0
    %188 = vmatpush1.msra.mxu0 0.0
    %189 = vmatprep.subr.mxu0 0.0
    %190 = vmatpush1.msra.mxu0 0.0
    %191 = vmatprep.subr.mxu0 0.0
    %192 = vmatpush1.msra.mxu0 0.0
    %193 = vmatprep.subr.mxu0 0.0
    %194 = vmatpush1.msra.mxu0 0.0
    %195 = vmatprep.subr.mxu0 0.0
    %196 = vmatpush1.msra.mxu0 0.0
    %197 = vmatprep.subr.mxu0 0.0
    %198 = vmatpush1.msra.mxu0 0.0
    %199 = vmatprep.subr.mxu0 0.0
    %200 = vmatpush1.msra.mxu0 0.0
    %201 = vmatprep.subr.mxu0 0.0
    %202 = vmatpush1.msra.mxu0 0.0
    %203 = vmatprep.subr.mxu0 0.0
    %204 = vmatpush1.msra.mxu0 0.0
    %205 = vmatprep.subr.mxu0 0.0
    %206 = vmatpush1.msra.mxu0 0.0
    %207 = vmatprep.subr.mxu0 0.0
    %208 = vmatpush1.msra.mxu0 0.0
    %209 = vmatprep.subr.mxu0 0.0
    %210 = vmatpush1.msra.mxu0 0.0
    %211 = vmatprep.subr.mxu0 0.0
    %212 = vmatpush1.msra.mxu0 0.0
    %213 = vmatprep.subr.mxu0 0.0
    %214 = vmatpush1.msra.mxu0 0.0
    %215 = vmatprep.subr.mxu0 0.0
    %216 = vmatpush1.msra.mxu0 0.0
    %217 = vmatprep.subr.mxu0 0.0
    %218 = vmatpush1.msra.mxu0 0.0
    %219 = vmatprep.subr.mxu0 0.0
    %220 = vmatpush1.msra.mxu0 0.0
    %221 = vmatprep.subr.mxu0 0.0
    %222 = vmatpush1.msra.mxu0 0.0
    %223 = vmatprep.subr.mxu0 0.0
    %224 = vmatpush1.msra.mxu0 0.0
    %225 = vmatprep.subr.mxu0 0.0
    %226 = vmatpush1.msra.mxu0 0.0
    %227 = vmatprep.subr.mxu0 0.0
    %228 = vmatpush1.msra.mxu0 0.0
    %229 = vmatprep.subr.mxu0 0.0
    %230 = vmatpush1.msra.mxu0 0.0
    %231 = vmatprep.subr.mxu0 0.0
    %232 = vmatpush1.msra.mxu0 0.0
    %233 = vmatprep.subr.mxu0 0.0
    %234 = vmatpush1.msra.mxu0 0.0
    %235 = vmatprep.subr.mxu0 0.0
    %236 = vmatpush1.msra.mxu0 0.0
    %237 = vmatprep.subr.mxu0 0.0
    %238 = vmatpush1.msra.mxu0 0.0
    %239 = vmatprep.subr.mxu0 0.0
    %240 = vmatpush1.msra.mxu0 0.0
    %241 = vmatprep.subr.mxu0 0.0
    %242 = vmatpush1.msra.mxu0 0.0
    %243 = vmatprep.subr.mxu0 0.0
    %244 = vmatpush1.msra.mxu0 0.0
    %245 = vmatprep.subr.mxu0 0.0
    %246 = vmatpush1.msra.mxu0 0.0
    %247 = vmatprep.subr.mxu0 0.0
    %248 = vmatpush1.msra.mxu0 0.0
    %249 = vmatprep.mubr.f32.mxu0 0.0
    %250 = vmatmul.mubr.f32.gmra.mrb[0].mxu0 %v171
    %v251 = vpop.f32.mrb[0].mxu0
    %v252 = vadd.f32 0.0, %v251
    %v253 = vpop.f32.mrb[0].mxu0
    %v254 = vadd.f32 0.0, %v253
    %255 = vmatprep.mubr.f32.mxu0 0.0
    %256 = vmatmul.mubr.f32.gmra.mrb[0].mxu0 %v174
    %v257 = vpop.f32.mrb[0].mxu0
    %v258 = vadd.f32 0.0, %v257
    %v259 = vpop.f32.mrb[0].mxu0
    %v260 = vadd.f32 0.0, %v259
    %261 = vdwg.mxu0
    %262 = vmatprep.subr.mxu0 %v183
    %263 = vmatpush1.msra.mxu0 %v181
    %264 = vmatprep.subr.mxu0 0.0
    %265 = vmatpush1.msra.mxu0 0.0
    %266 = vmatprep.subr.mxu0 0.0
    %267 = vmatpush1.msra.mxu0 0.0
    %268 = vmatprep.subr.mxu0 0.0
    %269 = vmatpush1.msra.mxu0 0.0
    %270 = vmatprep.subr.mxu0 0.0
    %271 = vmatpush1.msra.mxu0 0.0
    %272 = vmatprep.subr.mxu0 0.0
    %273 = vmatpush1.msra.mxu0 0.0
    %274 = vmatprep.subr.mxu0 0.0
    %275 = vmatpush1.msra.mxu0 0.0
    %276 = vmatprep.subr.mxu0 0.0
    %277 = vmatpush1.msra.mxu0 0.0
    %278 = vmatprep.subr.mxu0 0.0
    %279 = vmatpush1.msra.mxu0 0.0
    %280 = vmatprep.subr.mxu0 0.0
    %281 = vmatpush1.msra.mxu0 0.0
    %282 = vmatprep.subr.mxu0 0.0
    %283 = vmatpush1.msra.mxu0 0.0
    %284 = vmatprep.subr.mxu0 0.0
    %285 = vmatpush1.msra.mxu0 0.0
    %286 = vmatprep.subr.mxu0 0.0
    %287 = vmatpush1.msra.mxu0 0.0
    %288 = vmatprep.subr.mxu0 0.0
    %289 = vmatpush1.msra.mxu0 0.0
    %290 = vmatprep.subr.mxu0 0.0
    %291 = vmatpush1.msra.mxu0 0.0
    %292 = vmatprep.subr.mxu0 0.0
    %293 = vmatpush1.msra.mxu0 0.0
    %294 = vmatprep.subr.mxu0 0.0
    %295 = vmatpush1.msra.mxu0 0.0
    %296 = vmatprep.subr.mxu0 0.0
    %297 = vmatpush1.msra.mxu0 0.0
    %298 = vmatprep.subr.mxu0 0.0
    %299 = vmatpush1.msra.mxu0 0.0
    %300 = vmatprep.subr.mxu0 0.0
    %301 = vmatpush1.msra.mxu0 0.0
    %302 = vmatprep.subr.mxu0 0.0
    %303 = vmatpush1.msra.mxu0 0.0
    %304 = vmatprep.subr.mxu0 0.0
    %305 = vmatpush1.msra.mxu0 0.0
    %306 = vmatprep.subr.mxu0 0.0
    %307 = vmatpush1.msra.mxu0 0.0
    %308 = vmatprep.subr.mxu0 0.0
    %309 = vmatpush1.msra.mxu0 0.0
    %310 = vmatprep.subr.mxu0 0.0
    %311 = vmatpush1.msra.mxu0 0.0
    %312 = vmatprep.subr.mxu0 0.0
    %313 = vmatpush1.msra.mxu0 0.0
    %314 = vmatprep.subr.mxu0 0.0
    %315 = vmatpush1.msra.mxu0 0.0
    %316 = vmatprep.subr.mxu0 0.0
    %317 = vmatpush1.msra.mxu0 0.0
    %318 = vmatprep.subr.mxu0 0.0
    %319 = vmatpush1.msra.mxu0 0.0
    %320 = vmatprep.subr.mxu0 0.0
    %321 = vmatpush1.msra.mxu0 0.0
    %322 = vmatprep.subr.mxu0 0.0
    %323 = vmatpush1.msra.mxu0 0.0
    %324 = vmatprep.subr.mxu0 0.0
    %325 = vmatpush1.msra.mxu0 0.0
    %326 = vmatprep.mubr.f32.mxu0 0.0
    %327 = vmatmul.mubr.f32.gmra.mrb[0].mxu0 %v171
    %v328 = vpop.f32.mrb[0].mxu0
    %v329 = vadd.f32 0.0, %v328
    %v330 = vpop.f32.mrb[0].mxu0
    %v331 = vadd.f32 0.0, %v330
    %332 = vmatprep.mubr.f32.mxu0 0.0
    %333 = vmatmul.mubr.f32.gmra.mrb[0].mxu0 %v174
    %v334 = vpop.f32.mrb[0].mxu0
    %v335 = vadd.f32 0.0, %v334
    %v336 = vpop.f32.mrb[0].mxu0
    %v337 = vadd.f32 0.0, %v336
    %338 = vdwg.mxu0
    %339 = vmatprep.subr.bf16.mxu0 %v118
    %340 = vmatpush1.bf16.msra.mxu0 %v117
    %341 = vmatprep.subr.bf16.mxu0 %v122
    %342 = vmatpush1.bf16.msra.mxu0 %v121
    %343 = vmatprep.subr.bf16.mxu0 %v126
    %344 = vmatpush1.bf16.msra.mxu0 %v125
    %345 = vmatprep.subr.bf16.mxu0 %v130
    %346 = vmatpush1.bf16.msra.mxu0 %v129
    %347 = vmatprep.subr.bf16.mxu0 %v134
    %348 = vmatpush1.bf16.msra.mxu0 %v133
    %349 = vmatprep.subr.bf16.mxu0 %v138
    %350 = vmatpush1.bf16.msra.mxu0 %v137
    %351 = vmatprep.subr.bf16.mxu0 %v142
    %352 = vmatpush1.bf16.msra.mxu0 %v141
    %353 = vmatprep.subr.bf16.mxu0 %v146
    %354 = vmatpush1.bf16.msra.mxu0 %v145
    %355 = vmatprep.subr.bf16.mxu0 0
    %356 = vmatpush1.bf16.msra.mxu0 0
    %357 = vmatprep.subr.bf16.mxu0 0
    %358 = vmatpush1.bf16.msra.mxu0 0
    %359 = vmatprep.subr.bf16.mxu0 0
    %360 = vmatpush1.bf16.msra.mxu0 0
    %361 = vmatprep.subr.bf16.mxu0 0
    %362 = vmatpush1.bf16.msra.mxu0 0
    %363 = vmatprep.subr.bf16.mxu0 0
    %364 = vmatpush1.bf16.msra.mxu0 0
    %365 = vmatprep.subr.bf16.mxu0 0
    %366 = vmatpush1.bf16.msra.mxu0 0
    %367 = vmatprep.subr.bf16.mxu0 0
    %368 = vmatpush1.bf16.msra.mxu0 0
    %369 = vmatprep.subr.bf16.mxu0 0
    %370 = vmatpush1.bf16.msra.mxu0 0
    %371 = vmatprep.mubr.bf16.mxu0 0
    %372 = vmatmul.mubr.bf16.gmra.mrb[0].mxu0 %v52
    %v373 = vpop.f32.mrb[0].mxu0
    %v374 = vadd.f32 %v252, %v373
    %v375 = vpop.f32.mrb[0].mxu0
    %v376 = vadd.f32 %v254, %v375
    %v377 = vpop.f32.mrb[0].mxu0
    %v378 = vadd.f32 %v258, %v377
    %v379 = vpop.f32.mrb[0].mxu0
    %v380 = vadd.f32 %v260, %v379
    %381 = vdwg.mxu0
    %382 = vmatprep.subr.bf16.mxu0 %v120
    %383 = vmatpush1.bf16.msra.mxu0 %v119
    %384 = vmatprep.subr.bf16.mxu0 %v124
    %385 = vmatpush1.bf16.msra.mxu0 %v123
    %386 = vmatprep.subr.bf16.mxu0 %v128
    %387 = vmatpush1.bf16.msra.mxu0 %v127
    %388 = vmatprep.subr.bf16.mxu0 %v132
    %389 = vmatpush1.bf16.msra.mxu0 %v131
    %390 = vmatprep.subr.bf16.mxu0 %v136
    %391 = vmatpush1.bf16.msra.mxu0 %v135
    %392 = vmatprep.subr.bf16.mxu0 %v140
    %393 = vmatpush1.bf16.msra.mxu0 %v139
    %394 = vmatprep.subr.bf16.mxu0 %v144
    %395 = vmatpush1.bf16.msra.mxu0 %v143
    %396 = vmatprep.subr.bf16.mxu0 %v148
    %397 = vmatpush1.bf16.msra.mxu0 %v147
    %398 = vmatprep.subr.bf16.mxu0 0
    %399 = vmatpush1.bf16.msra.mxu0 0
    %400 = vmatprep.subr.bf16.mxu0 0
    %401 = vmatpush1.bf16.msra.mxu0 0
    %402 = vmatprep.subr.bf16.mxu0 0
    %403 = vmatpush1.bf16.msra.mxu0 0
    %404 = vmatprep.subr.bf16.mxu0 0
    %405 = vmatpush1.bf16.msra.mxu0 0
    %406 = vmatprep.subr.bf16.mxu0 0
    %407 = vmatpush1.bf16.msra.mxu0 0
    %408 = vmatprep.subr.bf16.mxu0 0
    %409 = vmatpush1.bf16.msra.mxu0 0
    %410 = vmatprep.subr.bf16.mxu0 0
    %411 = vmatpush1.bf16.msra.mxu0 0
    %412 = vmatprep.subr.bf16.mxu0 0
    %413 = vmatpush1.bf16.msra.mxu0 0
    %414 = vmatprep.mubr.bf16.mxu0 0
    %415 = vmatmul.mubr.bf16.gmra.mrb[0].mxu0 %v52
    %v416 = vpop.f32.mrb[0].mxu0
    %v417 = vadd.f32 %v329, %v416
    %v418 = vpop.f32.mrb[0].mxu0
    %v419 = vadd.f32 %v331, %v418
    %v420 = vpop.f32.mrb[0].mxu0
    %v421 = vadd.f32 %v335, %v420
    %v422 = vpop.f32.mrb[0].mxu0
    %v423 = vadd.f32 %v337, %v422
    %424 = vdwg.mxu0
    %v425 = vld [vmem:[%s1] sm:$0x3]
    %v426 = vpack.c.bf16 %v425, %v425
    %v427 = vld [vmem:[%s5] sm:$0xff]
    %v428 = vld [vmem:[%s5 + $0x8] sm:$0xff]
    %v429 = vld [vmem:[%s5 + $0x10] sm:$0xff]
    %v430 = vld [vmem:[%s5 + $0x18] sm:$0xff]
    %v431 = vld [vmem:[%s5 + $0x20] sm:$0xff]
    %v432 = vld [vmem:[%s5 + $0x28] sm:$0xff]
    %v433 = vld [vmem:[%s5 + $0x30] sm:$0xff]
    %v434 = vld [vmem:[%s5 + $0x38] sm:$0xff]
    %v435 = vld [vmem:[%s5 + $0x40] sm:$0xff]
    %v436 = vld [vmem:[%s5 + $0x48] sm:$0xff]
    %v437 = vld [vmem:[%s5 + $0x50] sm:$0xff]
    %v438 = vld [vmem:[%s5 + $0x58] sm:$0xff]
    %v439 = vld [vmem:[%s5 + $0x60] sm:$0xff]
    %v440 = vld [vmem:[%s5 + $0x68] sm:$0xff]
    %v441 = vld [vmem:[%s5 + $0x70] sm:$0xff]
    %v442 = vld [vmem:[%s5 + $0x78] sm:$0xff]
    %v443 = vld [vmem:[%s5 + $0x80] sm:$0xff]
    %v444 = vld [vmem:[%s5 + $0x88] sm:$0xff]
    %v445 = vld [vmem:[%s5 + $0x90] sm:$0xff]
    %v446 = vld [vmem:[%s5 + $0x98] sm:$0xff]
    %v447 = vld [vmem:[%s5 + $0xa0] sm:$0xff]
    %v448 = vld [vmem:[%s5 + $0xa8] sm:$0xff]
    %v449 = vld [vmem:[%s5 + $0xb0] sm:$0xff]
    %v450 = vld [vmem:[%s5 + $0xb8] sm:$0xff]
    %v451 = vld [vmem:[%s5 + $0xc0] sm:$0xff]
    %v452 = vld [vmem:[%s5 + $0xc8] sm:$0xff]
    %v453 = vld [vmem:[%s5 + $0xd0] sm:$0xff]
    %v454 = vld [vmem:[%s5 + $0xd8] sm:$0xff]
    %v455 = vld [vmem:[%s5 + $0xe0] sm:$0xff]
    %v456 = vld [vmem:[%s5 + $0xe8] sm:$0xff]
    %v457 = vld [vmem:[%s5 + $0xf0] sm:$0xff]
    %v458 = vld [vmem:[%s5 + $0xf8] sm:$0xff]
    %v459 = vld [vmem:[%s5 + $0x100] sm:$0xff]
    %v460 = vld [vmem:[%s5 + $0x108] sm:$0xff]
    %v461 = vld [vmem:[%s5 + $0x110] sm:$0xff]
    %v462 = vld [vmem:[%s5 + $0x118] sm:$0xff]
    %v463 = vld [vmem:[%s5 + $0x120] sm:$0xff]
    %v464 = vld [vmem:[%s5 + $0x128] sm:$0xff]
    %v465 = vld [vmem:[%s5 + $0x130] sm:$0xff]
    %v466 = vld [vmem:[%s5 + $0x138] sm:$0xff]
    %v467 = vld [vmem:[%s5 + $0x140] sm:$0xff]
    %v468 = vld [vmem:[%s5 + $0x148] sm:$0xff]
    %v469 = vld [vmem:[%s5 + $0x150] sm:$0xff]
    %v470 = vld [vmem:[%s5 + $0x158] sm:$0xff]
    %v471 = vld [vmem:[%s5 + $0x160] sm:$0xff]
    %v472 = vld [vmem:[%s5 + $0x168] sm:$0xff]
    %v473 = vld [vmem:[%s5 + $0x170] sm:$0xff]
    %v474 = vld [vmem:[%s5 + $0x178] sm:$0xff]
    %v475 = vld [vmem:[%s5 + $0x180] sm:$0xff]
    %v476 = vld [vmem:[%s5 + $0x188] sm:$0xff]
    %v477 = vld [vmem:[%s5 + $0x190] sm:$0xff]
    %v478 = vld [vmem:[%s5 + $0x198] sm:$0xff]
    %v479 = vld [vmem:[%s5 + $0x1a0] sm:$0xff]
    %v480 = vld [vmem:[%s5 + $0x1a8] sm:$0xff]
    %v481 = vld [vmem:[%s5 + $0x1b0] sm:$0xff]
    %v482 = vld [vmem:[%s5 + $0x1b8] sm:$0xff]
    %v483 = vld [vmem:[%s5 + $0x1c0] sm:$0xff]
    %v484 = vld [vmem:[%s5 + $0x1c8] sm:$0xff]
    %v485 = vld [vmem:[%s5 + $0x1d0] sm:$0xff]
    %v486 = vld [vmem:[%s5 + $0x1d8] sm:$0xff]
    %v487 = vld [vmem:[%s5 + $0x1e0] sm:$0xff]
    %v488 = vld [vmem:[%s5 + $0x1e8] sm:$0xff]
    %v489 = vld [vmem:[%s5 + $0x1f0] sm:$0xff]
    %v490 = vld [vmem:[%s5 + $0x1f8] sm:$0xff]
    %v491 = vpack.c.bf16 %v431, %v427
    %v492 = vpack.c.bf16 %v432, %v428
    %v493 = vpack.c.bf16 %v433, %v429
    %v494 = vpack.c.bf16 %v434, %v430
    %v495 = vpack.c.bf16 %v439, %v435
    %v496 = vpack.c.bf16 %v440, %v436
    %v497 = vpack.c.bf16 %v441, %v437
    %v498 = vpack.c.bf16 %v442, %v438
    %v499 = vpack.c.bf16 %v447, %v443
    %v500 = vpack.c.bf16 %v448, %v444
    %v501 = vpack.c.bf16 %v449, %v445
    %v502 = vpack.c.bf16 %v450, %v446
    %v503 = vpack.c.bf16 %v455, %v451
    %v504 = vpack.c.bf16 %v456, %v452
    %v505 = vpack.c.bf16 %v457, %v453
    %v506 = vpack.c.bf16 %v458, %v454
    %v507 = vpack.c.bf16 %v463, %v459
    %v508 = vpack.c.bf16 %v464, %v460
    %v509 = vpack.c.bf16 %v465, %v461
    %v510 = vpack.c.bf16 %v466, %v462
    %v511 = vpack.c.bf16 %v471, %v467
    %v512 = vpack.c.bf16 %v472, %v468
    %v513 = vpack.c.bf16 %v473, %v469
    %v514 = vpack.c.bf16 %v474, %v470
    %v515 = vpack.c.bf16 %v479, %v475
    %v516 = vpack.c.bf16 %v480, %v476
    %v517 = vpack.c.bf16 %v481, %v477
    %v518 = vpack.c.bf16 %v482, %v478
    %v519 = vpack.c.bf16 %v487, %v483
    %v520 = vpack.c.bf16 %v488, %v484
    %v521 = vpack.c.bf16 %v489, %v485
    %v522 = vpack.c.bf16 %v490, %v486
    %523 = vmatprep.subr.bf16.mxu0 %v492
    %524 = vmatpush1.bf16.msra.mxu0 %v491
    %525 = vmatprep.subr.bf16.mxu0 %v496
    %526 = vmatpush1.bf16.msra.mxu0 %v495
    %527 = vmatprep.subr.bf16.mxu0 %v500
    %528 = vmatpush1.bf16.msra.mxu0 %v499
    %529 = vmatprep.subr.bf16.mxu0 %v504
    %530 = vmatpush1.bf16.msra.mxu0 %v503
    %531 = vmatprep.subr.bf16.mxu0 %v508
    %532 = vmatpush1.bf16.msra.mxu0 %v507
    %533 = vmatprep.subr.bf16.mxu0 %v512
    %534 = vmatpush1.bf16.msra.mxu0 %v511
    %535 = vmatprep.subr.bf16.mxu0 %v516
    %536 = vmatpush1.bf16.msra.mxu0 %v515
    %537 = vmatprep.subr.bf16.mxu0 %v520
    %538 = vmatpush1.bf16.msra.mxu0 %v519
    %539 = vmatprep.subr.bf16.mxu0 0
    %540 = vmatpush1.bf16.msra.mxu0 0
    %541 = vmatprep.subr.bf16.mxu0 0
    %542 = vmatpush1.bf16.msra.mxu0 0
    %543 = vmatprep.subr.bf16.mxu0 0
    %544 = vmatpush1.bf16.msra.mxu0 0
    %545 = vmatprep.subr.bf16.mxu0 0
    %546 = vmatpush1.bf16.msra.mxu0 0
    %547 = vmatprep.subr.bf16.mxu0 0
    %548 = vmatpush1.bf16.msra.mxu0 0
    %549 = vmatprep.subr.bf16.mxu0 0
    %550 = vmatpush1.bf16.msra.mxu0 0
    %551 = vmatprep.subr.bf16.mxu0 0
    %552 = vmatpush1.bf16.msra.mxu0 0
    %553 = vmatprep.subr.bf16.mxu0 0
    %554 = vmatpush1.bf16.msra.mxu0 0
    %555 = vmatprep.mubr.bf16.mxu0 0
    %556 = vmatmul.mubr.bf16.gmra.mrb[0].mxu0 %v426
    %v557 = vpop.f32.mrb[0].mxu0
    %v558 = vadd.f32 0.0, %v557
    %v559 = vpop.f32.mrb[0].mxu0
    %v560 = vadd.f32 0.0, %v559
    %v561 = vpop.f32.mrb[0].mxu0
    %v562 = vpop.f32.mrb[0].mxu0
    %563 = vdwg.mxu0
    %564 = vmatprep.subr.bf16.mxu0 %v494
    %565 = vmatpush1.bf16.msra.mxu0 %v493
    %566 = vmatprep.subr.bf16.mxu0 %v498
    %567 = vmatpush1.bf16.msra.mxu0 %v497
    %568 = vmatprep.subr.bf16.mxu0 %v502
    %569 = vmatpush1.bf16.msra.mxu0 %v501
    %570 = vmatprep.subr.bf16.mxu0 %v506
    %571 = vmatpush1.bf16.msra.mxu0 %v505
    %572 = vmatprep.subr.bf16.mxu0 %v510
    %573 = vmatpush1.bf16.msra.mxu0 %v509
    %574 = vmatprep.subr.bf16.mxu0 %v514
    %575 = vmatpush1.bf16.msra.mxu0 %v513
    %576 = vmatprep.subr.bf16.mxu0 %v518
    %577 = vmatpush1.bf16.msra.mxu0 %v517
    %578 = vmatprep.subr.bf16.mxu0 %v522
    %579 = vmatpush1.bf16.msra.mxu0 %v521
    %580 = vmatprep.subr.bf16.mxu0 0
    %581 = vmatpush1.bf16.msra.mxu0 0
    %582 = vmatprep.subr.bf16.mxu0 0
    %583 = vmatpush1.bf16.msra.mxu0 0
    %584 = vmatprep.subr.bf16.mxu0 0
    %585 = vmatpush1.bf16.msra.mxu0 0
    %586 = vmatprep.subr.bf16.mxu0 0
    %587 = vmatpush1.bf16.msra.mxu0 0
    %588 = vmatprep.subr.bf16.mxu0 0
    %589 = vmatpush1.bf16.msra.mxu0 0
    %590 = vmatprep.subr.bf16.mxu0 0
    %591 = vmatpush1.bf16.msra.mxu0 0
    %592 = vmatprep.subr.bf16.mxu0 0
    %593 = vmatpush1.bf16.msra.mxu0 0
    %594 = vmatprep.subr.bf16.mxu0 0
    %595 = vmatpush1.bf16.msra.mxu0 0
    %596 = vmatprep.mubr.bf16.mxu0 0
    %597 = vmatmul.mubr.bf16.gmra.mrb[0].mxu0 %v426
    %v598 = vpop.f32.mrb[0].mxu0
    %v599 = vadd.f32 0.0, %v598
    %v600 = vpop.f32.mrb[0].mxu0
    %v601 = vadd.f32 0.0, %v600
    %v602 = vpop.f32.mrb[0].mxu0
    %v603 = vpop.f32.mrb[0].mxu0
    %604 = vdwg.mxu0
    %v609 = vcombine.low %v558, %v560
    %v610 = vcombine.low %v599, %v601
    %v612 = vunpack.c.l.s4 1966171168
    %v613 = vunpack.c.0.s8 %v612
    %v614 = vlaneseq
    %v615 = vshrl.u32 %v614, 7
    %v616 = vsub.s32 %v613, %v615
    %v617 = vrot.slane %v609, %v616
    %v619 = vunpack.c.l.s4 1966171168
    %v620 = vunpack.c.0.s8 %v619
    %v621 = vlaneseq
    %v622 = vshrl.u32 %v621, 7
    %v623 = vsub.s32 %v620, %v622
    %v624 = vrot.slane %v610, %v623
    %v625 = vcombine.low %v617, %v624
    %v626 = vcombine.high %v617, %v624
    %v628 = vunpack.c.l.s4 1966171168
    %v629 = vunpack.c.0.s8 %v628
    %v630 = vlaneseq
    %v631 = vshrl.u32 %v630, 7
    %v632 = vsub.s32 %v629, %v631
    %v633 = vrot.slane %v625, %v632
    %v635 = vunpack.c.l.s4 1966171168
    %v636 = vunpack.c.0.s8 %v635
    %v637 = vlaneseq
    %v638 = vshrl.u32 %v637, 7
    %v639 = vsub.s32 %v636, %v638
    %v640 = vrot.slane %v626, %v639
    %v641 = vlaneseq
    %v642 = vshrl.u32 %v641, 7
    %v643 = vsub.s32 0, %v642
    %v644 = vrot.slane %v633, %v643
    %v645 = vlaneseq
    %v646 = vshrl.u32 %v645, 7
    %v647 = vsub.s32 1, %v646
    %v648 = vrot.slane %v633, %v647
    %v649 = vlaneseq
    %v650 = vshrl.u32 %v649, 7
    %v651 = vsub.s32 2, %v650
    %v652 = vrot.slane %v633, %v651
    %v653 = vlaneseq
    %v654 = vshrl.u32 %v653, 7
    %v655 = vsub.s32 3, %v654
    %v656 = vrot.slane %v633, %v655
    %v657 = vlaneseq
    %v658 = vshrl.u32 %v657, 7
    %v659 = vsub.s32 0, %v658
    %v660 = vrot.slane %v640, %v659
    %v661 = vlaneseq
    %v662 = vshrl.u32 %v661, 7
    %v663 = vsub.s32 1, %v662
    %v664 = vrot.slane %v640, %v663
    %v665 = vlaneseq
    %v666 = vshrl.u32 %v665, 7
    %v667 = vsub.s32 2, %v666
    %v668 = vrot.slane %v640, %v667
    %v669 = vlaneseq
    %v670 = vshrl.u32 %v669, 7
    %v671 = vsub.s32 3, %v670
    %v672 = vrot.slane %v640, %v671
    %v681 = vadd.f32 %v374, %v644
    %v682 = vadd.f32 %v376, %v648
    %v683 = vadd.f32 %v417, %v652
    %v684 = vadd.f32 %v419, %v656
    %v685 = vadd.f32 %v378, %v660
    %v686 = vadd.f32 %v380, %v664
    %v687 = vadd.f32 %v421, %v668
    %v688 = vadd.f32 %v423, %v672
    %v689 = vld [vmem:[%s7] sm:$0xf]
    %v691 = vlaneseq
    %v692 = vshrl.u32 %v691, 7
    %v693 = vsub.s32 0, %v692
    %v694 = vrot.slane %v689, %v693
    %v695 = vlaneseq
    %v696 = vshrl.u32 %v695, 7
    %v697 = vsub.s32 1, %v696
    %v698 = vrot.slane %v689, %v697
    %v699 = vlaneseq
    %v700 = vshrl.u32 %v699, 7
    %v701 = vsub.s32 2, %v700
    %v702 = vrot.slane %v689, %v701
    %v703 = vlaneseq
    %v704 = vshrl.u32 %v703, 7
    %v705 = vsub.s32 3, %v704
    %v706 = vrot.slane %v689, %v705
    %v711 = vadd.f32 %v681, %v694
    %v712 = vadd.f32 %v682, %v698
    %v713 = vadd.f32 %v683, %v702
    %v714 = vadd.f32 %v684, %v706
    %v715 = vadd.f32 %v685, %v694
    %v716 = vadd.f32 %v686, %v698
    %v717 = vadd.f32 %v687, %v702
    %v718 = vadd.f32 %v688, %v706
    %v719 = vld [vmem:[%s8] sm:$0xff]
    %v720 = vld [vmem:[%s8 + $0x8] sm:$0xff]
    %v721 = vld [vmem:[%s8 + $0x10] sm:$0xff]
    %v722 = vld [vmem:[%s8 + $0x18] sm:$0xff]
    %v723 = vld [vmem:[%s8 + $0x20] sm:$0xff]
    %v724 = vld [vmem:[%s8 + $0x28] sm:$0xff]
    %v725 = vld [vmem:[%s8 + $0x30] sm:$0xff]
    %v726 = vld [vmem:[%s8 + $0x38] sm:$0xff]
    %v727 = vld [vmem:[%s8 + $0x40] sm:$0xff]
    %v728 = vld [vmem:[%s8 + $0x48] sm:$0xff]
    %v729 = vld [vmem:[%s8 + $0x50] sm:$0xff]
    %v730 = vld [vmem:[%s8 + $0x58] sm:$0xff]
    %v731 = vld [vmem:[%s8 + $0x60] sm:$0xff]
    %v732 = vld [vmem:[%s8 + $0x68] sm:$0xff]
    %v733 = vld [vmem:[%s8 + $0x70] sm:$0xff]
    %v734 = vld [vmem:[%s8 + $0x78] sm:$0xff]
    %v735 = vld [vmem:[%s8 + $0x80] sm:$0xff]
    %v736 = vld [vmem:[%s8 + $0x88] sm:$0xff]
    %v737 = vld [vmem:[%s8 + $0x90] sm:$0xff]
    %v738 = vld [vmem:[%s8 + $0x98] sm:$0xff]
    %v739 = vld [vmem:[%s8 + $0xa0] sm:$0xff]
    %v740 = vld [vmem:[%s8 + $0xa8] sm:$0xff]
    %v741 = vld [vmem:[%s8 + $0xb0] sm:$0xff]
    %v742 = vld [vmem:[%s8 + $0xb8] sm:$0xff]
    %v743 = vld [vmem:[%s8 + $0xc0] sm:$0xff]
    %v744 = vld [vmem:[%s8 + $0xc8] sm:$0xff]
    %v745 = vld [vmem:[%s8 + $0xd0] sm:$0xff]
    %v746 = vld [vmem:[%s8 + $0xd8] sm:$0xff]
    %v747 = vld [vmem:[%s8 + $0xe0] sm:$0xff]
    %v748 = vld [vmem:[%s8 + $0xe8] sm:$0xff]
    %v749 = vld [vmem:[%s8 + $0xf0] sm:$0xff]
    %v750 = vld [vmem:[%s8 + $0xf8] sm:$0xff]
    %v751 = vld [vmem:[%s8 + $0x100] sm:$0xff]
    %v752 = vld [vmem:[%s8 + $0x108] sm:$0xff]
    %v753 = vld [vmem:[%s8 + $0x110] sm:$0xff]
    %v754 = vld [vmem:[%s8 + $0x118] sm:$0xff]
    %v755 = vld [vmem:[%s8 + $0x120] sm:$0xff]
    %v756 = vld [vmem:[%s8 + $0x128] sm:$0xff]
    %v757 = vld [vmem:[%s8 + $0x130] sm:$0xff]
    %v758 = vld [vmem:[%s8 + $0x138] sm:$0xff]
    %v759 = vld [vmem:[%s8 + $0x140] sm:$0xff]
    %v760 = vld [vmem:[%s8 + $0x148] sm:$0xff]
    %v761 = vld [vmem:[%s8 + $0x150] sm:$0xff]
    %v762 = vld [vmem:[%s8 + $0x158] sm:$0xff]
    %v763 = vld [vmem:[%s8 + $0x160] sm:$0xff]
    %v764 = vld [vmem:[%s8 + $0x168] sm:$0xff]
    %v765 = vld [vmem:[%s8 + $0x170] sm:$0xff]
    %v766 = vld [vmem:[%s8 + $0x178] sm:$0xff]
    %v767 = vld [vmem:[%s8 + $0x180] sm:$0xff]
    %v768 = vld [vmem:[%s8 + $0x188] sm:$0xff]
    %v769 = vld [vmem:[%s8 + $0x190] sm:$0xff]
    %v770 = vld [vmem:[%s8 + $0x198] sm:$0xff]
    %v771 = vld [vmem:[%s8 + $0x1a0] sm:$0xff]
    %v772 = vld [vmem:[%s8 + $0x1a8] sm:$0xff]
    %v773 = vld [vmem:[%s8 + $0x1b0] sm:$0xff]
    %v774 = vld [vmem:[%s8 + $0x1b8] sm:$0xff]
    %v775 = vld [vmem:[%s8 + $0x1c0] sm:$0xff]
    %v776 = vld [vmem:[%s8 + $0x1c8] sm:$0xff]
    %v777 = vld [vmem:[%s8 + $0x1d0] sm:$0xff]
    %v778 = vld [vmem:[%s8 + $0x1d8] sm:$0xff]
    %v779 = vld [vmem:[%s8 + $0x1e0] sm:$0xff]
    %v780 = vld [vmem:[%s8 + $0x1e8] sm:$0xff]
    %v781 = vld [vmem:[%s8 + $0x1f0] sm:$0xff]
    %v782 = vld [vmem:[%s8 + $0x1f8] sm:$0xff]
    %v783 = vpack.c.bf16 %v723, %v719
    %v784 = vpack.c.bf16 %v724, %v720
    %v785 = vpack.c.bf16 %v725, %v721
    %v786 = vpack.c.bf16 %v726, %v722
    %v787 = vpack.c.bf16 %v731, %v727
    %v788 = vpack.c.bf16 %v732, %v728
    %v789 = vpack.c.bf16 %v733, %v729
    %v790 = vpack.c.bf16 %v734, %v730
    %v791 = vpack.c.bf16 %v739, %v735
    %v792 = vpack.c.bf16 %v740, %v736
    %v793 = vpack.c.bf16 %v741, %v737
    %v794 = vpack.c.bf16 %v742, %v738
    %v795 = vpack.c.bf16 %v747, %v743
    %v796 = vpack.c.bf16 %v748, %v744
    %v797 = vpack.c.bf16 %v749, %v745
    %v798 = vpack.c.bf16 %v750, %v746
    %v799 = vpack.c.bf16 %v755, %v751
    %v800 = vpack.c.bf16 %v756, %v752
    %v801 = vpack.c.bf16 %v757, %v753
    %v802 = vpack.c.bf16 %v758, %v754
    %v803 = vpack.c.bf16 %v763, %v759
    %v804 = vpack.c.bf16 %v764, %v760
    %v805 = vpack.c.bf16 %v765, %v761
    %v806 = vpack.c.bf16 %v766, %v762
    %v807 = vpack.c.bf16 %v771, %v767
    %v808 = vpack.c.bf16 %v772, %v768
    %v809 = vpack.c.bf16 %v773, %v769
    %v810 = vpack.c.bf16 %v774, %v770
    %v811 = vpack.c.bf16 %v779, %v775
    %v812 = vpack.c.bf16 %v780, %v776
    %v813 = vpack.c.bf16 %v781, %v777
    %v814 = vpack.c.bf16 %v782, %v778
    %v815 = vld [vmem:[%s9] sm:$0xff]
    %v816 = vld [vmem:[%s9 + $0x8] sm:$0xff]
    %v817 = vld [vmem:[%s9 + $0x10] sm:$0xff]
    %v818 = vld [vmem:[%s9 + $0x18] sm:$0xff]
    %v819 = vld [vmem:[%s9 + $0x20] sm:$0xff]
    %v820 = vld [vmem:[%s9 + $0x28] sm:$0xff]
    %v821 = vld [vmem:[%s9 + $0x30] sm:$0xff]
    %v822 = vld [vmem:[%s9 + $0x38] sm:$0xff]
    %v823 = vld [vmem:[%s9 + $0x40] sm:$0xff]
    %v824 = vld [vmem:[%s9 + $0x48] sm:$0xff]
    %v825 = vld [vmem:[%s9 + $0x50] sm:$0xff]
    %v826 = vld [vmem:[%s9 + $0x58] sm:$0xff]
    %v827 = vld [vmem:[%s9 + $0x60] sm:$0xff]
    %v828 = vld [vmem:[%s9 + $0x68] sm:$0xff]
    %v829 = vld [vmem:[%s9 + $0x70] sm:$0xff]
    %v830 = vld [vmem:[%s9 + $0x78] sm:$0xff]
    %v831 = vld [vmem:[%s9 + $0x80] sm:$0xff]
    %v832 = vld [vmem:[%s9 + $0x88] sm:$0xff]
    %v833 = vld [vmem:[%s9 + $0x90] sm:$0xff]
    %v834 = vld [vmem:[%s9 + $0x98] sm:$0xff]
    %v835 = vld [vmem:[%s9 + $0xa0] sm:$0xff]
    %v836 = vld [vmem:[%s9 + $0xa8] sm:$0xff]
    %v837 = vld [vmem:[%s9 + $0xb0] sm:$0xff]
    %v838 = vld [vmem:[%s9 + $0xb8] sm:$0xff]
    %v839 = vld [vmem:[%s9 + $0xc0] sm:$0xff]
    %v840 = vld [vmem:[%s9 + $0xc8] sm:$0xff]
    %v841 = vld [vmem:[%s9 + $0xd0] sm:$0xff]
    %v842 = vld [vmem:[%s9 + $0xd8] sm:$0xff]
    %v843 = vld [vmem:[%s9 + $0xe0] sm:$0xff]
    %v844 = vld [vmem:[%s9 + $0xe8] sm:$0xff]
    %v845 = vld [vmem:[%s9 + $0xf0] sm:$0xff]
    %v846 = vld [vmem:[%s9 + $0xf8] sm:$0xff]
    %v847 = vld [vmem:[%s9 + $0x100] sm:$0xff]
    %v848 = vld [vmem:[%s9 + $0x108] sm:$0xff]
    %v849 = vld [vmem:[%s9 + $0x110] sm:$0xff]
    %v850 = vld [vmem:[%s9 + $0x118] sm:$0xff]
    %v851 = vld [vmem:[%s9 + $0x120] sm:$0xff]
    %v852 = vld [vmem:[%s9 + $0x128] sm:$0xff]
    %v853 = vld [vmem:[%s9 + $0x130] sm:$0xff]
    %v854 = vld [vmem:[%s9 + $0x138] sm:$0xff]
    %v855 = vld [vmem:[%s9 + $0x140] sm:$0xff]
    %v856 = vld [vmem:[%s9 + $0x148] sm:$0xff]
    %v857 = vld [vmem:[%s9 + $0x150] sm:$0xff]
    %v858 = vld [vmem:[%s9 + $0x158] sm:$0xff]
    %v859 = vld [vmem:[%s9 + $0x160] sm:$0xff]
    %v860 = vld [vmem:[%s9 + $0x168] sm:$0xff]
    %v861 = vld [vmem:[%s9 + $0x170] sm:$0xff]
    %v862 = vld [vmem:[%s9 + $0x178] sm:$0xff]
    %v863 = vld [vmem:[%s9 + $0x180] sm:$0xff]
    %v864 = vld [vmem:[%s9 + $0x188] sm:$0xff]
    %v865 = vld [vmem:[%s9 + $0x190] sm:$0xff]
    %v866 = vld [vmem:[%s9 + $0x198] sm:$0xff]
    %v867 = vld [vmem:[%s9 + $0x1a0] sm:$0xff]
    %v868 = vld [vmem:[%s9 + $0x1a8] sm:$0xff]
    %v869 = vld [vmem:[%s9 + $0x1b0] sm:$0xff]
    %v870 = vld [vmem:[%s9 + $0x1b8] sm:$0xff]
    %v871 = vld [vmem:[%s9 + $0x1c0] sm:$0xff]
    %v872 = vld [vmem:[%s9 + $0x1c8] sm:$0xff]
    %v873 = vld [vmem:[%s9 + $0x1d0] sm:$0xff]
    %v874 = vld [vmem:[%s9 + $0x1d8] sm:$0xff]
    %v875 = vld [vmem:[%s9 + $0x1e0] sm:$0xff]
    %v876 = vld [vmem:[%s9 + $0x1e8] sm:$0xff]
    %v877 = vld [vmem:[%s9 + $0x1f0] sm:$0xff]
    %v878 = vld [vmem:[%s9 + $0x1f8] sm:$0xff]
    %v879 = vld [vmem:[%s9 + $0x200] sm:$0xff]
    %v880 = vld [vmem:[%s9 + $0x208] sm:$0xff]
    %v881 = vld [vmem:[%s9 + $0x210] sm:$0xff]
    %v882 = vld [vmem:[%s9 + $0x218] sm:$0xff]
    %v883 = vld [vmem:[%s9 + $0x220] sm:$0xff]
    %v884 = vld [vmem:[%s9 + $0x228] sm:$0xff]
    %v885 = vld [vmem:[%s9 + $0x230] sm:$0xff]
    %v886 = vld [vmem:[%s9 + $0x238] sm:$0xff]
    %v887 = vld [vmem:[%s9 + $0x240] sm:$0xff]
    %v888 = vld [vmem:[%s9 + $0x248] sm:$0xff]
    %v889 = vld [vmem:[%s9 + $0x250] sm:$0xff]
    %v890 = vld [vmem:[%s9 + $0x258] sm:$0xff]
    %v891 = vld [vmem:[%s9 + $0x260] sm:$0xff]
    %v892 = vld [vmem:[%s9 + $0x268] sm:$0xff]
    %v893 = vld [vmem:[%s9 + $0x270] sm:$0xff]
    %v894 = vld [vmem:[%s9 + $0x278] sm:$0xff]
    %v895 = vld [vmem:[%s9 + $0x280] sm:$0xff]
    %v896 = vld [vmem:[%s9 + $0x288] sm:$0xff]
    %v897 = vld [vmem:[%s9 + $0x290] sm:$0xff]
    %v898 = vld [vmem:[%s9 + $0x298] sm:$0xff]
    %v899 = vld [vmem:[%s9 + $0x2a0] sm:$0xff]
    %v900 = vld [vmem:[%s9 + $0x2a8] sm:$0xff]
    %v901 = vld [vmem:[%s9 + $0x2b0] sm:$0xff]
    %v902 = vld [vmem:[%s9 + $0x2b8] sm:$0xff]
    %v903 = vld [vmem:[%s9 + $0x2c0] sm:$0xff]
    %v904 = vld [vmem:[%s9 + $0x2c8] sm:$0xff]
    %v905 = vld [vmem:[%s9 + $0x2d0] sm:$0xff]
    %v906 = vld [vmem:[%s9 + $0x2d8] sm:$0xff]
    %v907 = vld [vmem:[%s9 + $0x2e0] sm:$0xff]
    %v908 = vld [vmem:[%s9 + $0x2e8] sm:$0xff]
    %v909 = vld [vmem:[%s9 + $0x2f0] sm:$0xff]
    %v910 = vld [vmem:[%s9 + $0x2f8] sm:$0xff]
    %v911 = vld [vmem:[%s9 + $0x300] sm:$0xff]
    %v912 = vld [vmem:[%s9 + $0x308] sm:$0xff]
    %v913 = vld [vmem:[%s9 + $0x310] sm:$0xff]
    %v914 = vld [vmem:[%s9 + $0x318] sm:$0xff]
    %v915 = vld [vmem:[%s9 + $0x320] sm:$0xff]
    %v916 = vld [vmem:[%s9 + $0x328] sm:$0xff]
    %v917 = vld [vmem:[%s9 + $0x330] sm:$0xff]
    %v918 = vld [vmem:[%s9 + $0x338] sm:$0xff]
    %v919 = vld [vmem:[%s9 + $0x340] sm:$0xff]
    %v920 = vld [vmem:[%s9 + $0x348] sm:$0xff]
    %v921 = vld [vmem:[%s9 + $0x350] sm:$0xff]
    %v922 = vld [vmem:[%s9 + $0x358] sm:$0xff]
    %v923 = vld [vmem:[%s9 + $0x360] sm:$0xff]
    %v924 = vld [vmem:[%s9 + $0x368] sm:$0xff]
    %v925 = vld [vmem:[%s9 + $0x370] sm:$0xff]
    %v926 = vld [vmem:[%s9 + $0x378] sm:$0xff]
    %v927 = vld [vmem:[%s9 + $0x380] sm:$0xff]
    %v928 = vld [vmem:[%s9 + $0x388] sm:$0xff]
    %v929 = vld [vmem:[%s9 + $0x390] sm:$0xff]
    %v930 = vld [vmem:[%s9 + $0x398] sm:$0xff]
    %v931 = vld [vmem:[%s9 + $0x3a0] sm:$0xff]
    %v932 = vld [vmem:[%s9 + $0x3a8] sm:$0xff]
    %v933 = vld [vmem:[%s9 + $0x3b0] sm:$0xff]
    %v934 = vld [vmem:[%s9 + $0x3b8] sm:$0xff]
    %v935 = vld [vmem:[%s9 + $0x3c0] sm:$0xff]
    %v936 = vld [vmem:[%s9 + $0x3c8] sm:$0xff]
    %v937 = vld [vmem:[%s9 + $0x3d0] sm:$0xff]
    %v938 = vld [vmem:[%s9 + $0x3d8] sm:$0xff]
    %v939 = vld [vmem:[%s9 + $0x3e0] sm:$0xff]
    %v940 = vld [vmem:[%s9 + $0x3e8] sm:$0xff]
    %v941 = vld [vmem:[%s9 + $0x3f0] sm:$0xff]
    %v942 = vld [vmem:[%s9 + $0x3f8] sm:$0xff]
    %v943 = vpack.c.bf16 %v819, %v815
    %v944 = vpack.c.bf16 %v820, %v816
    %v945 = vpack.c.bf16 %v821, %v817
    %v946 = vpack.c.bf16 %v822, %v818
    %v947 = vpack.c.bf16 %v827, %v823
    %v948 = vpack.c.bf16 %v828, %v824
    %v949 = vpack.c.bf16 %v829, %v825
    %v950 = vpack.c.bf16 %v830, %v826
    %v951 = vpack.c.bf16 %v835, %v831
    %v952 = vpack.c.bf16 %v836, %v832
    %v953 = vpack.c.bf16 %v837, %v833
    %v954 = vpack.c.bf16 %v838, %v834
    %v955 = vpack.c.bf16 %v843, %v839
    %v956 = vpack.c.bf16 %v844, %v840
    %v957 = vpack.c.bf16 %v845, %v841
    %v958 = vpack.c.bf16 %v846, %v842
    %v959 = vpack.c.bf16 %v851, %v847
    %v960 = vpack.c.bf16 %v852, %v848
    %v961 = vpack.c.bf16 %v853, %v849
    %v962 = vpack.c.bf16 %v854, %v850
    %v963 = vpack.c.bf16 %v859, %v855
    %v964 = vpack.c.bf16 %v860, %v856
    %v965 = vpack.c.bf16 %v861, %v857
    %v966 = vpack.c.bf16 %v862, %v858
    %v967 = vpack.c.bf16 %v867, %v863
    %v968 = vpack.c.bf16 %v868, %v864
    %v969 = vpack.c.bf16 %v869, %v865
    %v970 = vpack.c.bf16 %v870, %v866
    %v971 = vpack.c.bf16 %v875, %v871
    %v972 = vpack.c.bf16 %v876, %v872
    %v973 = vpack.c.bf16 %v877, %v873
    %v974 = vpack.c.bf16 %v878, %v874
    %v975 = vpack.c.bf16 %v883, %v879
    %v976 = vpack.c.bf16 %v884, %v880
    %v977 = vpack.c.bf16 %v885, %v881
    %v978 = vpack.c.bf16 %v886, %v882
    %v979 = vpack.c.bf16 %v891, %v887
    %v980 = vpack.c.bf16 %v892, %v888
    %v981 = vpack.c.bf16 %v893, %v889
    %v982 = vpack.c.bf16 %v894, %v890
    %v983 = vpack.c.bf16 %v899, %v895
    %v984 = vpack.c.bf16 %v900, %v896
    %v985 = vpack.c.bf16 %v901, %v897
    %v986 = vpack.c.bf16 %v902, %v898
    %v987 = vpack.c.bf16 %v907, %v903
    %v988 = vpack.c.bf16 %v908, %v904
    %v989 = vpack.c.bf16 %v909, %v905
    %v990 = vpack.c.bf16 %v910, %v906
    %v991 = vpack.c.bf16 %v915, %v911
    %v992 = vpack.c.bf16 %v916, %v912
    %v993 = vpack.c.bf16 %v917, %v913
    %v994 = vpack.c.bf16 %v918, %v914
    %v995 = vpack.c.bf16 %v923, %v919
    %v996 = vpack.c.bf16 %v924, %v920
    %v997 = vpack.c.bf16 %v925, %v921
    %v998 = vpack.c.bf16 %v926, %v922
    %v999 = vpack.c.bf16 %v931, %v927
    %v1000 = vpack.c.bf16 %v932, %v928
    %v1001 = vpack.c.bf16 %v933, %v929
    %v1002 = vpack.c.bf16 %v934, %v930
    %v1003 = vpack.c.bf16 %v939, %v935
    %v1004 = vpack.c.bf16 %v940, %v936
    %v1005 = vpack.c.bf16 %v941, %v937
    %v1006 = vpack.c.bf16 %v942, %v938
    %v1007 = vld [vmem:[%s10] sm:$0xf]
    %v1008 = vld [vmem:[%s11] sm:$0xff]
    %v1009 = vld [vmem:[%s11 + $0x8] sm:$0xff]
    %v1010 = vld [vmem:[%s11 + $0x10] sm:$0xff]
    %v1011 = vld [vmem:[%s11 + $0x18] sm:$0xff]
    %v1012 = vld [vmem:[%s11 + $0x20] sm:$0xff]
    %v1013 = vld [vmem:[%s11 + $0x28] sm:$0xff]
    %v1014 = vld [vmem:[%s11 + $0x30] sm:$0xff]
    %v1015 = vld [vmem:[%s11 + $0x38] sm:$0xff]
    %v1016 = vld [vmem:[%s11 + $0x40] sm:$0xff]
    %v1017 = vld [vmem:[%s11 + $0x48] sm:$0xff]
    %v1018 = vld [vmem:[%s11 + $0x50] sm:$0xff]
    %v1019 = vld [vmem:[%s11 + $0x58] sm:$0xff]
    %v1020 = vld [vmem:[%s11 + $0x60] sm:$0xff]
    %v1021 = vld [vmem:[%s11 + $0x68] sm:$0xff]
    %v1022 = vld [vmem:[%s11 + $0x70] sm:$0xff]
    %v1023 = vld [vmem:[%s11 + $0x78] sm:$0xff]
    %v1024 = vpack.c.bf16 %v1009, %v1008
    %v1025 = vpack.c.bf16 %v1011, %v1010
    %v1026 = vpack.c.bf16 %v1013, %v1012
    %v1027 = vpack.c.bf16 %v1015, %v1014
    %v1028 = vpack.c.bf16 %v1017, %v1016
    %v1029 = vpack.c.bf16 %v1019, %v1018
    %v1030 = vpack.c.bf16 %v1021, %v1020
    %v1031 = vpack.c.bf16 %v1023, %v1022
    %v1032 = vld [vmem:[%s12] sm:$0x1]
    %v1033 = vld [vmem:[%s3] sm:$0x3]
    %vm1034 = vcmp.gt.s32.totalorder %v1033, 0
    %1035 = vmatprep.subr.bf16.mxu0 %v784
    %1036 = vmatpush1.bf16.msra.mxu0 %v783
    %1037 = vmatprep.subr.bf16.mxu0 %v788
    %1038 = vmatpush1.bf16.msra.mxu0 %v787
    %1039 = vmatprep.subr.bf16.mxu0 %v792
    %1040 = vmatpush1.bf16.msra.mxu0 %v791
    %1041 = vmatprep.subr.bf16.mxu0 %v796
    %1042 = vmatpush1.bf16.msra.mxu0 %v795
    %1043 = vmatprep.subr.bf16.mxu0 %v800
    %1044 = vmatpush1.bf16.msra.mxu0 %v799
    %1045 = vmatprep.subr.bf16.mxu0 %v804
    %1046 = vmatpush1.bf16.msra.mxu0 %v803
    %1047 = vmatprep.subr.bf16.mxu0 %v808
    %1048 = vmatpush1.bf16.msra.mxu0 %v807
    %1049 = vmatprep.subr.bf16.mxu0 %v812
    %1050 = vmatpush1.bf16.msra.mxu0 %v811
    %1051 = vmatprep.subr.bf16.mxu0 0
    %1052 = vmatpush1.bf16.msra.mxu0 0
    %1053 = vmatprep.subr.bf16.mxu0 0
    %1054 = vmatpush1.bf16.msra.mxu0 0
    %1055 = vmatprep.subr.bf16.mxu0 0
    %1056 = vmatpush1.bf16.msra.mxu0 0
    %1057 = vmatprep.subr.bf16.mxu0 0
    %1058 = vmatpush1.bf16.msra.mxu0 0
    %1059 = vmatprep.subr.bf16.mxu0 0
    %1060 = vmatpush1.bf16.msra.mxu0 0
    %1061 = vmatprep.subr.bf16.mxu0 0
    %1062 = vmatpush1.bf16.msra.mxu0 0
    %1063 = vmatprep.subr.bf16.mxu0 0
    %1064 = vmatpush1.bf16.msra.mxu0 0
    %1065 = vmatprep.subr.bf16.mxu0 0
    %1066 = vmatpush1.bf16.msra.mxu0 0
    %1067 = vmatprep.mubr.bf16.mxu0 0
    %1068 = vmatmul.mubr.bf16.gmra.mrb[0].mxu0 0
    %v1069 = vpop.f32.mrb[0].mxu0
    %v1070 = vadd.f32 0.0, %v1069
    %v1071 = vpop.f32.mrb[0].mxu0
    %v1072 = vadd.f32 0.0, %v1071
    %v1073 = vpop.f32.mrb[0].mxu0
    %v1074 = vpop.f32.mrb[0].mxu0
    %1075 = vdwg.mxu0
    %1076 = vmatprep.subr.bf16.mxu0 %v786
    %1077 = vmatpush1.bf16.msra.mxu0 %v785
    %1078 = vmatprep.subr.bf16.mxu0 %v790
    %1079 = vmatpush1.bf16.msra.mxu0 %v789
    %1080 = vmatprep.subr.bf16.mxu0 %v794
    %1081 = vmatpush1.bf16.msra.mxu0 %v793
    %1082 = vmatprep.subr.bf16.mxu0 %v798
    %1083 = vmatpush1.bf16.msra.mxu0 %v797
    %1084 = vmatprep.subr.bf16.mxu0 %v802
    %1085 = vmatpush1.bf16.msra.mxu0 %v801
    %1086 = vmatprep.subr.bf16.mxu0 %v806
    %1087 = vmatpush1.bf16.msra.mxu0 %v805
    %1088 = vmatprep.subr.bf16.mxu0 %v810
    %1089 = vmatpush1.bf16.msra.mxu0 %v809
    %1090 = vmatprep.subr.bf16.mxu0 %v814
    %1091 = vmatpush1.bf16.msra.mxu0 %v813
    %1092 = vmatprep.subr.bf16.mxu0 0
    %1093 = vmatpush1.bf16.msra.mxu0 0
    %1094 = vmatprep.subr.bf16.mxu0 0
    %1095 = vmatpush1.bf16.msra.mxu0 0
    %1096 = vmatprep.subr.bf16.mxu0 0
    %1097 = vmatpush1.bf16.msra.mxu0 0
    %1098 = vmatprep.subr.bf16.mxu0 0
    %1099 = vmatpush1.bf16.msra.mxu0 0
    %1100 = vmatprep.subr.bf16.mxu0 0
    %1101 = vmatpush1.bf16.msra.mxu0 0
    %1102 = vmatprep.subr.bf16.mxu0 0
    %1103 = vmatpush1.bf16.msra.mxu0 0
    %1104 = vmatprep.subr.bf16.mxu0 0
    %1105 = vmatpush1.bf16.msra.mxu0 0
    %1106 = vmatprep.subr.bf16.mxu0 0
    %1107 = vmatpush1.bf16.msra.mxu0 0
    %1108 = vmatprep.mubr.bf16.mxu0 0
    %1109 = vmatmul.mubr.bf16.gmra.mrb[0].mxu0 0
    %v1110 = vpop.f32.mrb[0].mxu0
    %v1111 = vadd.f32 0.0, %v1110
    %v1112 = vpop.f32.mrb[0].mxu0
    %v1113 = vadd.f32 0.0, %v1112
    %v1114 = vpop.f32.mrb[0].mxu0
    %v1115 = vpop.f32.mrb[0].mxu0
    %1116 = vdwg.mxu0
    %v1121 = vrot.slane %v1070, 1
    %v1122 = vrot.slane %v1072, 1
    %v1123 = vrot.slane %v1111, 1
    %v1124 = vrot.slane %v1113, 1
    %v1133 = vadd.f32 %v711, %v1070
    %v1134 = vadd.f32 %v712, %v1072
    %v1135 = vadd.f32 %v713, %v1111
    %v1136 = vadd.f32 %v714, %v1113
    %v1137 = vadd.f32 %v715, %v1121
    %v1138 = vadd.f32 %v716, %v1122
    %v1139 = vadd.f32 %v717, %v1123
    %v1140 = vadd.f32 %v718, %v1124
    %v1141 = vxor.u32 %v1133, 2147483648
    %v1142 = vxor.u32 %v1137, 2147483648
    %v1143 = vmul.f32 %v1141, 1.442695
    %v1144 = vpow.pop %v1143
    %v1145 = vmul.f32 %v1142, 1.442695
    %v1146 = vpow.pop %v1145
    %v1147 = vadd.f32 %v1144, 1.0
    %v1148 = vadd.f32 %v1146, 1.0
    %v1149 = vrcp.pop %v1147
    %v1150 = vmul.f32 1.0, %v1149
    %v1151 = vrcp.pop %v1148
    %v1152 = vmul.f32 1.0, %v1151
    %v1153 = vxor.u32 %v1134, 2147483648
    %v1154 = vxor.u32 %v1138, 2147483648
    %v1155 = vmul.f32 %v1153, 1.442695
    %v1156 = vpow.pop %v1155
    %v1157 = vmul.f32 %v1154, 1.442695
    %v1158 = vpow.pop %v1157
    %v1159 = vadd.f32 %v1156, 1.0
    %v1160 = vadd.f32 %v1158, 1.0
    %v1161 = vrcp.pop %v1159
    %v1162 = vmul.f32 1.0, %v1161
    %v1163 = vrcp.pop %v1160
    %v1164 = vmul.f32 1.0, %v1163
    %v1165 = vtanh.pop %v1135
    %v1166 = vtanh.pop %v1139
    %v1167 = vxor.u32 %v1136, 2147483648
    %v1168 = vxor.u32 %v1140, 2147483648
    %v1169 = vmul.f32 %v1167, 1.442695
    %v1170 = vpow.pop %v1169
    %v1171 = vmul.f32 %v1168, 1.442695
    %v1172 = vpow.pop %v1171
    %v1173 = vadd.f32 %v1170, 1.0
    %v1174 = vadd.f32 %v1172, 1.0
    %v1175 = vrcp.pop %v1173
    %v1176 = vmul.f32 1.0, %v1175
    %v1177 = vrcp.pop %v1174
    %v1178 = vmul.f32 1.0, %v1177
    %v1179 = vmul.f32 %v1162, 0.0
    %v1180 = vmul.f32 %v1164, 0.0
    %v1181 = vmul.f32 %v1150, %v1165
    %v1182 = vmul.f32 %v1152, %v1166
    %v1183 = vadd.f32 %v1179, %v1181
    %v1184 = vadd.f32 %v1180, %v1182
    %v1185 = vtanh.pop %v1183
    %v1186 = vtanh.pop %v1184
    %v1187 = vmul.f32 %v1176, %v1185
    %v1188 = vmul.f32 %v1178, %v1186
    %v1191 = vrot.slane %v1188, 7
    %vm1192 = vcmask 1041409
    %v1193 = vsel %vm1192, %v1191, %v1187
    %v1195 = vpack.c.bf16 %v1193, %v1193
    %v1196 = vpack.c.bf16 0.0, 0.0
    %v1198 = vlaneseq
    %v1199 = vshrl.u32 %v1198, 7
    %v1200 = vsub.s32 0, %v1199
    %v1201 = vrot.slane %v1007, %v1200
    %v1202 = vlaneseq
    %v1203 = vshrl.u32 %v1202, 7
    %v1204 = vsub.s32 1, %v1203
    %v1205 = vrot.slane %v1007, %v1204
    %v1206 = vlaneseq
    %v1207 = vshrl.u32 %v1206, 7
    %v1208 = vsub.s32 2, %v1207
    %v1209 = vrot.slane %v1007, %v1208
    %v1210 = vlaneseq
    %v1211 = vshrl.u32 %v1210, 7
    %v1212 = vsub.s32 3, %v1211
    %v1213 = vrot.slane %v1007, %v1212
    %1218 = vmatprep.subr.bf16.mxu0 %v944
    %1219 = vmatpush1.bf16.msra.mxu0 %v943
    %1220 = vmatprep.subr.bf16.mxu0 %v948
    %1221 = vmatpush1.bf16.msra.mxu0 %v947
    %1222 = vmatprep.subr.bf16.mxu0 %v952
    %1223 = vmatpush1.bf16.msra.mxu0 %v951
    %1224 = vmatprep.subr.bf16.mxu0 %v956
    %1225 = vmatpush1.bf16.msra.mxu0 %v955
    %1226 = vmatprep.subr.bf16.mxu0 %v960
    %1227 = vmatpush1.bf16.msra.mxu0 %v959
    %1228 = vmatprep.subr.bf16.mxu0 %v964
    %1229 = vmatpush1.bf16.msra.mxu0 %v963
    %1230 = vmatprep.subr.bf16.mxu0 %v968
    %1231 = vmatpush1.bf16.msra.mxu0 %v967
    %1232 = vmatprep.subr.bf16.mxu0 %v972
    %1233 = vmatpush1.bf16.msra.mxu0 %v971
    %1234 = vmatprep.subr.bf16.mxu0 %v976
    %1235 = vmatpush1.bf16.msra.mxu0 %v975
    %1236 = vmatprep.subr.bf16.mxu0 %v980
    %1237 = vmatpush1.bf16.msra.mxu0 %v979
    %1238 = vmatprep.subr.bf16.mxu0 %v984
    %1239 = vmatpush1.bf16.msra.mxu0 %v983
    %1240 = vmatprep.subr.bf16.mxu0 %v988
    %1241 = vmatpush1.bf16.msra.mxu0 %v987
    %1242 = vmatprep.subr.bf16.mxu0 %v992
    %1243 = vmatpush1.bf16.msra.mxu0 %v991
    %1244 = vmatprep.subr.bf16.mxu0 %v996
    %1245 = vmatpush1.bf16.msra.mxu0 %v995
    %1246 = vmatprep.subr.bf16.mxu0 %v1000
    %1247 = vmatpush1.bf16.msra.mxu0 %v999
    %1248 = vmatprep.subr.bf16.mxu0 %v1004
    %1249 = vmatpush1.bf16.msra.mxu0 %v1003
    %1250 = vmatprep.mubr.bf16.mxu0 %v1196
    %1251 = vmatmul.mubr.bf16.gmra.mrb[0].mxu0 %v1195
    %v1252 = vpop.f32.mrb[0].mxu0
    %v1253 = vadd.f32 %v1201, %v1252
    %v1254 = vpop.f32.mrb[0].mxu0
    %v1255 = vadd.f32 %v1205, %v1254
    %v1256 = vpop.f32.mrb[0].mxu0
    %v1257 = vpop.f32.mrb[0].mxu0
    %1258 = vdwg.mxu0
    %1259 = vmatprep.subr.bf16.mxu0 %v946
    %1260 = vmatpush1.bf16.msra.mxu0 %v945
    %1261 = vmatprep.subr.bf16.mxu0 %v950
    %1262 = vmatpush1.bf16.msra.mxu0 %v949
    %1263 = vmatprep.subr.bf16.mxu0 %v954
    %1264 = vmatpush1.bf16.msra.mxu0 %v953
    %1265 = vmatprep.subr.bf16.mxu0 %v958
    %1266 = vmatpush1.bf16.msra.mxu0 %v957
    %1267 = vmatprep.subr.bf16.mxu0 %v962
    %1268 = vmatpush1.bf16.msra.mxu0 %v961
    %1269 = vmatprep.subr.bf16.mxu0 %v966
    %1270 = vmatpush1.bf16.msra.mxu0 %v965
    %1271 = vmatprep.subr.bf16.mxu0 %v970
    %1272 = vmatpush1.bf16.msra.mxu0 %v969
    %1273 = vmatprep.subr.bf16.mxu0 %v974
    %1274 = vmatpush1.bf16.msra.mxu0 %v973
    %1275 = vmatprep.subr.bf16.mxu0 %v978
    %1276 = vmatpush1.bf16.msra.mxu0 %v977
    %1277 = vmatprep.subr.bf16.mxu0 %v982
    %1278 = vmatpush1.bf16.msra.mxu0 %v981
    %1279 = vmatprep.subr.bf16.mxu0 %v986
    %1280 = vmatpush1.bf16.msra.mxu0 %v985
    %1281 = vmatprep.subr.bf16.mxu0 %v990
    %1282 = vmatpush1.bf16.msra.mxu0 %v989
    %1283 = vmatprep.subr.bf16.mxu0 %v994
    %1284 = vmatpush1.bf16.msra.mxu0 %v993
    %1285 = vmatprep.subr.bf16.mxu0 %v998
    %1286 = vmatpush1.bf16.msra.mxu0 %v997
    %1287 = vmatprep.subr.bf16.mxu0 %v1002
    %1288 = vmatpush1.bf16.msra.mxu0 %v1001
    %1289 = vmatprep.subr.bf16.mxu0 %v1006
    %1290 = vmatpush1.bf16.msra.mxu0 %v1005
    %1291 = vmatprep.mubr.bf16.mxu0 %v1196
    %1292 = vmatmul.mubr.bf16.gmra.mrb[0].mxu0 %v1195
    %v1293 = vpop.f32.mrb[0].mxu0
    %v1294 = vadd.f32 %v1209, %v1293
    %v1295 = vpop.f32.mrb[0].mxu0
    %v1296 = vadd.f32 %v1213, %v1295
    %v1297 = vpop.f32.mrb[0].mxu0
    %v1298 = vpop.f32.mrb[0].mxu0
    %1299 = vdwg.mxu0
    %v1300 = vxor.u32 %v1253, 2147483648
    %v1301 = vmul.f32 %v1300, 1.442695
    %v1302 = vpow.pop %v1301
    %v1303 = vadd.f32 %v1302, 1.0
    %v1304 = vrcp.pop %v1303
    %v1305 = vmul.f32 1.0, %v1304
    %v1306 = vxor.u32 %v1255, 2147483648
    %v1307 = vmul.f32 %v1306, 1.442695
    %v1308 = vpow.pop %v1307
    %v1309 = vadd.f32 %v1308, 1.0
    %v1310 = vrcp.pop %v1309
    %v1311 = vmul.f32 1.0, %v1310
    %v1312 = vtanh.pop %v1294
    %v1313 = vxor.u32 %v1296, 2147483648
    %v1314 = vmul.f32 %v1313, 1.442695
    %v1315 = vpow.pop %v1314
    %v1316 = vadd.f32 %v1315, 1.0
    %v1317 = vrcp.pop %v1316
    %v1318 = vmul.f32 1.0, %v1317
    %v1319 = vmul.f32 %v1311, 0.0
    %v1320 = vmul.f32 %v1305, %v1312
    %v1321 = vadd.f32 %v1319, %v1320
    %v1322 = vtanh.pop %v1321
    %v1323 = vmul.f32 %v1318, %v1322
    %v1324 = vsel %vm1034, 1, 0
    %1325 = vset.pattern.permute.xlu0 0
    %1326 = vperm.xlu0 %1325, %v1324
    %v1327 = vpop.permute.xlu0 %1326
    %vm1328 = vcmp.eq.s32.totalorder %v1327, 1
    %v1329 = vsel %vm1328, %v1193, 0.0
    %v1332 = vrot.slane %v1184, 7
    %v1333 = vsel %vm1192, %v1332, %v1183
    %v1335 = vsel %vm1328, %v1333, 0.0
    %v1336 = vsel %vm1328, %v1323, 0.0
    %v1337 = vsel %vm1328, %v1321, 0.0
    %v1338 = vpack.c.bf16 %v1336, %v1336
    %v1340 = vlaneseq
    %v1341 = vshrl.u32 %v1340, 7
    %v1342 = vsub.s32 0, %v1341
    %v1343 = vrot.slane %v1032, %v1342
    %1345 = vmatprep.subr.bf16.mxu0 0
    %1346 = vmatpush1.bf16.msra.mxu0 %v1024
    %1347 = vmatprep.subr.bf16.mxu0 0
    %1348 = vmatpush1.bf16.msra.mxu0 %v1025
    %1349 = vmatprep.subr.bf16.mxu0 0
    %1350 = vmatpush1.bf16.msra.mxu0 %v1026
    %1351 = vmatprep.subr.bf16.mxu0 0
    %1352 = vmatpush1.bf16.msra.mxu0 %v1027
    %1353 = vmatprep.subr.bf16.mxu0 0
    %1354 = vmatpush1.bf16.msra.mxu0 %v1028
    %1355 = vmatprep.subr.bf16.mxu0 0
    %1356 = vmatpush1.bf16.msra.mxu0 %v1029
    %1357 = vmatprep.subr.bf16.mxu0 0
    %1358 = vmatpush1.bf16.msra.mxu0 %v1030
    %1359 = vmatprep.subr.bf16.mxu0 0
    %1360 = vmatpush1.bf16.msra.mxu0 %v1031
    %1361 = vmatprep.subr.bf16.mxu0 0
    %1362 = vmatpush1.bf16.msra.mxu0 0
    %1363 = vmatprep.subr.bf16.mxu0 0
    %1364 = vmatpush1.bf16.msra.mxu0 0
    %1365 = vmatprep.subr.bf16.mxu0 0
    %1366 = vmatpush1.bf16.msra.mxu0 0
    %1367 = vmatprep.subr.bf16.mxu0 0
    %1368 = vmatpush1.bf16.msra.mxu0 0
    %1369 = vmatprep.subr.bf16.mxu0 0
    %1370 = vmatpush1.bf16.msra.mxu0 0
    %1371 = vmatprep.subr.bf16.mxu0 0
    %1372 = vmatpush1.bf16.msra.mxu0 0
    %1373 = vmatprep.subr.bf16.mxu0 0
    %1374 = vmatpush1.bf16.msra.mxu0 0
    %1375 = vmatprep.subr.bf16.mxu0 0
    %1376 = vmatpush1.bf16.msra.mxu0 0
    %1377 = vmatprep.mubr.bf16.mxu0 0
    %1378 = vmatmul.mubr.bf16.gmra.mrb[0].mxu0 %v1338
    %v1379 = vpop.f32.mrb[0].mxu0
    %v1380 = vadd.f32 %v1343, %v1379
    %v1381 = vpop.f32.mrb[0].mxu0
    %v1382 = vpop.f32.mrb[0].mxu0
    %v1383 = vpop.f32.mrb[0].mxu0
    %1384 = vdwg.mxu0
    %v1387 = vunpack.c.l.s4 1966171168
    %v1388 = vunpack.c.0.s8 %v1387
    %v1389 = vlaneseq
    %v1390 = vshrl.u32 %v1389, 7
    %v1391 = vsub.s32 %v1388, %v1390
    %v1392 = vrot.slane %v1380, %v1391
    %v1393 = vcombine.high %v1392, %v1392
    %v1395 = vunpack.c.l.s4 1966171168
    %v1396 = vunpack.c.0.s8 %v1395
    %v1397 = vlaneseq
    %v1398 = vshrl.u32 %v1397, 7
    %v1399 = vsub.s32 %v1396, %v1398
    %v1400 = vrot.slane %v1392, %v1399
    %v1402 = vunpack.c.l.s4 1966171168
    %v1403 = vunpack.c.0.s8 %v1402
    %v1404 = vlaneseq
    %v1405 = vshrl.u32 %v1404, 7
    %v1406 = vsub.s32 %v1403, %v1405
    %v1407 = vrot.slane %v1393, %v1406
    %vm1410 = vcmask 24576
    %1411 = vst.msk [vmem:[%s13] sm:$0x1] %vm1410, %v1400
    %1412 = vst.msk [vmem:[%s13 + $0x8] sm:$0x1] %vm1410, %v1407
    %vm1413 = vcmp.gt.s32.totalorder %v1033, 1
    %v1414 = vpack.c.bf16 %v1329, %v1329
    %1415 = vmatprep.subr.bf16.mxu0 %v784
    %1416 = vmatpush1.bf16.msra.mxu0 %v783
    %1417 = vmatprep.subr.bf16.mxu0 %v788
    %1418 = vmatpush1.bf16.msra.mxu0 %v787
    %1419 = vmatprep.subr.bf16.mxu0 %v792
    %1420 = vmatpush1.bf16.msra.mxu0 %v791
    %1421 = vmatprep.subr.bf16.mxu0 %v796
    %1422 = vmatpush1.bf16.msra.mxu0 %v795
    %1423 = vmatprep.subr.bf16.mxu0 %v800
    %1424 = vmatpush1.bf16.msra.mxu0 %v799
    %1425 = vmatprep.subr.bf16.mxu0 %v804
    %1426 = vmatpush1.bf16.msra.mxu0 %v803
    %1427 = vmatprep.subr.bf16.mxu0 %v808
    %1428 = vmatpush1.bf16.msra.mxu0 %v807
    %1429 = vmatprep.subr.bf16.mxu0 %v812
    %1430 = vmatpush1.bf16.msra.mxu0 %v811
    %1431 = vmatprep.subr.bf16.mxu0 0
    %1432 = vmatpush1.bf16.msra.mxu0 0
    %1433 = vmatprep.subr.bf16.mxu0 0
    %1434 = vmatpush1.bf16.msra.mxu0 0
    %1435 = vmatprep.subr.bf16.mxu0 0
    %1436 = vmatpush1.bf16.msra.mxu0 0
    %1437 = vmatprep.subr.bf16.mxu0 0
    %1438 = vmatpush1.bf16.msra.mxu0 0
    %1439 = vmatprep.subr.bf16.mxu0 0
    %1440 = vmatpush1.bf16.msra.mxu0 0
    %1441 = vmatprep.subr.bf16.mxu0 0
    %1442 = vmatpush1.bf16.msra.mxu0 0
    %1443 = vmatprep.subr.bf16.mxu0 0
    %1444 = vmatpush1.bf16.msra.mxu0 0
    %1445 = vmatprep.subr.bf16.mxu0 0
    %1446 = vmatpush1.bf16.msra.mxu0 0
    %1447 = vmatprep.mubr.bf16.mxu0 0
    %1448 = vmatmul.mubr.bf16.gmra.mrb[0].mxu0 %v1414
    %v1449 = vpop.f32.mrb[0].mxu0
    %v1450 = vadd.f32 0.0, %v1449
    %v1451 = vpop.f32.mrb[0].mxu0
    %v1452 = vadd.f32 0.0, %v1451
    %v1453 = vpop.f32.mrb[0].mxu0
    %v1454 = vpop.f32.mrb[0].mxu0
    %1455 = vdwg.mxu0
    %1456 = vmatprep.subr.bf16.mxu0 %v786
    %1457 = vmatpush1.bf16.msra.mxu0 %v785
    %1458 = vmatprep.subr.bf16.mxu0 %v790
    %1459 = vmatpush1.bf16.msra.mxu0 %v789
    %1460 = vmatprep.subr.bf16.mxu0 %v794
    %1461 = vmatpush1.bf16.msra.mxu0 %v793
    %1462 = vmatprep.subr.bf16.mxu0 %v798
    %1463 = vmatpush1.bf16.msra.mxu0 %v797
    %1464 = vmatprep.subr.bf16.mxu0 %v802
    %1465 = vmatpush1.bf16.msra.mxu0 %v801
    %1466 = vmatprep.subr.bf16.mxu0 %v806
    %1467 = vmatpush1.bf16.msra.mxu0 %v805
    %1468 = vmatprep.subr.bf16.mxu0 %v810
    %1469 = vmatpush1.bf16.msra.mxu0 %v809
    %1470 = vmatprep.subr.bf16.mxu0 %v814
    %1471 = vmatpush1.bf16.msra.mxu0 %v813
    %1472 = vmatprep.subr.bf16.mxu0 0
    %1473 = vmatpush1.bf16.msra.mxu0 0
    %1474 = vmatprep.subr.bf16.mxu0 0
    %1475 = vmatpush1.bf16.msra.mxu0 0
    %1476 = vmatprep.subr.bf16.mxu0 0
    %1477 = vmatpush1.bf16.msra.mxu0 0
    %1478 = vmatprep.subr.bf16.mxu0 0
    %1479 = vmatpush1.bf16.msra.mxu0 0
    %1480 = vmatprep.subr.bf16.mxu0 0
    %1481 = vmatpush1.bf16.msra.mxu0 0
    %1482 = vmatprep.subr.bf16.mxu0 0
    %1483 = vmatpush1.bf16.msra.mxu0 0
    %1484 = vmatprep.subr.bf16.mxu0 0
    %1485 = vmatpush1.bf16.msra.mxu0 0
    %1486 = vmatprep.subr.bf16.mxu0 0
    %1487 = vmatpush1.bf16.msra.mxu0 0
    %1488 = vmatprep.mubr.bf16.mxu0 0
    %1489 = vmatmul.mubr.bf16.gmra.mrb[0].mxu0 %v1414
    %v1490 = vpop.f32.mrb[0].mxu0
    %v1491 = vadd.f32 0.0, %v1490
    %v1492 = vpop.f32.mrb[0].mxu0
    %v1493 = vadd.f32 0.0, %v1492
    %v1494 = vpop.f32.mrb[0].mxu0
    %v1495 = vpop.f32.mrb[0].mxu0
    %1496 = vdwg.mxu0
    %v1501 = vrot.slane %v1450, 7
    %v1502 = vrot.slane %v1452, 7
    %v1503 = vrot.slane %v1491, 7
    %v1504 = vrot.slane %v1493, 7
    %v1513 = vadd.f32 %v711, %v1501
    %v1514 = vadd.f32 %v712, %v1502
    %v1515 = vadd.f32 %v713, %v1503
    %v1516 = vadd.f32 %v714, %v1504
    %v1517 = vadd.f32 %v715, %v1450
    %v1518 = vadd.f32 %v716, %v1452
    %v1519 = vadd.f32 %v717, %v1491
    %v1520 = vadd.f32 %v718, %v1493
    %v1521 = vxor.u32 %v1513, 2147483648
    %v1522 = vxor.u32 %v1517, 2147483648
    %v1523 = vmul.f32 %v1521, 1.442695
    %v1524 = vpow.pop %v1523
    %v1525 = vmul.f32 %v1522, 1.442695
    %v1526 = vpow.pop %v1525
    %v1527 = vadd.f32 %v1524, 1.0
    %v1528 = vadd.f32 %v1526, 1.0
    %v1529 = vrcp.pop %v1527
    %v1530 = vmul.f32 1.0, %v1529
    %v1531 = vrcp.pop %v1528
    %v1532 = vmul.f32 1.0, %v1531
    %v1533 = vxor.u32 %v1514, 2147483648
    %v1534 = vxor.u32 %v1518, 2147483648
    %v1535 = vmul.f32 %v1533, 1.442695
    %v1536 = vpow.pop %v1535
    %v1537 = vmul.f32 %v1534, 1.442695
    %v1538 = vpow.pop %v1537
    %v1539 = vadd.f32 %v1536, 1.0
    %v1540 = vadd.f32 %v1538, 1.0
    %v1541 = vrcp.pop %v1539
    %v1542 = vmul.f32 1.0, %v1541
    %v1543 = vrcp.pop %v1540
    %v1544 = vmul.f32 1.0, %v1543
    %v1545 = vtanh.pop %v1515
    %v1546 = vtanh.pop %v1519
    %v1547 = vxor.u32 %v1516, 2147483648
    %v1548 = vxor.u32 %v1520, 2147483648
    %v1549 = vmul.f32 %v1547, 1.442695
    %v1550 = vpow.pop %v1549
    %v1551 = vmul.f32 %v1548, 1.442695
    %v1552 = vpow.pop %v1551
    %v1553 = vadd.f32 %v1550, 1.0
    %v1554 = vadd.f32 %v1552, 1.0
    %v1555 = vrcp.pop %v1553
    %v1556 = vmul.f32 1.0, %v1555
    %v1557 = vrcp.pop %v1554
    %v1558 = vmul.f32 1.0, %v1557
    %v1560 = vrot.slane %v1335, 7
    %v1563 = vmul.f32 %v1542, %v1560
    %v1564 = vmul.f32 %v1544, %v1335
    %v1565 = vmul.f32 %v1530, %v1545
    %v1566 = vmul.f32 %v1532, %v1546
    %v1567 = vadd.f32 %v1563, %v1565
    %v1568 = vadd.f32 %v1564, %v1566
    %v1569 = vtanh.pop %v1567
    %v1570 = vtanh.pop %v1568
    %v1571 = vmul.f32 %v1556, %v1569
    %v1572 = vmul.f32 %v1558, %v1570
    %v1575 = vrot.slane %v1572, 7
    %vm1576 = vcmask 1042434
    %v1577 = vsel %vm1576, %v1575, %v1571
    %v1580 = vrot.slane %v1336, 7
    %v1582 = vpack.c.bf16 %v1577, %v1577
    %v1583 = vpack.c.bf16 %v1580, %v1580
    %v1585 = vshrl.u32 %v1582, 16
    %v1587 = vshll.u32 %v1582, 16
    %v1589 = vrot.slane %v1587, 1
    %v1590 = vor.u32 %v1585, %v1589
    %v1592 = vshrl.u32 %v1583, 16
    %v1594 = vshll.u32 %v1583, 16
    %v1596 = vrot.slane %v1594, 1
    %v1597 = vor.u32 %v1592, %v1596
    %1600 = vmatprep.subr.bf16.mxu0 %v944
    %1601 = vmatpush1.bf16.msra.mxu0 %v943
    %1602 = vmatprep.subr.bf16.mxu0 %v948
    %1603 = vmatpush1.bf16.msra.mxu0 %v947
    %1604 = vmatprep.subr.bf16.mxu0 %v952
    %1605 = vmatpush1.bf16.msra.mxu0 %v951
    %1606 = vmatprep.subr.bf16.mxu0 %v956
    %1607 = vmatpush1.bf16.msra.mxu0 %v955
    %1608 = vmatprep.subr.bf16.mxu0 %v960
    %1609 = vmatpush1.bf16.msra.mxu0 %v959
    %1610 = vmatprep.subr.bf16.mxu0 %v964
    %1611 = vmatpush1.bf16.msra.mxu0 %v963
    %1612 = vmatprep.subr.bf16.mxu0 %v968
    %1613 = vmatpush1.bf16.msra.mxu0 %v967
    %1614 = vmatprep.subr.bf16.mxu0 %v972
    %1615 = vmatpush1.bf16.msra.mxu0 %v971
    %1616 = vmatprep.subr.bf16.mxu0 %v976
    %1617 = vmatpush1.bf16.msra.mxu0 %v975
    %1618 = vmatprep.subr.bf16.mxu0 %v980
    %1619 = vmatpush1.bf16.msra.mxu0 %v979
    %1620 = vmatprep.subr.bf16.mxu0 %v984
    %1621 = vmatpush1.bf16.msra.mxu0 %v983
    %1622 = vmatprep.subr.bf16.mxu0 %v988
    %1623 = vmatpush1.bf16.msra.mxu0 %v987
    %1624 = vmatprep.subr.bf16.mxu0 %v992
    %1625 = vmatpush1.bf16.msra.mxu0 %v991
    %1626 = vmatprep.subr.bf16.mxu0 %v996
    %1627 = vmatpush1.bf16.msra.mxu0 %v995
    %1628 = vmatprep.subr.bf16.mxu0 %v1000
    %1629 = vmatpush1.bf16.msra.mxu0 %v999
    %1630 = vmatprep.subr.bf16.mxu0 %v1004
    %1631 = vmatpush1.bf16.msra.mxu0 %v1003
    %1632 = vmatprep.mubr.bf16.mxu0 %v1597
    %1633 = vmatmul.mubr.bf16.gmra.mrb[0].mxu0 %v1590
    %v1634 = vpop.f32.mrb[0].mxu0
    %v1635 = vadd.f32 %v1201, %v1634
    %v1636 = vpop.f32.mrb[0].mxu0
    %v1637 = vadd.f32 %v1205, %v1636
    %v1638 = vpop.f32.mrb[0].mxu0
    %v1639 = vpop.f32.mrb[0].mxu0
    %1640 = vdwg.mxu0
    %1641 = vmatprep.subr.bf16.mxu0 %v946
    %1642 = vmatpush1.bf16.msra.mxu0 %v945
    %1643 = vmatprep.subr.bf16.mxu0 %v950
    %1644 = vmatpush1.bf16.msra.mxu0 %v949
    %1645 = vmatprep.subr.bf16.mxu0 %v954
    %1646 = vmatpush1.bf16.msra.mxu0 %v953
    %1647 = vmatprep.subr.bf16.mxu0 %v958
    %1648 = vmatpush1.bf16.msra.mxu0 %v957
    %1649 = vmatprep.subr.bf16.mxu0 %v962
    %1650 = vmatpush1.bf16.msra.mxu0 %v961
    %1651 = vmatprep.subr.bf16.mxu0 %v966
    %1652 = vmatpush1.bf16.msra.mxu0 %v965
    %1653 = vmatprep.subr.bf16.mxu0 %v970
    %1654 = vmatpush1.bf16.msra.mxu0 %v969
    %1655 = vmatprep.subr.bf16.mxu0 %v974
    %1656 = vmatpush1.bf16.msra.mxu0 %v973
    %1657 = vmatprep.subr.bf16.mxu0 %v978
    %1658 = vmatpush1.bf16.msra.mxu0 %v977
    %1659 = vmatprep.subr.bf16.mxu0 %v982
    %1660 = vmatpush1.bf16.msra.mxu0 %v981
    %1661 = vmatprep.subr.bf16.mxu0 %v986
    %1662 = vmatpush1.bf16.msra.mxu0 %v985
    %1663 = vmatprep.subr.bf16.mxu0 %v990
    %1664 = vmatpush1.bf16.msra.mxu0 %v989
    %1665 = vmatprep.subr.bf16.mxu0 %v994
    %1666 = vmatpush1.bf16.msra.mxu0 %v993
    %1667 = vmatprep.subr.bf16.mxu0 %v998
    %1668 = vmatpush1.bf16.msra.mxu0 %v997
    %1669 = vmatprep.subr.bf16.mxu0 %v1002
    %1670 = vmatpush1.bf16.msra.mxu0 %v1001
    %1671 = vmatprep.subr.bf16.mxu0 %v1006
    %1672 = vmatpush1.bf16.msra.mxu0 %v1005
    %1673 = vmatprep.mubr.bf16.mxu0 %v1597
    %1674 = vmatmul.mubr.bf16.gmra.mrb[0].mxu0 %v1590
    %v1675 = vpop.f32.mrb[0].mxu0
    %v1676 = vadd.f32 %v1209, %v1675
    %v1677 = vpop.f32.mrb[0].mxu0
    %v1678 = vadd.f32 %v1213, %v1677
    %v1679 = vpop.f32.mrb[0].mxu0
    %v1680 = vpop.f32.mrb[0].mxu0
    %1681 = vdwg.mxu0
    %v1682 = vxor.u32 %v1635, 2147483648
    %v1683 = vmul.f32 %v1682, 1.442695
    %v1684 = vpow.pop %v1683
    %v1685 = vadd.f32 %v1684, 1.0
    %v1686 = vrcp.pop %v1685
    %v1687 = vmul.f32 1.0, %v1686
    %v1688 = vxor.u32 %v1637, 2147483648
    %v1689 = vmul.f32 %v1688, 1.442695
    %v1690 = vpow.pop %v1689
    %v1691 = vadd.f32 %v1690, 1.0
    %v1692 = vrcp.pop %v1691
    %v1693 = vmul.f32 1.0, %v1692
    %v1694 = vtanh.pop %v1676
    %v1695 = vxor.u32 %v1678, 2147483648
    %v1696 = vmul.f32 %v1695, 1.442695
    %v1697 = vpow.pop %v1696
    %v1698 = vadd.f32 %v1697, 1.0
    %v1699 = vrcp.pop %v1698
    %v1700 = vmul.f32 1.0, %v1699
    %v1701 = vmul.f32 %v1693, %v1337
    %v1702 = vmul.f32 %v1687, %v1694
    %v1703 = vadd.f32 %v1701, %v1702
    %v1704 = vtanh.pop %v1703
    %v1705 = vmul.f32 %v1700, %v1704
    %v1706 = vsel %vm1413, 1, 0
    %1707 = vset.pattern.permute.xlu0 0
    %1708 = vperm.xlu0 %1707, %v1706
    %v1709 = vpop.permute.xlu0 %1708
    %vm1710 = vcmp.eq.s32.totalorder %v1709, 1
    %v1711 = vrot.slane %v1571, 1
    %v1712 = vsel %vm1192, %v1572, %v1711
    %v1714 = vsel %vm1710, %v1712, %v1329
    %v1717 = vrot.slane %v1567, 1
    %v1718 = vsel %vm1192, %v1568, %v1717
    %v1720 = vsel %vm1710, %v1718, %v1335
    %v1721 = vsel %vm1710, %v1705, %v1336
    %v1722 = vsel %vm1710, %v1703, %v1337
    %v1723 = vsel %vm1710, %v1705, 0.0
    %v1724 = vpack.c.bf16 %v1723, %v1723
    %1725 = vmatprep.subr.bf16.mxu0 0
    %1726 = vmatpush1.bf16.msra.mxu0 %v1024
    %1727 = vmatprep.subr.bf16.mxu0 0
    %1728 = vmatpush1.bf16.msra.mxu0 %v1025
    %1729 = vmatprep.subr.bf16.mxu0 0
    %1730 = vmatpush1.bf16.msra.mxu0 %v1026
    %1731 = vmatprep.subr.bf16.mxu0 0
    %1732 = vmatpush1.bf16.msra.mxu0 %v1027
    %1733 = vmatprep.subr.bf16.mxu0 0
    %1734 = vmatpush1.bf16.msra.mxu0 %v1028
    %1735 = vmatprep.subr.bf16.mxu0 0
    %1736 = vmatpush1.bf16.msra.mxu0 %v1029
    %1737 = vmatprep.subr.bf16.mxu0 0
    %1738 = vmatpush1.bf16.msra.mxu0 %v1030
    %1739 = vmatprep.subr.bf16.mxu0 0
    %1740 = vmatpush1.bf16.msra.mxu0 %v1031
    %1741 = vmatprep.subr.bf16.mxu0 0
    %1742 = vmatpush1.bf16.msra.mxu0 0
    %1743 = vmatprep.subr.bf16.mxu0 0
    %1744 = vmatpush1.bf16.msra.mxu0 0
    %1745 = vmatprep.subr.bf16.mxu0 0
    %1746 = vmatpush1.bf16.msra.mxu0 0
    %1747 = vmatprep.subr.bf16.mxu0 0
    %1748 = vmatpush1.bf16.msra.mxu0 0
    %1749 = vmatprep.subr.bf16.mxu0 0
    %1750 = vmatpush1.bf16.msra.mxu0 0
    %1751 = vmatprep.subr.bf16.mxu0 0
    %1752 = vmatpush1.bf16.msra.mxu0 0
    %1753 = vmatprep.subr.bf16.mxu0 0
    %1754 = vmatpush1.bf16.msra.mxu0 0
    %1755 = vmatprep.subr.bf16.mxu0 0
    %1756 = vmatpush1.bf16.msra.mxu0 0
    %1757 = vmatprep.mubr.bf16.mxu0 0
    %1758 = vmatmul.mubr.bf16.gmra.mrb[0].mxu0 %v1724
    %v1759 = vpop.f32.mrb[0].mxu0
    %v1760 = vadd.f32 %v1343, %v1759
    %v1761 = vpop.f32.mrb[0].mxu0
    %v1762 = vpop.f32.mrb[0].mxu0
    %v1763 = vpop.f32.mrb[0].mxu0
    %1764 = vdwg.mxu0
    %v1767 = vunpack.c.l.s4 1966171168
    %v1768 = vunpack.c.0.s8 %v1767
    %v1769 = vlaneseq
    %v1770 = vshrl.u32 %v1769, 7
    %v1771 = vsub.s32 %v1768, %v1770
    %v1772 = vrot.slane %v1760, %v1771
    %v1773 = vcombine.high %v1772, %v1772
    %v1775 = vunpack.c.l.s4 1966171168
    %v1776 = vunpack.c.0.s8 %v1775
    %v1777 = vlaneseq
    %v1778 = vshrl.u32 %v1777, 7
    %v1779 = vsub.s32 %v1776, %v1778
    %v1780 = vrot.slane %v1772, %v1779
    %v1782 = vunpack.c.l.s4 1966171168
    %v1783 = vunpack.c.0.s8 %v1782
    %v1784 = vlaneseq
    %v1785 = vshrl.u32 %v1784, 7
    %v1786 = vsub.s32 %v1783, %v1785
    %v1787 = vrot.slane %v1773, %v1786
    %1790 = vst.msk [vmem:[%s13 + $0x1] sm:$0x1] %vm1410, %v1780
    %1791 = vst.msk [vmem:[%s13 + $0x9] sm:$0x1] %vm1410, %v1787
    %vm1792 = vcmp.gt.s32.totalorder %v1033, 2
    %v1793 = vpack.c.bf16 %v1714, %v1714
    %1794 = vmatprep.subr.bf16.mxu0 %v784
    %1795 = vmatpush1.bf16.msra.mxu0 %v783
    %1796 = vmatprep.subr.bf16.mxu0 %v788
    %1797 = vmatpush1.bf16.msra.mxu0 %v787
    %1798 = vmatprep.subr.bf16.mxu0 %v792
    %1799 = vmatpush1.bf16.msra.mxu0 %v791
    %1800 = vmatprep.subr.bf16.mxu0 %v796
    %1801 = vmatpush1.bf16.msra.mxu0 %v795
    %1802 = vmatprep.subr.bf16.mxu0 %v800
    %1803 = vmatpush1.bf16.msra.mxu0 %v799
    %1804 = vmatprep.subr.bf16.mxu0 %v804
    %1805 = vmatpush1.bf16.msra.mxu0 %v803
    %1806 = vmatprep.subr.bf16.mxu0 %v808
    %1807 = vmatpush1.bf16.msra.mxu0 %v807
    %1808 = vmatprep.subr.bf16.mxu0 %v812
    %1809 = vmatpush1.bf16.msra.mxu0 %v811
    %1810 = vmatprep.subr.bf16.mxu0 0
    %1811 = vmatpush1.bf16.msra.mxu0 0
    %1812 = vmatprep.subr.bf16.mxu0 0
    %1813 = vmatpush1.bf16.msra.mxu0 0
    %1814 = vmatprep.subr.bf16.mxu0 0
    %1815 = vmatpush1.bf16.msra.mxu0 0
    %1816 = vmatprep.subr.bf16.mxu0 0
    %1817 = vmatpush1.bf16.msra.mxu0 0
    %1818 = vmatprep.subr.bf16.mxu0 0
    %1819 = vmatpush1.bf16.msra.mxu0 0
    %1820 = vmatprep.subr.bf16.mxu0 0
    %1821 = vmatpush1.bf16.msra.mxu0 0
    %1822 = vmatprep.subr.bf16.mxu0 0
    %1823 = vmatpush1.bf16.msra.mxu0 0
    %1824 = vmatprep.subr.bf16.mxu0 0
    %1825 = vmatpush1.bf16.msra.mxu0 0
    %1826 = vmatprep.mubr.bf16.mxu0 0
    %1827 = vmatmul.mubr.bf16.gmra.mrb[0].mxu0 %v1793
    %v1828 = vpop.f32.mrb[0].mxu0
    %v1829 = vadd.f32 0.0, %v1828
    %v1830 = vpop.f32.mrb[0].mxu0
    %v1831 = vadd.f32 0.0, %v1830
    %v1832 = vpop.f32.mrb[0].mxu0
    %v1833 = vpop.f32.mrb[0].mxu0
    %1834 = vdwg.mxu0
    %1835 = vmatprep.subr.bf16.mxu0 %v786
    %1836 = vmatpush1.bf16.msra.mxu0 %v785
    %1837 = vmatprep.subr.bf16.mxu0 %v790
    %1838 = vmatpush1.bf16.msra.mxu0 %v789
    %1839 = vmatprep.subr.bf16.mxu0 %v794
    %1840 = vmatpush1.bf16.msra.mxu0 %v793
    %1841 = vmatprep.subr.bf16.mxu0 %v798
    %1842 = vmatpush1.bf16.msra.mxu0 %v797
    %1843 = vmatprep.subr.bf16.mxu0 %v802
    %1844 = vmatpush1.bf16.msra.mxu0 %v801
    %1845 = vmatprep.subr.bf16.mxu0 %v806
    %1846 = vmatpush1.bf16.msra.mxu0 %v805
    %1847 = vmatprep.subr.bf16.mxu0 %v810
    %1848 = vmatpush1.bf16.msra.mxu0 %v809
    %1849 = vmatprep.subr.bf16.mxu0 %v814
    %1850 = vmatpush1.bf16.msra.mxu0 %v813
    %1851 = vmatprep.subr.bf16.mxu0 0
    %1852 = vmatpush1.bf16.msra.mxu0 0
    %1853 = vmatprep.subr.bf16.mxu0 0
    %1854 = vmatpush1.bf16.msra.mxu0 0
    %1855 = vmatprep.subr.bf16.mxu0 0
    %1856 = vmatpush1.bf16.msra.mxu0 0
    %1857 = vmatprep.subr.bf16.mxu0 0
    %1858 = vmatpush1.bf16.msra.mxu0 0
    %1859 = vmatprep.subr.bf16.mxu0 0
    %1860 = vmatpush1.bf16.msra.mxu0 0
    %1861 = vmatprep.subr.bf16.mxu0 0
    %1862 = vmatpush1.bf16.msra.mxu0 0
    %1863 = vmatprep.subr.bf16.mxu0 0
    %1864 = vmatpush1.bf16.msra.mxu0 0
    %1865 = vmatprep.subr.bf16.mxu0 0
    %1866 = vmatpush1.bf16.msra.mxu0 0
    %1867 = vmatprep.mubr.bf16.mxu0 0
    %1868 = vmatmul.mubr.bf16.gmra.mrb[0].mxu0 %v1793
    %v1869 = vpop.f32.mrb[0].mxu0
    %v1870 = vadd.f32 0.0, %v1869
    %v1871 = vpop.f32.mrb[0].mxu0
    %v1872 = vadd.f32 0.0, %v1871
    %v1873 = vpop.f32.mrb[0].mxu0
    %v1874 = vpop.f32.mrb[0].mxu0
    %1875 = vdwg.mxu0
    %v1880 = vrot.slane %v1829, 6
    %v1881 = vrot.slane %v1831, 6
    %v1882 = vrot.slane %v1870, 6
    %v1883 = vrot.slane %v1872, 6
    %v1884 = vrot.slane %v1829, 7
    %v1885 = vrot.slane %v1831, 7
    %v1886 = vrot.slane %v1870, 7
    %v1887 = vrot.slane %v1872, 7
    %v1896 = vadd.f32 %v711, %v1880
    %v1897 = vadd.f32 %v712, %v1881
    %v1898 = vadd.f32 %v713, %v1882
    %v1899 = vadd.f32 %v714, %v1883
    %v1900 = vadd.f32 %v715, %v1884
    %v1901 = vadd.f32 %v716, %v1885
    %v1902 = vadd.f32 %v717, %v1886
    %v1903 = vadd.f32 %v718, %v1887
    %v1904 = vxor.u32 %v1896, 2147483648
    %v1905 = vxor.u32 %v1900, 2147483648
    %v1906 = vmul.f32 %v1904, 1.442695
    %v1907 = vpow.pop %v1906
    %v1908 = vmul.f32 %v1905, 1.442695
    %v1909 = vpow.pop %v1908
    %v1910 = vadd.f32 %v1907, 1.0
    %v1911 = vadd.f32 %v1909, 1.0
    %v1912 = vrcp.pop %v1910
    %v1913 = vmul.f32 1.0, %v1912
    %v1914 = vrcp.pop %v1911
    %v1915 = vmul.f32 1.0, %v1914
    %v1916 = vxor.u32 %v1897, 2147483648
    %v1917 = vxor.u32 %v1901, 2147483648
    %v1918 = vmul.f32 %v1916, 1.442695
    %v1919 = vpow.pop %v1918
    %v1920 = vmul.f32 %v1917, 1.442695
    %v1921 = vpow.pop %v1920
    %v1922 = vadd.f32 %v1919, 1.0
    %v1923 = vadd.f32 %v1921, 1.0
    %v1924 = vrcp.pop %v1922
    %v1925 = vmul.f32 1.0, %v1924
    %v1926 = vrcp.pop %v1923
    %v1927 = vmul.f32 1.0, %v1926
    %v1928 = vtanh.pop %v1898
    %v1929 = vtanh.pop %v1902
    %v1930 = vxor.u32 %v1899, 2147483648
    %v1931 = vxor.u32 %v1903, 2147483648
    %v1932 = vmul.f32 %v1930, 1.442695
    %v1933 = vpow.pop %v1932
    %v1934 = vmul.f32 %v1931, 1.442695
    %v1935 = vpow.pop %v1934
    %v1936 = vadd.f32 %v1933, 1.0
    %v1937 = vadd.f32 %v1935, 1.0
    %v1938 = vrcp.pop %v1936
    %v1939 = vmul.f32 1.0, %v1938
    %v1940 = vrcp.pop %v1937
    %v1941 = vmul.f32 1.0, %v1940
    %v1943 = vrot.slane %v1720, 6
    %v1944 = vrot.slane %v1720, 7
    %v1947 = vmul.f32 %v1925, %v1943
    %v1948 = vmul.f32 %v1927, %v1944
    %v1949 = vmul.f32 %v1913, %v1928
    %v1950 = vmul.f32 %v1915, %v1929
    %v1951 = vadd.f32 %v1947, %v1949
    %v1952 = vadd.f32 %v1948, %v1950
    %v1953 = vtanh.pop %v1951
    %v1954 = vtanh.pop %v1952
    %v1955 = vmul.f32 %v1939, %v1953
    %v1956 = vmul.f32 %v1941, %v1954
    %v1959 = vrot.slane %v1956, 7
    %vm1960 = vcmask 1043459
    %v1961 = vsel %vm1960, %v1959, %v1955
    %v1964 = vrot.slane %v1721, 6
    %v1966 = vpack.c.bf16 %v1961, %v1961
    %v1967 = vpack.c.bf16 %v1964, %v1964
    %v1970 = vrot.slane %v1966, 1
    %v1971 = vrot.slane %v1967, 1
    %1974 = vmatprep.subr.bf16.mxu0 %v944
    %1975 = vmatpush1.bf16.msra.mxu0 %v943
    %1976 = vmatprep.subr.bf16.mxu0 %v948
    %1977 = vmatpush1.bf16.msra.mxu0 %v947
    %1978 = vmatprep.subr.bf16.mxu0 %v952
    %1979 = vmatpush1.bf16.msra.mxu0 %v951
    %1980 = vmatprep.subr.bf16.mxu0 %v956
    %1981 = vmatpush1.bf16.msra.mxu0 %v955
    %1982 = vmatprep.subr.bf16.mxu0 %v960
    %1983 = vmatpush1.bf16.msra.mxu0 %v959
    %1984 = vmatprep.subr.bf16.mxu0 %v964
    %1985 = vmatpush1.bf16.msra.mxu0 %v963
    %1986 = vmatprep.subr.bf16.mxu0 %v968
    %1987 = vmatpush1.bf16.msra.mxu0 %v967
    %1988 = vmatprep.subr.bf16.mxu0 %v972
    %1989 = vmatpush1.bf16.msra.mxu0 %v971
    %1990 = vmatprep.subr.bf16.mxu0 %v976
    %1991 = vmatpush1.bf16.msra.mxu0 %v975
    %1992 = vmatprep.subr.bf16.mxu0 %v980
    %1993 = vmatpush1.bf16.msra.mxu0 %v979
    %1994 = vmatprep.subr.bf16.mxu0 %v984
    %1995 = vmatpush1.bf16.msra.mxu0 %v983
    %1996 = vmatprep.subr.bf16.mxu0 %v988
    %1997 = vmatpush1.bf16.msra.mxu0 %v987
    %1998 = vmatprep.subr.bf16.mxu0 %v992
    %1999 = vmatpush1.bf16.msra.mxu0 %v991
    %2000 = vmatprep.subr.bf16.mxu0 %v996
    %2001 = vmatpush1.bf16.msra.mxu0 %v995
    %2002 = vmatprep.subr.bf16.mxu0 %v1000
    %2003 = vmatpush1.bf16.msra.mxu0 %v999
    %2004 = vmatprep.subr.bf16.mxu0 %v1004
    %2005 = vmatpush1.bf16.msra.mxu0 %v1003
    %2006 = vmatprep.mubr.bf16.mxu0 %v1971
    %2007 = vmatmul.mubr.bf16.gmra.mrb[0].mxu0 %v1970
    %v2008 = vpop.f32.mrb[0].mxu0
    %v2009 = vadd.f32 %v1201, %v2008
    %v2010 = vpop.f32.mrb[0].mxu0
    %v2011 = vadd.f32 %v1205, %v2010
    %v2012 = vpop.f32.mrb[0].mxu0
    %v2013 = vpop.f32.mrb[0].mxu0
    %2014 = vdwg.mxu0
    %2015 = vmatprep.subr.bf16.mxu0 %v946
    %2016 = vmatpush1.bf16.msra.mxu0 %v945
    %2017 = vmatprep.subr.bf16.mxu0 %v950
    %2018 = vmatpush1.bf16.msra.mxu0 %v949
    %2019 = vmatprep.subr.bf16.mxu0 %v954
    %2020 = vmatpush1.bf16.msra.mxu0 %v953
    %2021 = vmatprep.subr.bf16.mxu0 %v958
    %2022 = vmatpush1.bf16.msra.mxu0 %v957
    %2023 = vmatprep.subr.bf16.mxu0 %v962
    %2024 = vmatpush1.bf16.msra.mxu0 %v961
    %2025 = vmatprep.subr.bf16.mxu0 %v966
    %2026 = vmatpush1.bf16.msra.mxu0 %v965
    %2027 = vmatprep.subr.bf16.mxu0 %v970
    %2028 = vmatpush1.bf16.msra.mxu0 %v969
    %2029 = vmatprep.subr.bf16.mxu0 %v974
    %2030 = vmatpush1.bf16.msra.mxu0 %v973
    %2031 = vmatprep.subr.bf16.mxu0 %v978
    %2032 = vmatpush1.bf16.msra.mxu0 %v977
    %2033 = vmatprep.subr.bf16.mxu0 %v982
    %2034 = vmatpush1.bf16.msra.mxu0 %v981
    %2035 = vmatprep.subr.bf16.mxu0 %v986
    %2036 = vmatpush1.bf16.msra.mxu0 %v985
    %2037 = vmatprep.subr.bf16.mxu0 %v990
    %2038 = vmatpush1.bf16.msra.mxu0 %v989
    %2039 = vmatprep.subr.bf16.mxu0 %v994
    %2040 = vmatpush1.bf16.msra.mxu0 %v993
    %2041 = vmatprep.subr.bf16.mxu0 %v998
    %2042 = vmatpush1.bf16.msra.mxu0 %v997
    %2043 = vmatprep.subr.bf16.mxu0 %v1002
    %2044 = vmatpush1.bf16.msra.mxu0 %v1001
    %2045 = vmatprep.subr.bf16.mxu0 %v1006
    %2046 = vmatpush1.bf16.msra.mxu0 %v1005
    %2047 = vmatprep.mubr.bf16.mxu0 %v1971
    %2048 = vmatmul.mubr.bf16.gmra.mrb[0].mxu0 %v1970
    %v2049 = vpop.f32.mrb[0].mxu0
    %v2050 = vadd.f32 %v1209, %v2049
    %v2051 = vpop.f32.mrb[0].mxu0
    %v2052 = vadd.f32 %v1213, %v2051
    %v2053 = vpop.f32.mrb[0].mxu0
    %v2054 = vpop.f32.mrb[0].mxu0
    %2055 = vdwg.mxu0
    %v2056 = vxor.u32 %v2009, 2147483648
    %v2057 = vmul.f32 %v2056, 1.442695
    %v2058 = vpow.pop %v2057
    %v2059 = vadd.f32 %v2058, 1.0
    %v2060 = vrcp.pop %v2059
    %v2061 = vmul.f32 1.0, %v2060
    %v2062 = vxor.u32 %v2011, 2147483648
    %v2063 = vmul.f32 %v2062, 1.442695
    %v2064 = vpow.pop %v2063
    %v2065 = vadd.f32 %v2064, 1.0
    %v2066 = vrcp.pop %v2065
    %v2067 = vmul.f32 1.0, %v2066
    %v2068 = vtanh.pop %v2050
    %v2069 = vxor.u32 %v2052, 2147483648
    %v2070 = vmul.f32 %v2069, 1.442695
    %v2071 = vpow.pop %v2070
    %v2072 = vadd.f32 %v2071, 1.0
    %v2073 = vrcp.pop %v2072
    %v2074 = vmul.f32 1.0, %v2073
    %v2075 = vmul.f32 %v2067, %v1722
    %v2076 = vmul.f32 %v2061, %v2068
    %v2077 = vadd.f32 %v2075, %v2076
    %v2078 = vtanh.pop %v2077
    %v2079 = vmul.f32 %v2074, %v2078
    %v2080 = vsel %vm1792, 1, 0
    %2081 = vset.pattern.permute.xlu0 0
    %2082 = vperm.xlu0 %2081, %v2080
    %v2083 = vpop.permute.xlu0 %2082
    %vm2084 = vcmp.eq.s32.totalorder %v2083, 1
    %v2085 = vrot.slane %v1955, 2
    %v2086 = vrot.slane %v1956, 1
    %v2087 = vsel %vm1192, %v2086, %v2085
    %v2089 = vsel %vm2084, %v2087, %v1714
    %v2092 = vrot.slane %v1951, 2
    %v2093 = vrot.slane %v1952, 1
    %v2094 = vsel %vm1192, %v2093, %v2092
    %v2096 = vsel %vm2084, %v2094, %v1720
    %v2097 = vsel %vm2084, %v2079, %v1721
    %v2098 = vsel %vm2084, %v2077, %v1722
    %v2099 = vsel %vm2084, %v2079, 0.0
    %v2100 = vpack.c.bf16 %v2099, %v2099
    %2101 = vmatprep.subr.bf16.mxu0 0
    %2102 = vmatpush1.bf16.msra.mxu0 %v1024
    %2103 = vmatprep.subr.bf16.mxu0 0
    %2104 = vmatpush1.bf16.msra.mxu0 %v1025
    %2105 = vmatprep.subr.bf16.mxu0 0
    %2106 = vmatpush1.bf16.msra.mxu0 %v1026
    %2107 = vmatprep.subr.bf16.mxu0 0
    %2108 = vmatpush1.bf16.msra.mxu0 %v1027
    %2109 = vmatprep.subr.bf16.mxu0 0
    %2110 = vmatpush1.bf16.msra.mxu0 %v1028
    %2111 = vmatprep.subr.bf16.mxu0 0
    %2112 = vmatpush1.bf16.msra.mxu0 %v1029
    %2113 = vmatprep.subr.bf16.mxu0 0
    %2114 = vmatpush1.bf16.msra.mxu0 %v1030
    %2115 = vmatprep.subr.bf16.mxu0 0
    %2116 = vmatpush1.bf16.msra.mxu0 %v1031
    %2117 = vmatprep.subr.bf16.mxu0 0
    %2118 = vmatpush1.bf16.msra.mxu0 0
    %2119 = vmatprep.subr.bf16.mxu0 0
    %2120 = vmatpush1.bf16.msra.mxu0 0
    %2121 = vmatprep.subr.bf16.mxu0 0
    %2122 = vmatpush1.bf16.msra.mxu0 0
    %2123 = vmatprep.subr.bf16.mxu0 0
    %2124 = vmatpush1.bf16.msra.mxu0 0
    %2125 = vmatprep.subr.bf16.mxu0 0
    %2126 = vmatpush1.bf16.msra.mxu0 0
    %2127 = vmatprep.subr.bf16.mxu0 0
    %2128 = vmatpush1.bf16.msra.mxu0 0
    %2129 = vmatprep.subr.bf16.mxu0 0
    %2130 = vmatpush1.bf16.msra.mxu0 0
    %2131 = vmatprep.subr.bf16.mxu0 0
    %2132 = vmatpush1.bf16.msra.mxu0 0
    %2133 = vmatprep.mubr.bf16.mxu0 0
    %2134 = vmatmul.mubr.bf16.gmra.mrb[0].mxu0 %v2100
    %v2135 = vpop.f32.mrb[0].mxu0
    %v2136 = vadd.f32 %v1343, %v2135
    %v2137 = vpop.f32.mrb[0].mxu0
    %v2138 = vpop.f32.mrb[0].mxu0
    %v2139 = vpop.f32.mrb[0].mxu0
    %2140 = vdwg.mxu0
    %v2143 = vunpack.c.l.s4 1966171168
    %v2144 = vunpack.c.0.s8 %v2143
    %v2145 = vlaneseq
    %v2146 = vshrl.u32 %v2145, 7
    %v2147 = vsub.s32 %v2144, %v2146
    %v2148 = vrot.slane %v2136, %v2147
    %v2149 = vcombine.high %v2148, %v2148
    %v2151 = vunpack.c.l.s4 1966171168
    %v2152 = vunpack.c.0.s8 %v2151
    %v2153 = vlaneseq
    %v2154 = vshrl.u32 %v2153, 7
    %v2155 = vsub.s32 %v2152, %v2154
    %v2156 = vrot.slane %v2148, %v2155
    %v2158 = vunpack.c.l.s4 1966171168
    %v2159 = vunpack.c.0.s8 %v2158
    %v2160 = vlaneseq
    %v2161 = vshrl.u32 %v2160, 7
    %v2162 = vsub.s32 %v2159, %v2161
    %v2163 = vrot.slane %v2149, %v2162
    %2166 = vst.msk [vmem:[%s13 + $0x2] sm:$0x1] %vm1410, %v2156
    %2167 = vst.msk [vmem:[%s13 + $0xa] sm:$0x1] %vm1410, %v2163
    %vm2168 = vcmp.gt.s32.totalorder %v1033, 3
    %v2169 = vpack.c.bf16 %v2089, %v2089
    %2170 = vmatprep.subr.bf16.mxu0 %v784
    %2171 = vmatpush1.bf16.msra.mxu0 %v783
    %2172 = vmatprep.subr.bf16.mxu0 %v788
    %2173 = vmatpush1.bf16.msra.mxu0 %v787
    %2174 = vmatprep.subr.bf16.mxu0 %v792
    %2175 = vmatpush1.bf16.msra.mxu0 %v791
    %2176 = vmatprep.subr.bf16.mxu0 %v796
    %2177 = vmatpush1.bf16.msra.mxu0 %v795
    %2178 = vmatprep.subr.bf16.mxu0 %v800
    %2179 = vmatpush1.bf16.msra.mxu0 %v799
    %2180 = vmatprep.subr.bf16.mxu0 %v804
    %2181 = vmatpush1.bf16.msra.mxu0 %v803
    %2182 = vmatprep.subr.bf16.mxu0 %v808
    %2183 = vmatpush1.bf16.msra.mxu0 %v807
    %2184 = vmatprep.subr.bf16.mxu0 %v812
    %2185 = vmatpush1.bf16.msra.mxu0 %v811
    %2186 = vmatprep.subr.bf16.mxu0 0
    %2187 = vmatpush1.bf16.msra.mxu0 0
    %2188 = vmatprep.subr.bf16.mxu0 0
    %2189 = vmatpush1.bf16.msra.mxu0 0
    %2190 = vmatprep.subr.bf16.mxu0 0
    %2191 = vmatpush1.bf16.msra.mxu0 0
    %2192 = vmatprep.subr.bf16.mxu0 0
    %2193 = vmatpush1.bf16.msra.mxu0 0
    %2194 = vmatprep.subr.bf16.mxu0 0
    %2195 = vmatpush1.bf16.msra.mxu0 0
    %2196 = vmatprep.subr.bf16.mxu0 0
    %2197 = vmatpush1.bf16.msra.mxu0 0
    %2198 = vmatprep.subr.bf16.mxu0 0
    %2199 = vmatpush1.bf16.msra.mxu0 0
    %2200 = vmatprep.subr.bf16.mxu0 0
    %2201 = vmatpush1.bf16.msra.mxu0 0
    %2202 = vmatprep.mubr.bf16.mxu0 0
    %2203 = vmatmul.mubr.bf16.gmra.mrb[0].mxu0 %v2169
    %v2204 = vpop.f32.mrb[0].mxu0
    %v2205 = vadd.f32 0.0, %v2204
    %v2206 = vpop.f32.mrb[0].mxu0
    %v2207 = vadd.f32 0.0, %v2206
    %v2208 = vpop.f32.mrb[0].mxu0
    %v2209 = vpop.f32.mrb[0].mxu0
    %2210 = vdwg.mxu0
    %2211 = vmatprep.subr.bf16.mxu0 %v786
    %2212 = vmatpush1.bf16.msra.mxu0 %v785
    %2213 = vmatprep.subr.bf16.mxu0 %v790
    %2214 = vmatpush1.bf16.msra.mxu0 %v789
    %2215 = vmatprep.subr.bf16.mxu0 %v794
    %2216 = vmatpush1.bf16.msra.mxu0 %v793
    %2217 = vmatprep.subr.bf16.mxu0 %v798
    %2218 = vmatpush1.bf16.msra.mxu0 %v797
    %2219 = vmatprep.subr.bf16.mxu0 %v802
    %2220 = vmatpush1.bf16.msra.mxu0 %v801
    %2221 = vmatprep.subr.bf16.mxu0 %v806
    %2222 = vmatpush1.bf16.msra.mxu0 %v805
    %2223 = vmatprep.subr.bf16.mxu0 %v810
    %2224 = vmatpush1.bf16.msra.mxu0 %v809
    %2225 = vmatprep.subr.bf16.mxu0 %v814
    %2226 = vmatpush1.bf16.msra.mxu0 %v813
    %2227 = vmatprep.subr.bf16.mxu0 0
    %2228 = vmatpush1.bf16.msra.mxu0 0
    %2229 = vmatprep.subr.bf16.mxu0 0
    %2230 = vmatpush1.bf16.msra.mxu0 0
    %2231 = vmatprep.subr.bf16.mxu0 0
    %2232 = vmatpush1.bf16.msra.mxu0 0
    %2233 = vmatprep.subr.bf16.mxu0 0
    %2234 = vmatpush1.bf16.msra.mxu0 0
    %2235 = vmatprep.subr.bf16.mxu0 0
    %2236 = vmatpush1.bf16.msra.mxu0 0
    %2237 = vmatprep.subr.bf16.mxu0 0
    %2238 = vmatpush1.bf16.msra.mxu0 0
    %2239 = vmatprep.subr.bf16.mxu0 0
    %2240 = vmatpush1.bf16.msra.mxu0 0
    %2241 = vmatprep.subr.bf16.mxu0 0
    %2242 = vmatpush1.bf16.msra.mxu0 0
    %2243 = vmatprep.mubr.bf16.mxu0 0
    %2244 = vmatmul.mubr.bf16.gmra.mrb[0].mxu0 %v2169
    %v2245 = vpop.f32.mrb[0].mxu0
    %v2246 = vadd.f32 0.0, %v2245
    %v2247 = vpop.f32.mrb[0].mxu0
    %v2248 = vadd.f32 0.0, %v2247
    %v2249 = vpop.f32.mrb[0].mxu0
    %v2250 = vpop.f32.mrb[0].mxu0
    %2251 = vdwg.mxu0
    %v2256 = vrot.slane %v2205, 5
    %v2257 = vrot.slane %v2207, 5
    %v2258 = vrot.slane %v2246, 5
    %v2259 = vrot.slane %v2248, 5
    %v2260 = vrot.slane %v2205, 6
    %v2261 = vrot.slane %v2207, 6
    %v2262 = vrot.slane %v2246, 6
    %v2263 = vrot.slane %v2248, 6
    %v2272 = vadd.f32 %v711, %v2256
    %v2273 = vadd.f32 %v712, %v2257
    %v2274 = vadd.f32 %v713, %v2258
    %v2275 = vadd.f32 %v714, %v2259
    %v2276 = vadd.f32 %v715, %v2260
    %v2277 = vadd.f32 %v716, %v2261
    %v2278 = vadd.f32 %v717, %v2262
    %v2279 = vadd.f32 %v718, %v2263
    %v2280 = vxor.u32 %v2272, 2147483648
    %v2281 = vxor.u32 %v2276, 2147483648
    %v2282 = vmul.f32 %v2280, 1.442695
    %v2283 = vpow.pop %v2282
    %v2284 = vmul.f32 %v2281, 1.442695
    %v2285 = vpow.pop %v2284
    %v2286 = vadd.f32 %v2283, 1.0
    %v2287 = vadd.f32 %v2285, 1.0
    %v2288 = vrcp.pop %v2286
    %v2289 = vmul.f32 1.0, %v2288
    %v2290 = vrcp.pop %v2287
    %v2291 = vmul.f32 1.0, %v2290
    %v2292 = vxor.u32 %v2273, 2147483648
    %v2293 = vxor.u32 %v2277, 2147483648
    %v2294 = vmul.f32 %v2292, 1.442695
    %v2295 = vpow.pop %v2294
    %v2296 = vmul.f32 %v2293, 1.442695
    %v2297 = vpow.pop %v2296
    %v2298 = vadd.f32 %v2295, 1.0
    %v2299 = vadd.f32 %v2297, 1.0
    %v2300 = vrcp.pop %v2298
    %v2301 = vmul.f32 1.0, %v2300
    %v2302 = vrcp.pop %v2299
    %v2303 = vmul.f32 1.0, %v2302
    %v2304 = vtanh.pop %v2274
    %v2305 = vtanh.pop %v2278
    %v2306 = vxor.u32 %v2275, 2147483648
    %v2307 = vxor.u32 %v2279, 2147483648
    %v2308 = vmul.f32 %v2306, 1.442695
    %v2309 = vpow.pop %v2308
    %v2310 = vmul.f32 %v2307, 1.442695
    %v2311 = vpow.pop %v2310
    %v2312 = vadd.f32 %v2309, 1.0
    %v2313 = vadd.f32 %v2311, 1.0
    %v2314 = vrcp.pop %v2312
    %v2315 = vmul.f32 1.0, %v2314
    %v2316 = vrcp.pop %v2313
    %v2317 = vmul.f32 1.0, %v2316
    %v2319 = vrot.slane %v2096, 5
    %v2320 = vrot.slane %v2096, 6
    %v2323 = vmul.f32 %v2301, %v2319
    %v2324 = vmul.f32 %v2303, %v2320
    %v2325 = vmul.f32 %v2289, %v2304
    %v2326 = vmul.f32 %v2291, %v2305
    %v2327 = vadd.f32 %v2323, %v2325
    %v2328 = vadd.f32 %v2324, %v2326
    %v2329 = vtanh.pop %v2327
    %v2330 = vtanh.pop %v2328
    %v2331 = vmul.f32 %v2315, %v2329
    %v2332 = vmul.f32 %v2317, %v2330
    %v2335 = vrot.slane %v2332, 7
    %vm2336 = vcmask 1044484
    %v2337 = vsel %vm2336, %v2335, %v2331
    %v2340 = vrot.slane %v2097, 5
    %v2342 = vpack.c.bf16 %v2337, %v2337
    %v2343 = vpack.c.bf16 %v2340, %v2340
    %v2345 = vshrl.u32 %v2342, 16
    %v2347 = vrot.slane %v2345, 1
    %v2348 = vshll.u32 %v2342, 16
    %v2350 = vrot.slane %v2348, 2
    %v2351 = vor.u32 %v2347, %v2350
    %v2353 = vshrl.u32 %v2343, 16
    %v2355 = vrot.slane %v2353, 1
    %v2356 = vshll.u32 %v2343, 16
    %v2358 = vrot.slane %v2356, 2
    %v2359 = vor.u32 %v2355, %v2358
    %2362 = vmatprep.subr.bf16.mxu0 %v944
    %2363 = vmatpush1.bf16.msra.mxu0 %v943
    %2364 = vmatprep.subr.bf16.mxu0 %v948
    %2365 = vmatpush1.bf16.msra.mxu0 %v947
    %2366 = vmatprep.subr.bf16.mxu0 %v952
    %2367 = vmatpush1.bf16.msra.mxu0 %v951
    %2368 = vmatprep.subr.bf16.mxu0 %v956
    %2369 = vmatpush1.bf16.msra.mxu0 %v955
    %2370 = vmatprep.subr.bf16.mxu0 %v960
    %2371 = vmatpush1.bf16.msra.mxu0 %v959
    %2372 = vmatprep.subr.bf16.mxu0 %v964
    %2373 = vmatpush1.bf16.msra.mxu0 %v963
    %2374 = vmatprep.subr.bf16.mxu0 %v968
    %2375 = vmatpush1.bf16.msra.mxu0 %v967
    %2376 = vmatprep.subr.bf16.mxu0 %v972
    %2377 = vmatpush1.bf16.msra.mxu0 %v971
    %2378 = vmatprep.subr.bf16.mxu0 %v976
    %2379 = vmatpush1.bf16.msra.mxu0 %v975
    %2380 = vmatprep.subr.bf16.mxu0 %v980
    %2381 = vmatpush1.bf16.msra.mxu0 %v979
    %2382 = vmatprep.subr.bf16.mxu0 %v984
    %2383 = vmatpush1.bf16.msra.mxu0 %v983
    %2384 = vmatprep.subr.bf16.mxu0 %v988
    %2385 = vmatpush1.bf16.msra.mxu0 %v987
    %2386 = vmatprep.subr.bf16.mxu0 %v992
    %2387 = vmatpush1.bf16.msra.mxu0 %v991
    %2388 = vmatprep.subr.bf16.mxu0 %v996
    %2389 = vmatpush1.bf16.msra.mxu0 %v995
    %2390 = vmatprep.subr.bf16.mxu0 %v1000
    %2391 = vmatpush1.bf16.msra.mxu0 %v999
    %2392 = vmatprep.subr.bf16.mxu0 %v1004
    %2393 = vmatpush1.bf16.msra.mxu0 %v1003
    %2394 = vmatprep.mubr.bf16.mxu0 %v2359
    %2395 = vmatmul.mubr.bf16.gmra.mrb[0].mxu0 %v2351
    %v2396 = vpop.f32.mrb[0].mxu0
    %v2397 = vadd.f32 %v1201, %v2396
    %v2398 = vpop.f32.mrb[0].mxu0
    %v2399 = vadd.f32 %v1205, %v2398
    %v2400 = vpop.f32.mrb[0].mxu0
    %v2401 = vpop.f32.mrb[0].mxu0
    %2402 = vdwg.mxu0
    %2403 = vmatprep.subr.bf16.mxu0 %v946
    %2404 = vmatpush1.bf16.msra.mxu0 %v945
    %2405 = vmatprep.subr.bf16.mxu0 %v950
    %2406 = vmatpush1.bf16.msra.mxu0 %v949
    %2407 = vmatprep.subr.bf16.mxu0 %v954
    %2408 = vmatpush1.bf16.msra.mxu0 %v953
    %2409 = vmatprep.subr.bf16.mxu0 %v958
    %2410 = vmatpush1.bf16.msra.mxu0 %v957
    %2411 = vmatprep.subr.bf16.mxu0 %v962
    %2412 = vmatpush1.bf16.msra.mxu0 %v961
    %2413 = vmatprep.subr.bf16.mxu0 %v966
    %2414 = vmatpush1.bf16.msra.mxu0 %v965
    %2415 = vmatprep.subr.bf16.mxu0 %v970
    %2416 = vmatpush1.bf16.msra.mxu0 %v969
    %2417 = vmatprep.subr.bf16.mxu0 %v974
    %2418 = vmatpush1.bf16.msra.mxu0 %v973
    %2419 = vmatprep.subr.bf16.mxu0 %v978
    %2420 = vmatpush1.bf16.msra.mxu0 %v977
    %2421 = vmatprep.subr.bf16.mxu0 %v982
    %2422 = vmatpush1.bf16.msra.mxu0 %v981
    %2423 = vmatprep.subr.bf16.mxu0 %v986
    %2424 = vmatpush1.bf16.msra.mxu0 %v985
    %2425 = vmatprep.subr.bf16.mxu0 %v990
    %2426 = vmatpush1.bf16.msra.mxu0 %v989
    %2427 = vmatprep.subr.bf16.mxu0 %v994
    %2428 = vmatpush1.bf16.msra.mxu0 %v993
    %2429 = vmatprep.subr.bf16.mxu0 %v998
    %2430 = vmatpush1.bf16.msra.mxu0 %v997
    %2431 = vmatprep.subr.bf16.mxu0 %v1002
    %2432 = vmatpush1.bf16.msra.mxu0 %v1001
    %2433 = vmatprep.subr.bf16.mxu0 %v1006
    %2434 = vmatpush1.bf16.msra.mxu0 %v1005
    %2435 = vmatprep.mubr.bf16.mxu0 %v2359
    %2436 = vmatmul.mubr.bf16.gmra.mrb[0].mxu0 %v2351
    %v2437 = vpop.f32.mrb[0].mxu0
    %v2438 = vadd.f32 %v1209, %v2437
    %v2439 = vpop.f32.mrb[0].mxu0
    %v2440 = vadd.f32 %v1213, %v2439
    %v2441 = vpop.f32.mrb[0].mxu0
    %v2442 = vpop.f32.mrb[0].mxu0
    %2443 = vdwg.mxu0
    %v2444 = vxor.u32 %v2397, 2147483648
    %v2445 = vmul.f32 %v2444, 1.442695
    %v2446 = vpow.pop %v2445
    %v2447 = vadd.f32 %v2446, 1.0
    %v2448 = vrcp.pop %v2447
    %v2449 = vmul.f32 1.0, %v2448
    %v2450 = vxor.u32 %v2399, 2147483648
    %v2451 = vmul.f32 %v2450, 1.442695
    %v2452 = vpow.pop %v2451
    %v2453 = vadd.f32 %v2452, 1.0
    %v2454 = vrcp.pop %v2453
    %v2455 = vmul.f32 1.0, %v2454
    %v2456 = vtanh.pop %v2438
    %v2457 = vxor.u32 %v2440, 2147483648
    %v2458 = vmul.f32 %v2457, 1.442695
    %v2459 = vpow.pop %v2458
    %v2460 = vadd.f32 %v2459, 1.0
    %v2461 = vrcp.pop %v2460
    %v2462 = vmul.f32 1.0, %v2461
    %v2463 = vmul.f32 %v2455, %v2098
    %v2464 = vmul.f32 %v2449, %v2456
    %v2465 = vadd.f32 %v2463, %v2464
    %v2466 = vtanh.pop %v2465
    %v2467 = vmul.f32 %v2462, %v2466
    %v2468 = vsel %vm2168, 1, 0
    %2469 = vset.pattern.permute.xlu0 0
    %2470 = vperm.xlu0 %2469, %v2468
    %v2471 = vpop.permute.xlu0 %2470
    %vm2472 = vcmp.eq.s32.totalorder %v2471, 1
    %v2473 = vrot.slane %v2331, 3
    %v2474 = vrot.slane %v2332, 2
    %v2475 = vsel %vm1192, %v2474, %v2473
    %v2477 = vsel %vm2472, %v2475, %v2089
    %v2480 = vrot.slane %v2327, 3
    %v2481 = vrot.slane %v2328, 2
    %v2482 = vsel %vm1192, %v2481, %v2480
    %v2484 = vsel %vm2472, %v2482, %v2096
    %v2485 = vsel %vm2472, %v2467, %v2097
    %v2486 = vsel %vm2472, %v2465, %v2098
    %v2487 = vsel %vm2472, %v2467, 0.0
    %v2488 = vpack.c.bf16 %v2487, %v2487
    %2489 = vmatprep.subr.bf16.mxu0 0
    %2490 = vmatpush1.bf16.msra.mxu0 %v1024
    %2491 = vmatprep.subr.bf16.mxu0 0
    %2492 = vmatpush1.bf16.msra.mxu0 %v1025
    %2493 = vmatprep.subr.bf16.mxu0 0
    %2494 = vmatpush1.bf16.msra.mxu0 %v1026
    %2495 = vmatprep.subr.bf16.mxu0 0
    %2496 = vmatpush1.bf16.msra.mxu0 %v1027
    %2497 = vmatprep.subr.bf16.mxu0 0
    %2498 = vmatpush1.bf16.msra.mxu0 %v1028
    %2499 = vmatprep.subr.bf16.mxu0 0
    %2500 = vmatpush1.bf16.msra.mxu0 %v1029
    %2501 = vmatprep.subr.bf16.mxu0 0
    %2502 = vmatpush1.bf16.msra.mxu0 %v1030
    %2503 = vmatprep.subr.bf16.mxu0 0
    %2504 = vmatpush1.bf16.msra.mxu0 %v1031
    %2505 = vmatprep.subr.bf16.mxu0 0
    %2506 = vmatpush1.bf16.msra.mxu0 0
    %2507 = vmatprep.subr.bf16.mxu0 0
    %2508 = vmatpush1.bf16.msra.mxu0 0
    %2509 = vmatprep.subr.bf16.mxu0 0
    %2510 = vmatpush1.bf16.msra.mxu0 0
    %2511 = vmatprep.subr.bf16.mxu0 0
    %2512 = vmatpush1.bf16.msra.mxu0 0
    %2513 = vmatprep.subr.bf16.mxu0 0
    %2514 = vmatpush1.bf16.msra.mxu0 0
    %2515 = vmatprep.subr.bf16.mxu0 0
    %2516 = vmatpush1.bf16.msra.mxu0 0
    %2517 = vmatprep.subr.bf16.mxu0 0
    %2518 = vmatpush1.bf16.msra.mxu0 0
    %2519 = vmatprep.subr.bf16.mxu0 0
    %2520 = vmatpush1.bf16.msra.mxu0 0
    %2521 = vmatprep.mubr.bf16.mxu0 0
    %2522 = vmatmul.mubr.bf16.gmra.mrb[0].mxu0 %v2488
    %v2523 = vpop.f32.mrb[0].mxu0
    %v2524 = vadd.f32 %v1343, %v2523
    %v2525 = vpop.f32.mrb[0].mxu0
    %v2526 = vpop.f32.mrb[0].mxu0
    %v2527 = vpop.f32.mrb[0].mxu0
    %2528 = vdwg.mxu0
    %v2531 = vunpack.c.l.s4 1966171168
    %v2532 = vunpack.c.0.s8 %v2531
    %v2533 = vlaneseq
    %v2534 = vshrl.u32 %v2533, 7
    %v2535 = vsub.s32 %v2532, %v2534
    %v2536 = vrot.slane %v2524, %v2535
    %v2537 = vcombine.high %v2536, %v2536
    %v2539 = vunpack.c.l.s4 1966171168
    %v2540 = vunpack.c.0.s8 %v2539
    %v2541 = vlaneseq
    %v2542 = vshrl.u32 %v2541, 7
    %v2543 = vsub.s32 %v2540, %v2542
    %v2544 = vrot.slane %v2536, %v2543
    %v2546 = vunpack.c.l.s4 1966171168
    %v2547 = vunpack.c.0.s8 %v2546
    %v2548 = vlaneseq
    %v2549 = vshrl.u32 %v2548, 7
    %v2550 = vsub.s32 %v2547, %v2549
    %v2551 = vrot.slane %v2537, %v2550
    %2554 = vst.msk [vmem:[%s13 + $0x3] sm:$0x1] %vm1410, %v2544
    %2555 = vst.msk [vmem:[%s13 + $0xb] sm:$0x1] %vm1410, %v2551
    %vm2556 = vcmp.gt.s32.totalorder %v1033, 4
    %v2557 = vpack.c.bf16 %v2477, %v2477
    %2558 = vmatprep.subr.bf16.mxu0 %v784
    %2559 = vmatpush1.bf16.msra.mxu0 %v783
    %2560 = vmatprep.subr.bf16.mxu0 %v788
    %2561 = vmatpush1.bf16.msra.mxu0 %v787
    %2562 = vmatprep.subr.bf16.mxu0 %v792
    %2563 = vmatpush1.bf16.msra.mxu0 %v791
    %2564 = vmatprep.subr.bf16.mxu0 %v796
    %2565 = vmatpush1.bf16.msra.mxu0 %v795
    %2566 = vmatprep.subr.bf16.mxu0 %v800
    %2567 = vmatpush1.bf16.msra.mxu0 %v799
    %2568 = vmatprep.subr.bf16.mxu0 %v804
    %2569 = vmatpush1.bf16.msra.mxu0 %v803
    %2570 = vmatprep.subr.bf16.mxu0 %v808
    %2571 = vmatpush1.bf16.msra.mxu0 %v807
    %2572 = vmatprep.subr.bf16.mxu0 %v812
    %2573 = vmatpush1.bf16.msra.mxu0 %v811
    %2574 = vmatprep.subr.bf16.mxu0 0
    %2575 = vmatpush1.bf16.msra.mxu0 0
    %2576 = vmatprep.subr.bf16.mxu0 0
    %2577 = vmatpush1.bf16.msra.mxu0 0
    %2578 = vmatprep.subr.bf16.mxu0 0
    %2579 = vmatpush1.bf16.msra.mxu0 0
    %2580 = vmatprep.subr.bf16.mxu0 0
    %2581 = vmatpush1.bf16.msra.mxu0 0
    %2582 = vmatprep.subr.bf16.mxu0 0
    %2583 = vmatpush1.bf16.msra.mxu0 0
    %2584 = vmatprep.subr.bf16.mxu0 0
    %2585 = vmatpush1.bf16.msra.mxu0 0
    %2586 = vmatprep.subr.bf16.mxu0 0
    %2587 = vmatpush1.bf16.msra.mxu0 0
    %2588 = vmatprep.subr.bf16.mxu0 0
    %2589 = vmatpush1.bf16.msra.mxu0 0
    %2590 = vmatprep.mubr.bf16.mxu0 0
    %2591 = vmatmul.mubr.bf16.gmra.mrb[0].mxu0 %v2557
    %v2592 = vpop.f32.mrb[0].mxu0
    %v2593 = vadd.f32 0.0, %v2592
    %v2594 = vpop.f32.mrb[0].mxu0
    %v2595 = vadd.f32 0.0, %v2594
    %v2596 = vpop.f32.mrb[0].mxu0
    %v2597 = vpop.f32.mrb[0].mxu0
    %2598 = vdwg.mxu0
    %2599 = vmatprep.subr.bf16.mxu0 %v786
    %2600 = vmatpush1.bf16.msra.mxu0 %v785
    %2601 = vmatprep.subr.bf16.mxu0 %v790
    %2602 = vmatpush1.bf16.msra.mxu0 %v789
    %2603 = vmatprep.subr.bf16.mxu0 %v794
    %2604 = vmatpush1.bf16.msra.mxu0 %v793
    %2605 = vmatprep.subr.bf16.mxu0 %v798
    %2606 = vmatpush1.bf16.msra.mxu0 %v797
    %2607 = vmatprep.subr.bf16.mxu0 %v802
    %2608 = vmatpush1.bf16.msra.mxu0 %v801
    %2609 = vmatprep.subr.bf16.mxu0 %v806
    %2610 = vmatpush1.bf16.msra.mxu0 %v805
    %2611 = vmatprep.subr.bf16.mxu0 %v810
    %2612 = vmatpush1.bf16.msra.mxu0 %v809
    %2613 = vmatprep.subr.bf16.mxu0 %v814
    %2614 = vmatpush1.bf16.msra.mxu0 %v813
    %2615 = vmatprep.subr.bf16.mxu0 0
    %2616 = vmatpush1.bf16.msra.mxu0 0
    %2617 = vmatprep.subr.bf16.mxu0 0
    %2618 = vmatpush1.bf16.msra.mxu0 0
    %2619 = vmatprep.subr.bf16.mxu0 0
    %2620 = vmatpush1.bf16.msra.mxu0 0
    %2621 = vmatprep.subr.bf16.mxu0 0
    %2622 = vmatpush1.bf16.msra.mxu0 0
    %2623 = vmatprep.subr.bf16.mxu0 0
    %2624 = vmatpush1.bf16.msra.mxu0 0
    %2625 = vmatprep.subr.bf16.mxu0 0
    %2626 = vmatpush1.bf16.msra.mxu0 0
    %2627 = vmatprep.subr.bf16.mxu0 0
    %2628 = vmatpush1.bf16.msra.mxu0 0
    %2629 = vmatprep.subr.bf16.mxu0 0
    %2630 = vmatpush1.bf16.msra.mxu0 0
    %2631 = vmatprep.mubr.bf16.mxu0 0
    %2632 = vmatmul.mubr.bf16.gmra.mrb[0].mxu0 %v2557
    %v2633 = vpop.f32.mrb[0].mxu0
    %v2634 = vadd.f32 0.0, %v2633
    %v2635 = vpop.f32.mrb[0].mxu0
    %v2636 = vadd.f32 0.0, %v2635
    %v2637 = vpop.f32.mrb[0].mxu0
    %v2638 = vpop.f32.mrb[0].mxu0
    %2639 = vdwg.mxu0
    %v2644 = vrot.slane %v2593, 4
    %v2645 = vrot.slane %v2595, 4
    %v2646 = vrot.slane %v2634, 4
    %v2647 = vrot.slane %v2636, 4
    %v2648 = vrot.slane %v2593, 5
    %v2649 = vrot.slane %v2595, 5
    %v2650 = vrot.slane %v2634, 5
    %v2651 = vrot.slane %v2636, 5
    %v2660 = vadd.f32 %v711, %v2644
    %v2661 = vadd.f32 %v712, %v2645
    %v2662 = vadd.f32 %v713, %v2646
    %v2663 = vadd.f32 %v714, %v2647
    %v2664 = vadd.f32 %v715, %v2648
    %v2665 = vadd.f32 %v716, %v2649
    %v2666 = vadd.f32 %v717, %v2650
    %v2667 = vadd.f32 %v718, %v2651
    %v2668 = vxor.u32 %v2660, 2147483648
    %v2669 = vxor.u32 %v2664, 2147483648
    %v2670 = vmul.f32 %v2668, 1.442695
    %v2671 = vpow.pop %v2670
    %v2672 = vmul.f32 %v2669, 1.442695
    %v2673 = vpow.pop %v2672
    %v2674 = vadd.f32 %v2671, 1.0
    %v2675 = vadd.f32 %v2673, 1.0
    %v2676 = vrcp.pop %v2674
    %v2677 = vmul.f32 1.0, %v2676
    %v2678 = vrcp.pop %v2675
    %v2679 = vmul.f32 1.0, %v2678
    %v2680 = vxor.u32 %v2661, 2147483648
    %v2681 = vxor.u32 %v2665, 2147483648
    %v2682 = vmul.f32 %v2680, 1.442695
    %v2683 = vpow.pop %v2682
    %v2684 = vmul.f32 %v2681, 1.442695
    %v2685 = vpow.pop %v2684
    %v2686 = vadd.f32 %v2683, 1.0
    %v2687 = vadd.f32 %v2685, 1.0
    %v2688 = vrcp.pop %v2686
    %v2689 = vmul.f32 1.0, %v2688
    %v2690 = vrcp.pop %v2687
    %v2691 = vmul.f32 1.0, %v2690
    %v2692 = vtanh.pop %v2662
    %v2693 = vtanh.pop %v2666
    %v2694 = vxor.u32 %v2663, 2147483648
    %v2695 = vxor.u32 %v2667, 2147483648
    %v2696 = vmul.f32 %v2694, 1.442695
    %v2697 = vpow.pop %v2696
    %v2698 = vmul.f32 %v2695, 1.442695
    %v2699 = vpow.pop %v2698
    %v2700 = vadd.f32 %v2697, 1.0
    %v2701 = vadd.f32 %v2699, 1.0
    %v2702 = vrcp.pop %v2700
    %v2703 = vmul.f32 1.0, %v2702
    %v2704 = vrcp.pop %v2701
    %v2705 = vmul.f32 1.0, %v2704
    %v2707 = vrot.slane %v2484, 4
    %v2708 = vrot.slane %v2484, 5
    %v2711 = vmul.f32 %v2689, %v2707
    %v2712 = vmul.f32 %v2691, %v2708
    %v2713 = vmul.f32 %v2677, %v2692
    %v2714 = vmul.f32 %v2679, %v2693
    %v2715 = vadd.f32 %v2711, %v2713
    %v2716 = vadd.f32 %v2712, %v2714
    %v2717 = vtanh.pop %v2715
    %v2718 = vtanh.pop %v2716
    %v2719 = vmul.f32 %v2703, %v2717
    %v2720 = vmul.f32 %v2705, %v2718
    %v2723 = vrot.slane %v2720, 7
    %vm2724 = vcmask 1045509
    %v2725 = vsel %vm2724, %v2723, %v2719
    %v2728 = vrot.slane %v2485, 4
    %v2730 = vpack.c.bf16 %v2725, %v2725
    %v2731 = vpack.c.bf16 %v2728, %v2728
    %v2734 = vrot.slane %v2730, 2
    %v2735 = vrot.slane %v2731, 2
    %2738 = vmatprep.subr.bf16.mxu0 %v944
    %2739 = vmatpush1.bf16.msra.mxu0 %v943
    %2740 = vmatprep.subr.bf16.mxu0 %v948
    %2741 = vmatpush1.bf16.msra.mxu0 %v947
    %2742 = vmatprep.subr.bf16.mxu0 %v952
    %2743 = vmatpush1.bf16.msra.mxu0 %v951
    %2744 = vmatprep.subr.bf16.mxu0 %v956
    %2745 = vmatpush1.bf16.msra.mxu0 %v955
    %2746 = vmatprep.subr.bf16.mxu0 %v960
    %2747 = vmatpush1.bf16.msra.mxu0 %v959
    %2748 = vmatprep.subr.bf16.mxu0 %v964
    %2749 = vmatpush1.bf16.msra.mxu0 %v963
    %2750 = vmatprep.subr.bf16.mxu0 %v968
    %2751 = vmatpush1.bf16.msra.mxu0 %v967
    %2752 = vmatprep.subr.bf16.mxu0 %v972
    %2753 = vmatpush1.bf16.msra.mxu0 %v971
    %2754 = vmatprep.subr.bf16.mxu0 %v976
    %2755 = vmatpush1.bf16.msra.mxu0 %v975
    %2756 = vmatprep.subr.bf16.mxu0 %v980
    %2757 = vmatpush1.bf16.msra.mxu0 %v979
    %2758 = vmatprep.subr.bf16.mxu0 %v984
    %2759 = vmatpush1.bf16.msra.mxu0 %v983
    %2760 = vmatprep.subr.bf16.mxu0 %v988
    %2761 = vmatpush1.bf16.msra.mxu0 %v987
    %2762 = vmatprep.subr.bf16.mxu0 %v992
    %2763 = vmatpush1.bf16.msra.mxu0 %v991
    %2764 = vmatprep.subr.bf16.mxu0 %v996
    %2765 = vmatpush1.bf16.msra.mxu0 %v995
    %2766 = vmatprep.subr.bf16.mxu0 %v1000
    %2767 = vmatpush1.bf16.msra.mxu0 %v999
    %2768 = vmatprep.subr.bf16.mxu0 %v1004
    %2769 = vmatpush1.bf16.msra.mxu0 %v1003
    %2770 = vmatprep.mubr.bf16.mxu0 %v2735
    %2771 = vmatmul.mubr.bf16.gmra.mrb[0].mxu0 %v2734
    %v2772 = vpop.f32.mrb[0].mxu0
    %v2773 = vadd.f32 %v1201, %v2772
    %v2774 = vpop.f32.mrb[0].mxu0
    %v2775 = vadd.f32 %v1205, %v2774
    %v2776 = vpop.f32.mrb[0].mxu0
    %v2777 = vpop.f32.mrb[0].mxu0
    %2778 = vdwg.mxu0
    %2779 = vmatprep.subr.bf16.mxu0 %v946
    %2780 = vmatpush1.bf16.msra.mxu0 %v945
    %2781 = vmatprep.subr.bf16.mxu0 %v950
    %2782 = vmatpush1.bf16.msra.mxu0 %v949
    %2783 = vmatprep.subr.bf16.mxu0 %v954
    %2784 = vmatpush1.bf16.msra.mxu0 %v953
    %2785 = vmatprep.subr.bf16.mxu0 %v958
    %2786 = vmatpush1.bf16.msra.mxu0 %v957
    %2787 = vmatprep.subr.bf16.mxu0 %v962
    %2788 = vmatpush1.bf16.msra.mxu0 %v961
    %2789 = vmatprep.subr.bf16.mxu0 %v966
    %2790 = vmatpush1.bf16.msra.mxu0 %v965
    %2791 = vmatprep.subr.bf16.mxu0 %v970
    %2792 = vmatpush1.bf16.msra.mxu0 %v969
    %2793 = vmatprep.subr.bf16.mxu0 %v974
    %2794 = vmatpush1.bf16.msra.mxu0 %v973
    %2795 = vmatprep.subr.bf16.mxu0 %v978
    %2796 = vmatpush1.bf16.msra.mxu0 %v977
    %2797 = vmatprep.subr.bf16.mxu0 %v982
    %2798 = vmatpush1.bf16.msra.mxu0 %v981
    %2799 = vmatprep.subr.bf16.mxu0 %v986
    %2800 = vmatpush1.bf16.msra.mxu0 %v985
    %2801 = vmatprep.subr.bf16.mxu0 %v990
    %2802 = vmatpush1.bf16.msra.mxu0 %v989
    %2803 = vmatprep.subr.bf16.mxu0 %v994
    %2804 = vmatpush1.bf16.msra.mxu0 %v993
    %2805 = vmatprep.subr.bf16.mxu0 %v998
    %2806 = vmatpush1.bf16.msra.mxu0 %v997
    %2807 = vmatprep.subr.bf16.mxu0 %v1002
    %2808 = vmatpush1.bf16.msra.mxu0 %v1001
    %2809 = vmatprep.subr.bf16.mxu0 %v1006
    %2810 = vmatpush1.bf16.msra.mxu0 %v1005
    %2811 = vmatprep.mubr.bf16.mxu0 %v2735
    %2812 = vmatmul.mubr.bf16.gmra.mrb[0].mxu0 %v2734
    %v2813 = vpop.f32.mrb[0].mxu0
    %v2814 = vadd.f32 %v1209, %v2813
    %v2815 = vpop.f32.mrb[0].mxu0
    %v2816 = vadd.f32 %v1213, %v2815
    %v2817 = vpop.f32.mrb[0].mxu0
    %v2818 = vpop.f32.mrb[0].mxu0
    %2819 = vdwg.mxu0
    %v2820 = vxor.u32 %v2773, 2147483648
    %v2821 = vmul.f32 %v2820, 1.442695
    %v2822 = vpow.pop %v2821
    %v2823 = vadd.f32 %v2822, 1.0
    %v2824 = vrcp.pop %v2823
    %v2825 = vmul.f32 1.0, %v2824
    %v2826 = vxor.u32 %v2775, 2147483648
    %v2827 = vmul.f32 %v2826, 1.442695
    %v2828 = vpow.pop %v2827
    %v2829 = vadd.f32 %v2828, 1.0
    %v2830 = vrcp.pop %v2829
    %v2831 = vmul.f32 1.0, %v2830
    %v2832 = vtanh.pop %v2814
    %v2833 = vxor.u32 %v2816, 2147483648
    %v2834 = vmul.f32 %v2833, 1.442695
    %v2835 = vpow.pop %v2834
    %v2836 = vadd.f32 %v2835, 1.0
    %v2837 = vrcp.pop %v2836
    %v2838 = vmul.f32 1.0, %v2837
    %v2839 = vmul.f32 %v2831, %v2486
    %v2840 = vmul.f32 %v2825, %v2832
    %v2841 = vadd.f32 %v2839, %v2840
    %v2842 = vtanh.pop %v2841
    %v2843 = vmul.f32 %v2838, %v2842
    %v2844 = vsel %vm2556, 1, 0
    %2845 = vset.pattern.permute.xlu0 0
    %2846 = vperm.xlu0 %2845, %v2844
    %v2847 = vpop.permute.xlu0 %2846
    %vm2848 = vcmp.eq.s32.totalorder %v2847, 1
    %v2849 = vrot.slane %v2719, 4
    %v2850 = vrot.slane %v2720, 3
    %v2851 = vsel %vm1192, %v2850, %v2849
    %v2853 = vsel %vm2848, %v2851, %v2477
    %v2856 = vrot.slane %v2715, 4
    %v2857 = vrot.slane %v2716, 3
    %v2858 = vsel %vm1192, %v2857, %v2856
    %v2860 = vsel %vm2848, %v2858, %v2484
    %v2861 = vsel %vm2848, %v2843, %v2485
    %v2862 = vsel %vm2848, %v2841, %v2486
    %v2863 = vsel %vm2848, %v2843, 0.0
    %v2864 = vpack.c.bf16 %v2863, %v2863
    %2865 = vmatprep.subr.bf16.mxu0 0
    %2866 = vmatpush1.bf16.msra.mxu0 %v1024
    %2867 = vmatprep.subr.bf16.mxu0 0
    %2868 = vmatpush1.bf16.msra.mxu0 %v1025
    %2869 = vmatprep.subr.bf16.mxu0 0
    %2870 = vmatpush1.bf16.msra.mxu0 %v1026
    %2871 = vmatprep.subr.bf16.mxu0 0
    %2872 = vmatpush1.bf16.msra.mxu0 %v1027
    %2873 = vmatprep.subr.bf16.mxu0 0
    %2874 = vmatpush1.bf16.msra.mxu0 %v1028
    %2875 = vmatprep.subr.bf16.mxu0 0
    %2876 = vmatpush1.bf16.msra.mxu0 %v1029
    %2877 = vmatprep.subr.bf16.mxu0 0
    %2878 = vmatpush1.bf16.msra.mxu0 %v1030
    %2879 = vmatprep.subr.bf16.mxu0 0
    %2880 = vmatpush1.bf16.msra.mxu0 %v1031
    %2881 = vmatprep.subr.bf16.mxu0 0
    %2882 = vmatpush1.bf16.msra.mxu0 0
    %2883 = vmatprep.subr.bf16.mxu0 0
    %2884 = vmatpush1.bf16.msra.mxu0 0
    %2885 = vmatprep.subr.bf16.mxu0 0
    %2886 = vmatpush1.bf16.msra.mxu0 0
    %2887 = vmatprep.subr.bf16.mxu0 0
    %2888 = vmatpush1.bf16.msra.mxu0 0
    %2889 = vmatprep.subr.bf16.mxu0 0
    %2890 = vmatpush1.bf16.msra.mxu0 0
    %2891 = vmatprep.subr.bf16.mxu0 0
    %2892 = vmatpush1.bf16.msra.mxu0 0
    %2893 = vmatprep.subr.bf16.mxu0 0
    %2894 = vmatpush1.bf16.msra.mxu0 0
    %2895 = vmatprep.subr.bf16.mxu0 0
    %2896 = vmatpush1.bf16.msra.mxu0 0
    %2897 = vmatprep.mubr.bf16.mxu0 0
    %2898 = vmatmul.mubr.bf16.gmra.mrb[0].mxu0 %v2864
    %v2899 = vpop.f32.mrb[0].mxu0
    %v2900 = vadd.f32 %v1343, %v2899
    %v2901 = vpop.f32.mrb[0].mxu0
    %v2902 = vpop.f32.mrb[0].mxu0
    %v2903 = vpop.f32.mrb[0].mxu0
    %2904 = vdwg.mxu0
    %v2907 = vunpack.c.l.s4 1966171168
    %v2908 = vunpack.c.0.s8 %v2907
    %v2909 = vlaneseq
    %v2910 = vshrl.u32 %v2909, 7
    %v2911 = vsub.s32 %v2908, %v2910
    %v2912 = vrot.slane %v2900, %v2911
    %v2913 = vcombine.high %v2912, %v2912
    %v2915 = vunpack.c.l.s4 1966171168
    %v2916 = vunpack.c.0.s8 %v2915
    %v2917 = vlaneseq
    %v2918 = vshrl.u32 %v2917, 7
    %v2919 = vsub.s32 %v2916, %v2918
    %v2920 = vrot.slane %v2912, %v2919
    %v2922 = vunpack.c.l.s4 1966171168
    %v2923 = vunpack.c.0.s8 %v2922
    %v2924 = vlaneseq
    %v2925 = vshrl.u32 %v2924, 7
    %v2926 = vsub.s32 %v2923, %v2925
    %v2927 = vrot.slane %v2913, %v2926
    %2930 = vst.msk [vmem:[%s13 + $0x4] sm:$0x1] %vm1410, %v2920
    %2931 = vst.msk [vmem:[%s13 + $0xc] sm:$0x1] %vm1410, %v2927
    %vm2932 = vcmp.gt.s32.totalorder %v1033, 5
    %v2933 = vpack.c.bf16 %v2853, %v2853
    %2934 = vmatprep.subr.bf16.mxu0 %v784
    %2935 = vmatpush1.bf16.msra.mxu0 %v783
    %2936 = vmatprep.subr.bf16.mxu0 %v788
    %2937 = vmatpush1.bf16.msra.mxu0 %v787
    %2938 = vmatprep.subr.bf16.mxu0 %v792
    %2939 = vmatpush1.bf16.msra.mxu0 %v791
    %2940 = vmatprep.subr.bf16.mxu0 %v796
    %2941 = vmatpush1.bf16.msra.mxu0 %v795
    %2942 = vmatprep.subr.bf16.mxu0 %v800
    %2943 = vmatpush1.bf16.msra.mxu0 %v799
    %2944 = vmatprep.subr.bf16.mxu0 %v804
    %2945 = vmatpush1.bf16.msra.mxu0 %v803
    %2946 = vmatprep.subr.bf16.mxu0 %v808
    %2947 = vmatpush1.bf16.msra.mxu0 %v807
    %2948 = vmatprep.subr.bf16.mxu0 %v812
    %2949 = vmatpush1.bf16.msra.mxu0 %v811
    %2950 = vmatprep.subr.bf16.mxu0 0
    %2951 = vmatpush1.bf16.msra.mxu0 0
    %2952 = vmatprep.subr.bf16.mxu0 0
    %2953 = vmatpush1.bf16.msra.mxu0 0
    %2954 = vmatprep.subr.bf16.mxu0 0
    %2955 = vmatpush1.bf16.msra.mxu0 0
    %2956 = vmatprep.subr.bf16.mxu0 0
    %2957 = vmatpush1.bf16.msra.mxu0 0
    %2958 = vmatprep.subr.bf16.mxu0 0
    %2959 = vmatpush1.bf16.msra.mxu0 0
    %2960 = vmatprep.subr.bf16.mxu0 0
    %2961 = vmatpush1.bf16.msra.mxu0 0
    %2962 = vmatprep.subr.bf16.mxu0 0
    %2963 = vmatpush1.bf16.msra.mxu0 0
    %2964 = vmatprep.subr.bf16.mxu0 0
    %2965 = vmatpush1.bf16.msra.mxu0 0
    %2966 = vmatprep.mubr.bf16.mxu0 0
    %2967 = vmatmul.mubr.bf16.gmra.mrb[0].mxu0 %v2933
    %v2968 = vpop.f32.mrb[0].mxu0
    %v2969 = vadd.f32 0.0, %v2968
    %v2970 = vpop.f32.mrb[0].mxu0
    %v2971 = vadd.f32 0.0, %v2970
    %v2972 = vpop.f32.mrb[0].mxu0
    %v2973 = vpop.f32.mrb[0].mxu0
    %2974 = vdwg.mxu0
    %2975 = vmatprep.subr.bf16.mxu0 %v786
    %2976 = vmatpush1.bf16.msra.mxu0 %v785
    %2977 = vmatprep.subr.bf16.mxu0 %v790
    %2978 = vmatpush1.bf16.msra.mxu0 %v789
    %2979 = vmatprep.subr.bf16.mxu0 %v794
    %2980 = vmatpush1.bf16.msra.mxu0 %v793
    %2981 = vmatprep.subr.bf16.mxu0 %v798
    %2982 = vmatpush1.bf16.msra.mxu0 %v797
    %2983 = vmatprep.subr.bf16.mxu0 %v802
    %2984 = vmatpush1.bf16.msra.mxu0 %v801
    %2985 = vmatprep.subr.bf16.mxu0 %v806
    %2986 = vmatpush1.bf16.msra.mxu0 %v805
    %2987 = vmatprep.subr.bf16.mxu0 %v810
    %2988 = vmatpush1.bf16.msra.mxu0 %v809
    %2989 = vmatprep.subr.bf16.mxu0 %v814
    %2990 = vmatpush1.bf16.msra.mxu0 %v813
    %2991 = vmatprep.subr.bf16.mxu0 0
    %2992 = vmatpush1.bf16.msra.mxu0 0
    %2993 = vmatprep.subr.bf16.mxu0 0
    %2994 = vmatpush1.bf16.msra.mxu0 0
    %2995 = vmatprep.subr.bf16.mxu0 0
    %2996 = vmatpush1.bf16.msra.mxu0 0
    %2997 = vmatprep.subr.bf16.mxu0 0
    %2998 = vmatpush1.bf16.msra.mxu0 0
    %2999 = vmatprep.subr.bf16.mxu0 0
    %3000 = vmatpush1.bf16.msra.mxu0 0
    %3001 = vmatprep.subr.bf16.mxu0 0
    %3002 = vmatpush1.bf16.msra.mxu0 0
    %3003 = vmatprep.subr.bf16.mxu0 0
    %3004 = vmatpush1.bf16.msra.mxu0 0
    %3005 = vmatprep.subr.bf16.mxu0 0
    %3006 = vmatpush1.bf16.msra.mxu0 0
    %3007 = vmatprep.mubr.bf16.mxu0 0
    %3008 = vmatmul.mubr.bf16.gmra.mrb[0].mxu0 %v2933
    %v3009 = vpop.f32.mrb[0].mxu0
    %v3010 = vadd.f32 0.0, %v3009
    %v3011 = vpop.f32.mrb[0].mxu0
    %v3012 = vadd.f32 0.0, %v3011
    %v3013 = vpop.f32.mrb[0].mxu0
    %v3014 = vpop.f32.mrb[0].mxu0
    %3015 = vdwg.mxu0
    %v3020 = vrot.slane %v2969, 3
    %v3021 = vrot.slane %v2971, 3
    %v3022 = vrot.slane %v3010, 3
    %v3023 = vrot.slane %v3012, 3
    %v3024 = vrot.slane %v2969, 4
    %v3025 = vrot.slane %v2971, 4
    %v3026 = vrot.slane %v3010, 4
    %v3027 = vrot.slane %v3012, 4
    %v3036 = vadd.f32 %v711, %v3020
    %v3037 = vadd.f32 %v712, %v3021
    %v3038 = vadd.f32 %v713, %v3022
    %v3039 = vadd.f32 %v714, %v3023
    %v3040 = vadd.f32 %v715, %v3024
    %v3041 = vadd.f32 %v716, %v3025
    %v3042 = vadd.f32 %v717, %v3026
    %v3043 = vadd.f32 %v718, %v3027
    %v3044 = vxor.u32 %v3036, 2147483648
    %v3045 = vxor.u32 %v3040, 2147483648
    %v3046 = vmul.f32 %v3044, 1.442695
    %v3047 = vpow.pop %v3046
    %v3048 = vmul.f32 %v3045, 1.442695
    %v3049 = vpow.pop %v3048
    %v3050 = vadd.f32 %v3047, 1.0
    %v3051 = vadd.f32 %v3049, 1.0
    %v3052 = vrcp.pop %v3050
    %v3053 = vmul.f32 1.0, %v3052
    %v3054 = vrcp.pop %v3051
    %v3055 = vmul.f32 1.0, %v3054
    %v3056 = vxor.u32 %v3037, 2147483648
    %v3057 = vxor.u32 %v3041, 2147483648
    %v3058 = vmul.f32 %v3056, 1.442695
    %v3059 = vpow.pop %v3058
    %v3060 = vmul.f32 %v3057, 1.442695
    %v3061 = vpow.pop %v3060
    %v3062 = vadd.f32 %v3059, 1.0
    %v3063 = vadd.f32 %v3061, 1.0
    %v3064 = vrcp.pop %v3062
    %v3065 = vmul.f32 1.0, %v3064
    %v3066 = vrcp.pop %v3063
    %v3067 = vmul.f32 1.0, %v3066
    %v3068 = vtanh.pop %v3038
    %v3069 = vtanh.pop %v3042
    %v3070 = vxor.u32 %v3039, 2147483648
    %v3071 = vxor.u32 %v3043, 2147483648
    %v3072 = vmul.f32 %v3070, 1.442695
    %v3073 = vpow.pop %v3072
    %v3074 = vmul.f32 %v3071, 1.442695
    %v3075 = vpow.pop %v3074
    %v3076 = vadd.f32 %v3073, 1.0
    %v3077 = vadd.f32 %v3075, 1.0
    %v3078 = vrcp.pop %v3076
    %v3079 = vmul.f32 1.0, %v3078
    %v3080 = vrcp.pop %v3077
    %v3081 = vmul.f32 1.0, %v3080
    %v3083 = vrot.slane %v2860, 3
    %v3084 = vrot.slane %v2860, 4
    %v3087 = vmul.f32 %v3065, %v3083
    %v3088 = vmul.f32 %v3067, %v3084
    %v3089 = vmul.f32 %v3053, %v3068
    %v3090 = vmul.f32 %v3055, %v3069
    %v3091 = vadd.f32 %v3087, %v3089
    %v3092 = vadd.f32 %v3088, %v3090
    %v3093 = vtanh.pop %v3091
    %v3094 = vtanh.pop %v3092
    %v3095 = vmul.f32 %v3079, %v3093
    %v3096 = vmul.f32 %v3081, %v3094
    %v3099 = vrot.slane %v3096, 7
    %vm3100 = vcmask 1046534
    %v3101 = vsel %vm3100, %v3099, %v3095
    %v3104 = vrot.slane %v2861, 3
    %v3106 = vpack.c.bf16 %v3101, %v3101
    %v3107 = vpack.c.bf16 %v3104, %v3104
    %v3109 = vshrl.u32 %v3106, 16
    %v3111 = vrot.slane %v3109, 2
    %v3112 = vshll.u32 %v3106, 16
    %v3114 = vrot.slane %v3112, 3
    %v3115 = vor.u32 %v3111, %v3114
    %v3117 = vshrl.u32 %v3107, 16
    %v3119 = vrot.slane %v3117, 2
    %v3120 = vshll.u32 %v3107, 16
    %v3122 = vrot.slane %v3120, 3
    %v3123 = vor.u32 %v3119, %v3122
    %3126 = vmatprep.subr.bf16.mxu0 %v944
    %3127 = vmatpush1.bf16.msra.mxu0 %v943
    %3128 = vmatprep.subr.bf16.mxu0 %v948
    %3129 = vmatpush1.bf16.msra.mxu0 %v947
    %3130 = vmatprep.subr.bf16.mxu0 %v952
    %3131 = vmatpush1.bf16.msra.mxu0 %v951
    %3132 = vmatprep.subr.bf16.mxu0 %v956
    %3133 = vmatpush1.bf16.msra.mxu0 %v955
    %3134 = vmatprep.subr.bf16.mxu0 %v960
    %3135 = vmatpush1.bf16.msra.mxu0 %v959
    %3136 = vmatprep.subr.bf16.mxu0 %v964
    %3137 = vmatpush1.bf16.msra.mxu0 %v963
    %3138 = vmatprep.subr.bf16.mxu0 %v968
    %3139 = vmatpush1.bf16.msra.mxu0 %v967
    %3140 = vmatprep.subr.bf16.mxu0 %v972
    %3141 = vmatpush1.bf16.msra.mxu0 %v971
    %3142 = vmatprep.subr.bf16.mxu0 %v976
    %3143 = vmatpush1.bf16.msra.mxu0 %v975
    %3144 = vmatprep.subr.bf16.mxu0 %v980
    %3145 = vmatpush1.bf16.msra.mxu0 %v979
    %3146 = vmatprep.subr.bf16.mxu0 %v984
    %3147 = vmatpush1.bf16.msra.mxu0 %v983
    %3148 = vmatprep.subr.bf16.mxu0 %v988
    %3149 = vmatpush1.bf16.msra.mxu0 %v987
    %3150 = vmatprep.subr.bf16.mxu0 %v992
    %3151 = vmatpush1.bf16.msra.mxu0 %v991
    %3152 = vmatprep.subr.bf16.mxu0 %v996
    %3153 = vmatpush1.bf16.msra.mxu0 %v995
    %3154 = vmatprep.subr.bf16.mxu0 %v1000
    %3155 = vmatpush1.bf16.msra.mxu0 %v999
    %3156 = vmatprep.subr.bf16.mxu0 %v1004
    %3157 = vmatpush1.bf16.msra.mxu0 %v1003
    %3158 = vmatprep.mubr.bf16.mxu0 %v3123
    %3159 = vmatmul.mubr.bf16.gmra.mrb[0].mxu0 %v3115
    %v3160 = vpop.f32.mrb[0].mxu0
    %v3161 = vadd.f32 %v1201, %v3160
    %v3162 = vpop.f32.mrb[0].mxu0
    %v3163 = vadd.f32 %v1205, %v3162
    %v3164 = vpop.f32.mrb[0].mxu0
    %v3165 = vpop.f32.mrb[0].mxu0
    %3166 = vdwg.mxu0
    %3167 = vmatprep.subr.bf16.mxu0 %v946
    %3168 = vmatpush1.bf16.msra.mxu0 %v945
    %3169 = vmatprep.subr.bf16.mxu0 %v950
    %3170 = vmatpush1.bf16.msra.mxu0 %v949
    %3171 = vmatprep.subr.bf16.mxu0 %v954
    %3172 = vmatpush1.bf16.msra.mxu0 %v953
    %3173 = vmatprep.subr.bf16.mxu0 %v958
    %3174 = vmatpush1.bf16.msra.mxu0 %v957
    %3175 = vmatprep.subr.bf16.mxu0 %v962
    %3176 = vmatpush1.bf16.msra.mxu0 %v961
    %3177 = vmatprep.subr.bf16.mxu0 %v966
    %3178 = vmatpush1.bf16.msra.mxu0 %v965
    %3179 = vmatprep.subr.bf16.mxu0 %v970
    %3180 = vmatpush1.bf16.msra.mxu0 %v969
    %3181 = vmatprep.subr.bf16.mxu0 %v974
    %3182 = vmatpush1.bf16.msra.mxu0 %v973
    %3183 = vmatprep.subr.bf16.mxu0 %v978
    %3184 = vmatpush1.bf16.msra.mxu0 %v977
    %3185 = vmatprep.subr.bf16.mxu0 %v982
    %3186 = vmatpush1.bf16.msra.mxu0 %v981
    %3187 = vmatprep.subr.bf16.mxu0 %v986
    %3188 = vmatpush1.bf16.msra.mxu0 %v985
    %3189 = vmatprep.subr.bf16.mxu0 %v990
    %3190 = vmatpush1.bf16.msra.mxu0 %v989
    %3191 = vmatprep.subr.bf16.mxu0 %v994
    %3192 = vmatpush1.bf16.msra.mxu0 %v993
    %3193 = vmatprep.subr.bf16.mxu0 %v998
    %3194 = vmatpush1.bf16.msra.mxu0 %v997
    %3195 = vmatprep.subr.bf16.mxu0 %v1002
    %3196 = vmatpush1.bf16.msra.mxu0 %v1001
    %3197 = vmatprep.subr.bf16.mxu0 %v1006
    %3198 = vmatpush1.bf16.msra.mxu0 %v1005
    %3199 = vmatprep.mubr.bf16.mxu0 %v3123
    %3200 = vmatmul.mubr.bf16.gmra.mrb[0].mxu0 %v3115
    %v3201 = vpop.f32.mrb[0].mxu0
    %v3202 = vadd.f32 %v1209, %v3201
    %v3203 = vpop.f32.mrb[0].mxu0
    %v3204 = vadd.f32 %v1213, %v3203
    %v3205 = vpop.f32.mrb[0].mxu0
    %v3206 = vpop.f32.mrb[0].mxu0
    %3207 = vdwg.mxu0
    %v3208 = vxor.u32 %v3161, 2147483648
    %v3209 = vmul.f32 %v3208, 1.442695
    %v3210 = vpow.pop %v3209
    %v3211 = vadd.f32 %v3210, 1.0
    %v3212 = vrcp.pop %v3211
    %v3213 = vmul.f32 1.0, %v3212
    %v3214 = vxor.u32 %v3163, 2147483648
    %v3215 = vmul.f32 %v3214, 1.442695
    %v3216 = vpow.pop %v3215
    %v3217 = vadd.f32 %v3216, 1.0
    %v3218 = vrcp.pop %v3217
    %v3219 = vmul.f32 1.0, %v3218
    %v3220 = vtanh.pop %v3202
    %v3221 = vxor.u32 %v3204, 2147483648
    %v3222 = vmul.f32 %v3221, 1.442695
    %v3223 = vpow.pop %v3222
    %v3224 = vadd.f32 %v3223, 1.0
    %v3225 = vrcp.pop %v3224
    %v3226 = vmul.f32 1.0, %v3225
    %v3227 = vmul.f32 %v3219, %v2862
    %v3228 = vmul.f32 %v3213, %v3220
    %v3229 = vadd.f32 %v3227, %v3228
    %v3230 = vtanh.pop %v3229
    %v3231 = vmul.f32 %v3226, %v3230
    %v3232 = vsel %vm2932, 1, 0
    %3233 = vset.pattern.permute.xlu0 0
    %3234 = vperm.xlu0 %3233, %v3232
    %v3235 = vpop.permute.xlu0 %3234
    %vm3236 = vcmp.eq.s32.totalorder %v3235, 1
    %v3237 = vrot.slane %v3095, 5
    %v3238 = vrot.slane %v3096, 4
    %v3239 = vsel %vm1192, %v3238, %v3237
    %v3241 = vsel %vm3236, %v3239, %v2853
    %v3244 = vrot.slane %v3091, 5
    %v3245 = vrot.slane %v3092, 4
    %v3246 = vsel %vm1192, %v3245, %v3244
    %v3248 = vsel %vm3236, %v3246, %v2860
    %v3249 = vsel %vm3236, %v3231, %v2861
    %v3250 = vsel %vm3236, %v3229, %v2862
    %v3251 = vsel %vm3236, %v3231, 0.0
    %v3252 = vpack.c.bf16 %v3251, %v3251
    %3253 = vmatprep.subr.bf16.mxu0 0
    %3254 = vmatpush1.bf16.msra.mxu0 %v1024
    %3255 = vmatprep.subr.bf16.mxu0 0
    %3256 = vmatpush1.bf16.msra.mxu0 %v1025
    %3257 = vmatprep.subr.bf16.mxu0 0
    %3258 = vmatpush1.bf16.msra.mxu0 %v1026
    %3259 = vmatprep.subr.bf16.mxu0 0
    %3260 = vmatpush1.bf16.msra.mxu0 %v1027
    %3261 = vmatprep.subr.bf16.mxu0 0
    %3262 = vmatpush1.bf16.msra.mxu0 %v1028
    %3263 = vmatprep.subr.bf16.mxu0 0
    %3264 = vmatpush1.bf16.msra.mxu0 %v1029
    %3265 = vmatprep.subr.bf16.mxu0 0
    %3266 = vmatpush1.bf16.msra.mxu0 %v1030
    %3267 = vmatprep.subr.bf16.mxu0 0
    %3268 = vmatpush1.bf16.msra.mxu0 %v1031
    %3269 = vmatprep.subr.bf16.mxu0 0
    %3270 = vmatpush1.bf16.msra.mxu0 0
    %3271 = vmatprep.subr.bf16.mxu0 0
    %3272 = vmatpush1.bf16.msra.mxu0 0
    %3273 = vmatprep.subr.bf16.mxu0 0
    %3274 = vmatpush1.bf16.msra.mxu0 0
    %3275 = vmatprep.subr.bf16.mxu0 0
    %3276 = vmatpush1.bf16.msra.mxu0 0
    %3277 = vmatprep.subr.bf16.mxu0 0
    %3278 = vmatpush1.bf16.msra.mxu0 0
    %3279 = vmatprep.subr.bf16.mxu0 0
    %3280 = vmatpush1.bf16.msra.mxu0 0
    %3281 = vmatprep.subr.bf16.mxu0 0
    %3282 = vmatpush1.bf16.msra.mxu0 0
    %3283 = vmatprep.subr.bf16.mxu0 0
    %3284 = vmatpush1.bf16.msra.mxu0 0
    %3285 = vmatprep.mubr.bf16.mxu0 0
    %3286 = vmatmul.mubr.bf16.gmra.mrb[0].mxu0 %v3252
    %v3287 = vpop.f32.mrb[0].mxu0
    %v3288 = vadd.f32 %v1343, %v3287
    %v3289 = vpop.f32.mrb[0].mxu0
    %v3290 = vpop.f32.mrb[0].mxu0
    %v3291 = vpop.f32.mrb[0].mxu0
    %3292 = vdwg.mxu0
    %v3295 = vunpack.c.l.s4 1966171168
    %v3296 = vunpack.c.0.s8 %v3295
    %v3297 = vlaneseq
    %v3298 = vshrl.u32 %v3297, 7
    %v3299 = vsub.s32 %v3296, %v3298
    %v3300 = vrot.slane %v3288, %v3299
    %v3301 = vcombine.high %v3300, %v3300
    %v3303 = vunpack.c.l.s4 1966171168
    %v3304 = vunpack.c.0.s8 %v3303
    %v3305 = vlaneseq
    %v3306 = vshrl.u32 %v3305, 7
    %v3307 = vsub.s32 %v3304, %v3306
    %v3308 = vrot.slane %v3300, %v3307
    %v3310 = vunpack.c.l.s4 1966171168
    %v3311 = vunpack.c.0.s8 %v3310
    %v3312 = vlaneseq
    %v3313 = vshrl.u32 %v3312, 7
    %v3314 = vsub.s32 %v3311, %v3313
    %v3315 = vrot.slane %v3301, %v3314
    %3318 = vst.msk [vmem:[%s13 + $0x5] sm:$0x1] %vm1410, %v3308
    %3319 = vst.msk [vmem:[%s13 + $0xd] sm:$0x1] %vm1410, %v3315
    %vm3320 = vcmp.gt.s32.totalorder %v1033, 6
    %v3321 = vpack.c.bf16 %v3241, %v3241
    %3322 = vmatprep.subr.bf16.mxu0 %v784
    %3323 = vmatpush1.bf16.msra.mxu0 %v783
    %3324 = vmatprep.subr.bf16.mxu0 %v788
    %3325 = vmatpush1.bf16.msra.mxu0 %v787
    %3326 = vmatprep.subr.bf16.mxu0 %v792
    %3327 = vmatpush1.bf16.msra.mxu0 %v791
    %3328 = vmatprep.subr.bf16.mxu0 %v796
    %3329 = vmatpush1.bf16.msra.mxu0 %v795
    %3330 = vmatprep.subr.bf16.mxu0 %v800
    %3331 = vmatpush1.bf16.msra.mxu0 %v799
    %3332 = vmatprep.subr.bf16.mxu0 %v804
    %3333 = vmatpush1.bf16.msra.mxu0 %v803
    %3334 = vmatprep.subr.bf16.mxu0 %v808
    %3335 = vmatpush1.bf16.msra.mxu0 %v807
    %3336 = vmatprep.subr.bf16.mxu0 %v812
    %3337 = vmatpush1.bf16.msra.mxu0 %v811
    %3338 = vmatprep.subr.bf16.mxu0 0
    %3339 = vmatpush1.bf16.msra.mxu0 0
    %3340 = vmatprep.subr.bf16.mxu0 0
    %3341 = vmatpush1.bf16.msra.mxu0 0
    %3342 = vmatprep.subr.bf16.mxu0 0
    %3343 = vmatpush1.bf16.msra.mxu0 0
    %3344 = vmatprep.subr.bf16.mxu0 0
    %3345 = vmatpush1.bf16.msra.mxu0 0
    %3346 = vmatprep.subr.bf16.mxu0 0
    %3347 = vmatpush1.bf16.msra.mxu0 0
    %3348 = vmatprep.subr.bf16.mxu0 0
    %3349 = vmatpush1.bf16.msra.mxu0 0
    %3350 = vmatprep.subr.bf16.mxu0 0
    %3351 = vmatpush1.bf16.msra.mxu0 0
    %3352 = vmatprep.subr.bf16.mxu0 0
    %3353 = vmatpush1.bf16.msra.mxu0 0
    %3354 = vmatprep.mubr.bf16.mxu0 0
    %3355 = vmatmul.mubr.bf16.gmra.mrb[0].mxu0 %v3321
    %v3356 = vpop.f32.mrb[0].mxu0
    %v3357 = vadd.f32 0.0, %v3356
    %v3358 = vpop.f32.mrb[0].mxu0
    %v3359 = vadd.f32 0.0, %v3358
    %v3360 = vpop.f32.mrb[0].mxu0
    %v3361 = vpop.f32.mrb[0].mxu0
    %3362 = vdwg.mxu0
    %3363 = vmatprep.subr.bf16.mxu0 %v786
    %3364 = vmatpush1.bf16.msra.mxu0 %v785
    %3365 = vmatprep.subr.bf16.mxu0 %v790
    %3366 = vmatpush1.bf16.msra.mxu0 %v789
    %3367 = vmatprep.subr.bf16.mxu0 %v794
    %3368 = vmatpush1.bf16.msra.mxu0 %v793
    %3369 = vmatprep.subr.bf16.mxu0 %v798
    %3370 = vmatpush1.bf16.msra.mxu0 %v797
    %3371 = vmatprep.subr.bf16.mxu0 %v802
    %3372 = vmatpush1.bf16.msra.mxu0 %v801
    %3373 = vmatprep.subr.bf16.mxu0 %v806
    %3374 = vmatpush1.bf16.msra.mxu0 %v805
    %3375 = vmatprep.subr.bf16.mxu0 %v810
    %3376 = vmatpush1.bf16.msra.mxu0 %v809
    %3377 = vmatprep.subr.bf16.mxu0 %v814
    %3378 = vmatpush1.bf16.msra.mxu0 %v813
    %3379 = vmatprep.subr.bf16.mxu0 0
    %3380 = vmatpush1.bf16.msra.mxu0 0
    %3381 = vmatprep.subr.bf16.mxu0 0
    %3382 = vmatpush1.bf16.msra.mxu0 0
    %3383 = vmatprep.subr.bf16.mxu0 0
    %3384 = vmatpush1.bf16.msra.mxu0 0
    %3385 = vmatprep.subr.bf16.mxu0 0
    %3386 = vmatpush1.bf16.msra.mxu0 0
    %3387 = vmatprep.subr.bf16.mxu0 0
    %3388 = vmatpush1.bf16.msra.mxu0 0
    %3389 = vmatprep.subr.bf16.mxu0 0
    %3390 = vmatpush1.bf16.msra.mxu0 0
    %3391 = vmatprep.subr.bf16.mxu0 0
    %3392 = vmatpush1.bf16.msra.mxu0 0
    %3393 = vmatprep.subr.bf16.mxu0 0
    %3394 = vmatpush1.bf16.msra.mxu0 0
    %3395 = vmatprep.mubr.bf16.mxu0 0
    %3396 = vmatmul.mubr.bf16.gmra.mrb[0].mxu0 %v3321
    %v3397 = vpop.f32.mrb[0].mxu0
    %v3398 = vadd.f32 0.0, %v3397
    %v3399 = vpop.f32.mrb[0].mxu0
    %v3400 = vadd.f32 0.0, %v3399
    %v3401 = vpop.f32.mrb[0].mxu0
    %v3402 = vpop.f32.mrb[0].mxu0
    %3403 = vdwg.mxu0
    %v3408 = vrot.slane %v3357, 2
    %v3409 = vrot.slane %v3359, 2
    %v3410 = vrot.slane %v3398, 2
    %v3411 = vrot.slane %v3400, 2
    %v3412 = vrot.slane %v3357, 3
    %v3413 = vrot.slane %v3359, 3
    %v3414 = vrot.slane %v3398, 3
    %v3415 = vrot.slane %v3400, 3
    %v3424 = vadd.f32 %v711, %v3408
    %v3425 = vadd.f32 %v712, %v3409
    %v3426 = vadd.f32 %v713, %v3410
    %v3427 = vadd.f32 %v714, %v3411
    %v3428 = vadd.f32 %v715, %v3412
    %v3429 = vadd.f32 %v716, %v3413
    %v3430 = vadd.f32 %v717, %v3414
    %v3431 = vadd.f32 %v718, %v3415
    %v3432 = vxor.u32 %v3424, 2147483648
    %v3433 = vxor.u32 %v3428, 2147483648
    %v3434 = vmul.f32 %v3432, 1.442695
    %v3435 = vpow.pop %v3434
    %v3436 = vmul.f32 %v3433, 1.442695
    %v3437 = vpow.pop %v3436
    %v3438 = vadd.f32 %v3435, 1.0
    %v3439 = vadd.f32 %v3437, 1.0
    %v3440 = vrcp.pop %v3438
    %v3441 = vmul.f32 1.0, %v3440
    %v3442 = vrcp.pop %v3439
    %v3443 = vmul.f32 1.0, %v3442
    %v3444 = vxor.u32 %v3425, 2147483648
    %v3445 = vxor.u32 %v3429, 2147483648
    %v3446 = vmul.f32 %v3444, 1.442695
    %v3447 = vpow.pop %v3446
    %v3448 = vmul.f32 %v3445, 1.442695
    %v3449 = vpow.pop %v3448
    %v3450 = vadd.f32 %v3447, 1.0
    %v3451 = vadd.f32 %v3449, 1.0
    %v3452 = vrcp.pop %v3450
    %v3453 = vmul.f32 1.0, %v3452
    %v3454 = vrcp.pop %v3451
    %v3455 = vmul.f32 1.0, %v3454
    %v3456 = vtanh.pop %v3426
    %v3457 = vtanh.pop %v3430
    %v3458 = vxor.u32 %v3427, 2147483648
    %v3459 = vxor.u32 %v3431, 2147483648
    %v3460 = vmul.f32 %v3458, 1.442695
    %v3461 = vpow.pop %v3460
    %v3462 = vmul.f32 %v3459, 1.442695
    %v3463 = vpow.pop %v3462
    %v3464 = vadd.f32 %v3461, 1.0
    %v3465 = vadd.f32 %v3463, 1.0
    %v3466 = vrcp.pop %v3464
    %v3467 = vmul.f32 1.0, %v3466
    %v3468 = vrcp.pop %v3465
    %v3469 = vmul.f32 1.0, %v3468
    %v3471 = vrot.slane %v3248, 2
    %v3472 = vrot.slane %v3248, 3
    %v3475 = vmul.f32 %v3453, %v3471
    %v3476 = vmul.f32 %v3455, %v3472
    %v3477 = vmul.f32 %v3441, %v3456
    %v3478 = vmul.f32 %v3443, %v3457
    %v3479 = vadd.f32 %v3475, %v3477
    %v3480 = vadd.f32 %v3476, %v3478
    %v3481 = vtanh.pop %v3479
    %v3482 = vtanh.pop %v3480
    %v3483 = vmul.f32 %v3467, %v3481
    %v3484 = vmul.f32 %v3469, %v3482
    %v3487 = vrot.slane %v3484, 7
    %vm3488 = vcmask 1047559
    %v3489 = vsel %vm3488, %v3487, %v3483
    %v3492 = vrot.slane %v3249, 2
    %v3494 = vpack.c.bf16 %v3489, %v3489
    %v3495 = vpack.c.bf16 %v3492, %v3492
    %v3498 = vrot.slane %v3494, 3
    %v3499 = vrot.slane %v3495, 3
    %3502 = vmatprep.subr.bf16.mxu0 %v944
    %3503 = vmatpush1.bf16.msra.mxu0 %v943
    %3504 = vmatprep.subr.bf16.mxu0 %v948
    %3505 = vmatpush1.bf16.msra.mxu0 %v947
    %3506 = vmatprep.subr.bf16.mxu0 %v952
    %3507 = vmatpush1.bf16.msra.mxu0 %v951
    %3508 = vmatprep.subr.bf16.mxu0 %v956
    %3509 = vmatpush1.bf16.msra.mxu0 %v955
    %3510 = vmatprep.subr.bf16.mxu0 %v960
    %3511 = vmatpush1.bf16.msra.mxu0 %v959
    %3512 = vmatprep.subr.bf16.mxu0 %v964
    %3513 = vmatpush1.bf16.msra.mxu0 %v963
    %3514 = vmatprep.subr.bf16.mxu0 %v968
    %3515 = vmatpush1.bf16.msra.mxu0 %v967
    %3516 = vmatprep.subr.bf16.mxu0 %v972
    %3517 = vmatpush1.bf16.msra.mxu0 %v971
    %3518 = vmatprep.subr.bf16.mxu0 %v976
    %3519 = vmatpush1.bf16.msra.mxu0 %v975
    %3520 = vmatprep.subr.bf16.mxu0 %v980
    %3521 = vmatpush1.bf16.msra.mxu0 %v979
    %3522 = vmatprep.subr.bf16.mxu0 %v984
    %3523 = vmatpush1.bf16.msra.mxu0 %v983
    %3524 = vmatprep.subr.bf16.mxu0 %v988
    %3525 = vmatpush1.bf16.msra.mxu0 %v987
    %3526 = vmatprep.subr.bf16.mxu0 %v992
    %3527 = vmatpush1.bf16.msra.mxu0 %v991
    %3528 = vmatprep.subr.bf16.mxu0 %v996
    %3529 = vmatpush1.bf16.msra.mxu0 %v995
    %3530 = vmatprep.subr.bf16.mxu0 %v1000
    %3531 = vmatpush1.bf16.msra.mxu0 %v999
    %3532 = vmatprep.subr.bf16.mxu0 %v1004
    %3533 = vmatpush1.bf16.msra.mxu0 %v1003
    %3534 = vmatprep.mubr.bf16.mxu0 %v3499
    %3535 = vmatmul.mubr.bf16.gmra.mrb[0].mxu0 %v3498
    %v3536 = vpop.f32.mrb[0].mxu0
    %v3537 = vadd.f32 %v1201, %v3536
    %v3538 = vpop.f32.mrb[0].mxu0
    %v3539 = vadd.f32 %v1205, %v3538
    %v3540 = vpop.f32.mrb[0].mxu0
    %v3541 = vpop.f32.mrb[0].mxu0
    %3542 = vdwg.mxu0
    %3543 = vmatprep.subr.bf16.mxu0 %v946
    %3544 = vmatpush1.bf16.msra.mxu0 %v945
    %3545 = vmatprep.subr.bf16.mxu0 %v950
    %3546 = vmatpush1.bf16.msra.mxu0 %v949
    %3547 = vmatprep.subr.bf16.mxu0 %v954
    %3548 = vmatpush1.bf16.msra.mxu0 %v953
    %3549 = vmatprep.subr.bf16.mxu0 %v958
    %3550 = vmatpush1.bf16.msra.mxu0 %v957
    %3551 = vmatprep.subr.bf16.mxu0 %v962
    %3552 = vmatpush1.bf16.msra.mxu0 %v961
    %3553 = vmatprep.subr.bf16.mxu0 %v966
    %3554 = vmatpush1.bf16.msra.mxu0 %v965
    %3555 = vmatprep.subr.bf16.mxu0 %v970
    %3556 = vmatpush1.bf16.msra.mxu0 %v969
    %3557 = vmatprep.subr.bf16.mxu0 %v974
    %3558 = vmatpush1.bf16.msra.mxu0 %v973
    %3559 = vmatprep.subr.bf16.mxu0 %v978
    %3560 = vmatpush1.bf16.msra.mxu0 %v977
    %3561 = vmatprep.subr.bf16.mxu0 %v982
    %3562 = vmatpush1.bf16.msra.mxu0 %v981
    %3563 = vmatprep.subr.bf16.mxu0 %v986
    %3564 = vmatpush1.bf16.msra.mxu0 %v985
    %3565 = vmatprep.subr.bf16.mxu0 %v990
    %3566 = vmatpush1.bf16.msra.mxu0 %v989
    %3567 = vmatprep.subr.bf16.mxu0 %v994
    %3568 = vmatpush1.bf16.msra.mxu0 %v993
    %3569 = vmatprep.subr.bf16.mxu0 %v998
    %3570 = vmatpush1.bf16.msra.mxu0 %v997
    %3571 = vmatprep.subr.bf16.mxu0 %v1002
    %3572 = vmatpush1.bf16.msra.mxu0 %v1001
    %3573 = vmatprep.subr.bf16.mxu0 %v1006
    %3574 = vmatpush1.bf16.msra.mxu0 %v1005
    %3575 = vmatprep.mubr.bf16.mxu0 %v3499
    %3576 = vmatmul.mubr.bf16.gmra.mrb[0].mxu0 %v3498
    %v3577 = vpop.f32.mrb[0].mxu0
    %v3578 = vadd.f32 %v1209, %v3577
    %v3579 = vpop.f32.mrb[0].mxu0
    %v3580 = vadd.f32 %v1213, %v3579
    %v3581 = vpop.f32.mrb[0].mxu0
    %v3582 = vpop.f32.mrb[0].mxu0
    %3583 = vdwg.mxu0
    %v3584 = vxor.u32 %v3537, 2147483648
    %v3585 = vmul.f32 %v3584, 1.442695
    %v3586 = vpow.pop %v3585
    %v3587 = vadd.f32 %v3586, 1.0
    %v3588 = vrcp.pop %v3587
    %v3589 = vmul.f32 1.0, %v3588
    %v3590 = vxor.u32 %v3539, 2147483648
    %v3591 = vmul.f32 %v3590, 1.442695
    %v3592 = vpow.pop %v3591
    %v3593 = vadd.f32 %v3592, 1.0
    %v3594 = vrcp.pop %v3593
    %v3595 = vmul.f32 1.0, %v3594
    %v3596 = vtanh.pop %v3578
    %v3597 = vxor.u32 %v3580, 2147483648
    %v3598 = vmul.f32 %v3597, 1.442695
    %v3599 = vpow.pop %v3598
    %v3600 = vadd.f32 %v3599, 1.0
    %v3601 = vrcp.pop %v3600
    %v3602 = vmul.f32 1.0, %v3601
    %v3603 = vmul.f32 %v3595, %v3250
    %v3604 = vmul.f32 %v3589, %v3596
    %v3605 = vadd.f32 %v3603, %v3604
    %v3606 = vtanh.pop %v3605
    %v3607 = vmul.f32 %v3602, %v3606
    %v3608 = vsel %vm3320, 1, 0
    %3609 = vset.pattern.permute.xlu0 0
    %3610 = vperm.xlu0 %3609, %v3608
    %v3611 = vpop.permute.xlu0 %3610
    %vm3612 = vcmp.eq.s32.totalorder %v3611, 1
    %v3613 = vrot.slane %v3483, 6
    %v3614 = vrot.slane %v3484, 5
    %v3615 = vsel %vm1192, %v3614, %v3613
    %v3617 = vsel %vm3612, %v3615, %v3241
    %v3620 = vrot.slane %v3479, 6
    %v3621 = vrot.slane %v3480, 5
    %v3622 = vsel %vm1192, %v3621, %v3620
    %v3624 = vsel %vm3612, %v3622, %v3248
    %v3625 = vsel %vm3612, %v3607, %v3249
    %v3626 = vsel %vm3612, %v3605, %v3250
    %v3627 = vsel %vm3612, %v3607, 0.0
    %v3628 = vpack.c.bf16 %v3627, %v3627
    %3629 = vmatprep.subr.bf16.mxu0 0
    %3630 = vmatpush1.bf16.msra.mxu0 %v1024
    %3631 = vmatprep.subr.bf16.mxu0 0
    %3632 = vmatpush1.bf16.msra.mxu0 %v1025
    %3633 = vmatprep.subr.bf16.mxu0 0
    %3634 = vmatpush1.bf16.msra.mxu0 %v1026
    %3635 = vmatprep.subr.bf16.mxu0 0
    %3636 = vmatpush1.bf16.msra.mxu0 %v1027
    %3637 = vmatprep.subr.bf16.mxu0 0
    %3638 = vmatpush1.bf16.msra.mxu0 %v1028
    %3639 = vmatprep.subr.bf16.mxu0 0
    %3640 = vmatpush1.bf16.msra.mxu0 %v1029
    %3641 = vmatprep.subr.bf16.mxu0 0
    %3642 = vmatpush1.bf16.msra.mxu0 %v1030
    %3643 = vmatprep.subr.bf16.mxu0 0
    %3644 = vmatpush1.bf16.msra.mxu0 %v1031
    %3645 = vmatprep.subr.bf16.mxu0 0
    %3646 = vmatpush1.bf16.msra.mxu0 0
    %3647 = vmatprep.subr.bf16.mxu0 0
    %3648 = vmatpush1.bf16.msra.mxu0 0
    %3649 = vmatprep.subr.bf16.mxu0 0
    %3650 = vmatpush1.bf16.msra.mxu0 0
    %3651 = vmatprep.subr.bf16.mxu0 0
    %3652 = vmatpush1.bf16.msra.mxu0 0
    %3653 = vmatprep.subr.bf16.mxu0 0
    %3654 = vmatpush1.bf16.msra.mxu0 0
    %3655 = vmatprep.subr.bf16.mxu0 0
    %3656 = vmatpush1.bf16.msra.mxu0 0
    %3657 = vmatprep.subr.bf16.mxu0 0
    %3658 = vmatpush1.bf16.msra.mxu0 0
    %3659 = vmatprep.subr.bf16.mxu0 0
    %3660 = vmatpush1.bf16.msra.mxu0 0
    %3661 = vmatprep.mubr.bf16.mxu0 0
    %3662 = vmatmul.mubr.bf16.gmra.mrb[0].mxu0 %v3628
    %v3663 = vpop.f32.mrb[0].mxu0
    %v3664 = vadd.f32 %v1343, %v3663
    %v3665 = vpop.f32.mrb[0].mxu0
    %v3666 = vpop.f32.mrb[0].mxu0
    %v3667 = vpop.f32.mrb[0].mxu0
    %3668 = vdwg.mxu0
    %v3671 = vunpack.c.l.s4 1966171168
    %v3672 = vunpack.c.0.s8 %v3671
    %v3673 = vlaneseq
    %v3674 = vshrl.u32 %v3673, 7
    %v3675 = vsub.s32 %v3672, %v3674
    %v3676 = vrot.slane %v3664, %v3675
    %v3677 = vcombine.high %v3676, %v3676
    %v3679 = vunpack.c.l.s4 1966171168
    %v3680 = vunpack.c.0.s8 %v3679
    %v3681 = vlaneseq
    %v3682 = vshrl.u32 %v3681, 7
    %v3683 = vsub.s32 %v3680, %v3682
    %v3684 = vrot.slane %v3676, %v3683
    %v3686 = vunpack.c.l.s4 1966171168
    %v3687 = vunpack.c.0.s8 %v3686
    %v3688 = vlaneseq
    %v3689 = vshrl.u32 %v3688, 7
    %v3690 = vsub.s32 %v3687, %v3689
    %v3691 = vrot.slane %v3677, %v3690
    %3694 = vst.msk [vmem:[%s13 + $0x6] sm:$0x1] %vm1410, %v3684
    %3695 = vst.msk [vmem:[%s13 + $0xe] sm:$0x1] %vm1410, %v3691
    %vm3696 = vcmp.gt.s32.totalorder %v1033, 7
    %v3697 = vpack.c.bf16 %v3617, %v3617
    %3698 = vmatprep.subr.bf16.mxu0 %v784
    %3699 = vmatpush1.bf16.msra.mxu0 %v783
    %3700 = vmatprep.subr.bf16.mxu0 %v788
    %3701 = vmatpush1.bf16.msra.mxu0 %v787
    %3702 = vmatprep.subr.bf16.mxu0 %v792
    %3703 = vmatpush1.bf16.msra.mxu0 %v791
    %3704 = vmatprep.subr.bf16.mxu0 %v796
    %3705 = vmatpush1.bf16.msra.mxu0 %v795
    %3706 = vmatprep.subr.bf16.mxu0 %v800
    %3707 = vmatpush1.bf16.msra.mxu0 %v799
    %3708 = vmatprep.subr.bf16.mxu0 %v804
    %3709 = vmatpush1.bf16.msra.mxu0 %v803
    %3710 = vmatprep.subr.bf16.mxu0 %v808
    %3711 = vmatpush1.bf16.msra.mxu0 %v807
    %3712 = vmatprep.subr.bf16.mxu0 %v812
    %3713 = vmatpush1.bf16.msra.mxu0 %v811
    %3714 = vmatprep.subr.bf16.mxu0 0
    %3715 = vmatpush1.bf16.msra.mxu0 0
    %3716 = vmatprep.subr.bf16.mxu0 0
    %3717 = vmatpush1.bf16.msra.mxu0 0
    %3718 = vmatprep.subr.bf16.mxu0 0
    %3719 = vmatpush1.bf16.msra.mxu0 0
    %3720 = vmatprep.subr.bf16.mxu0 0
    %3721 = vmatpush1.bf16.msra.mxu0 0
    %3722 = vmatprep.subr.bf16.mxu0 0
    %3723 = vmatpush1.bf16.msra.mxu0 0
    %3724 = vmatprep.subr.bf16.mxu0 0
    %3725 = vmatpush1.bf16.msra.mxu0 0
    %3726 = vmatprep.subr.bf16.mxu0 0
    %3727 = vmatpush1.bf16.msra.mxu0 0
    %3728 = vmatprep.subr.bf16.mxu0 0
    %3729 = vmatpush1.bf16.msra.mxu0 0
    %3730 = vmatprep.mubr.bf16.mxu0 0
    %3731 = vmatmul.mubr.bf16.gmra.mrb[0].mxu0 %v3697
    %v3732 = vpop.f32.mrb[0].mxu0
    %v3733 = vadd.f32 0.0, %v3732
    %v3734 = vpop.f32.mrb[0].mxu0
    %v3735 = vadd.f32 0.0, %v3734
    %v3736 = vpop.f32.mrb[0].mxu0
    %v3737 = vpop.f32.mrb[0].mxu0
    %3738 = vdwg.mxu0
    %3739 = vmatprep.subr.bf16.mxu0 %v786
    %3740 = vmatpush1.bf16.msra.mxu0 %v785
    %3741 = vmatprep.subr.bf16.mxu0 %v790
    %3742 = vmatpush1.bf16.msra.mxu0 %v789
    %3743 = vmatprep.subr.bf16.mxu0 %v794
    %3744 = vmatpush1.bf16.msra.mxu0 %v793
    %3745 = vmatprep.subr.bf16.mxu0 %v798
    %3746 = vmatpush1.bf16.msra.mxu0 %v797
    %3747 = vmatprep.subr.bf16.mxu0 %v802
    %3748 = vmatpush1.bf16.msra.mxu0 %v801
    %3749 = vmatprep.subr.bf16.mxu0 %v806
    %3750 = vmatpush1.bf16.msra.mxu0 %v805
    %3751 = vmatprep.subr.bf16.mxu0 %v810
    %3752 = vmatpush1.bf16.msra.mxu0 %v809
    %3753 = vmatprep.subr.bf16.mxu0 %v814
    %3754 = vmatpush1.bf16.msra.mxu0 %v813
    %3755 = vmatprep.subr.bf16.mxu0 0
    %3756 = vmatpush1.bf16.msra.mxu0 0
    %3757 = vmatprep.subr.bf16.mxu0 0
    %3758 = vmatpush1.bf16.msra.mxu0 0
    %3759 = vmatprep.subr.bf16.mxu0 0
    %3760 = vmatpush1.bf16.msra.mxu0 0
    %3761 = vmatprep.subr.bf16.mxu0 0
    %3762 = vmatpush1.bf16.msra.mxu0 0
    %3763 = vmatprep.subr.bf16.mxu0 0
    %3764 = vmatpush1.bf16.msra.mxu0 0
    %3765 = vmatprep.subr.bf16.mxu0 0
    %3766 = vmatpush1.bf16.msra.mxu0 0
    %3767 = vmatprep.subr.bf16.mxu0 0
    %3768 = vmatpush1.bf16.msra.mxu0 0
    %3769 = vmatprep.subr.bf16.mxu0 0
    %3770 = vmatpush1.bf16.msra.mxu0 0
    %3771 = vmatprep.mubr.bf16.mxu0 0
    %3772 = vmatmul.mubr.bf16.gmra.mrb[0].mxu0 %v3697
    %v3773 = vpop.f32.mrb[0].mxu0
    %v3774 = vadd.f32 0.0, %v3773
    %v3775 = vpop.f32.mrb[0].mxu0
    %v3776 = vadd.f32 0.0, %v3775
    %v3777 = vpop.f32.mrb[0].mxu0
    %v3778 = vpop.f32.mrb[0].mxu0
    %3779 = vdwg.mxu0
    %v3784 = vrot.slane %v3733, 1
    %v3785 = vrot.slane %v3735, 1
    %v3786 = vrot.slane %v3774, 1
    %v3787 = vrot.slane %v3776, 1
    %v3788 = vrot.slane %v3733, 2
    %v3789 = vrot.slane %v3735, 2
    %v3790 = vrot.slane %v3774, 2
    %v3791 = vrot.slane %v3776, 2
    %v3800 = vadd.f32 %v711, %v3784
    %v3801 = vadd.f32 %v712, %v3785
    %v3802 = vadd.f32 %v713, %v3786
    %v3803 = vadd.f32 %v714, %v3787
    %v3804 = vadd.f32 %v715, %v3788
    %v3805 = vadd.f32 %v716, %v3789
    %v3806 = vadd.f32 %v717, %v3790
    %v3807 = vadd.f32 %v718, %v3791
    %v3808 = vxor.u32 %v3800, 2147483648
    %v3809 = vxor.u32 %v3804, 2147483648
    %v3810 = vmul.f32 %v3808, 1.442695
    %v3811 = vpow.pop %v3810
    %v3812 = vmul.f32 %v3809, 1.442695
    %v3813 = vpow.pop %v3812
    %v3814 = vadd.f32 %v3811, 1.0
    %v3815 = vadd.f32 %v3813, 1.0
    %v3816 = vrcp.pop %v3814
    %v3817 = vmul.f32 1.0, %v3816
    %v3818 = vrcp.pop %v3815
    %v3819 = vmul.f32 1.0, %v3818
    %v3820 = vxor.u32 %v3801, 2147483648
    %v3821 = vxor.u32 %v3805, 2147483648
    %v3822 = vmul.f32 %v3820, 1.442695
    %v3823 = vpow.pop %v3822
    %v3824 = vmul.f32 %v3821, 1.442695
    %v3825 = vpow.pop %v3824
    %v3826 = vadd.f32 %v3823, 1.0
    %v3827 = vadd.f32 %v3825, 1.0
    %v3828 = vrcp.pop %v3826
    %v3829 = vmul.f32 1.0, %v3828
    %v3830 = vrcp.pop %v3827
    %v3831 = vmul.f32 1.0, %v3830
    %v3832 = vtanh.pop %v3802
    %v3833 = vtanh.pop %v3806
    %v3834 = vxor.u32 %v3803, 2147483648
    %v3835 = vxor.u32 %v3807, 2147483648
    %v3836 = vmul.f32 %v3834, 1.442695
    %v3837 = vpow.pop %v3836
    %v3838 = vmul.f32 %v3835, 1.442695
    %v3839 = vpow.pop %v3838
    %v3840 = vadd.f32 %v3837, 1.0
    %v3841 = vadd.f32 %v3839, 1.0
    %v3842 = vrcp.pop %v3840
    %v3843 = vmul.f32 1.0, %v3842
    %v3844 = vrcp.pop %v3841
    %v3845 = vmul.f32 1.0, %v3844
    %v3847 = vrot.slane %v3624, 1
    %v3848 = vrot.slane %v3624, 2
    %v3851 = vmul.f32 %v3829, %v3847
    %v3852 = vmul.f32 %v3831, %v3848
    %v3853 = vmul.f32 %v3817, %v3832
    %v3854 = vmul.f32 %v3819, %v3833
    %v3855 = vadd.f32 %v3851, %v3853
    %v3856 = vadd.f32 %v3852, %v3854
    %v3857 = vtanh.pop %v3855
    %v3858 = vtanh.pop %v3856
    %v3859 = vmul.f32 %v3843, %v3857
    %v3860 = vmul.f32 %v3845, %v3858
    %v3863 = vrot.slane %v3860, 7
    %v3867 = vrot.slane %v3625, 1
    %v3869 = vpack.c.bf16 %v3863, %v3859
    %v3870 = vpack.c.bf16 %v3867, %v3867
    %v3872 = vshrl.u32 %v3869, 16
    %v3874 = vrot.slane %v3872, 3
    %v3875 = vshll.u32 %v3869, 16
    %v3877 = vrot.slane %v3875, 4
    %v3878 = vor.u32 %v3874, %v3877
    %v3880 = vshrl.u32 %v3870, 16
    %v3882 = vrot.slane %v3880, 3
    %v3883 = vshll.u32 %v3870, 16
    %v3885 = vrot.slane %v3883, 4
    %v3886 = vor.u32 %v3882, %v3885
    %3889 = vmatprep.subr.bf16.mxu0 %v944
    %3890 = vmatpush1.bf16.msra.mxu0 %v943
    %3891 = vmatprep.subr.bf16.mxu0 %v948
    %3892 = vmatpush1.bf16.msra.mxu0 %v947
    %3893 = vmatprep.subr.bf16.mxu0 %v952
    %3894 = vmatpush1.bf16.msra.mxu0 %v951
    %3895 = vmatprep.subr.bf16.mxu0 %v956
    %3896 = vmatpush1.bf16.msra.mxu0 %v955
    %3897 = vmatprep.subr.bf16.mxu0 %v960
    %3898 = vmatpush1.bf16.msra.mxu0 %v959
    %3899 = vmatprep.subr.bf16.mxu0 %v964
    %3900 = vmatpush1.bf16.msra.mxu0 %v963
    %3901 = vmatprep.subr.bf16.mxu0 %v968
    %3902 = vmatpush1.bf16.msra.mxu0 %v967
    %3903 = vmatprep.subr.bf16.mxu0 %v972
    %3904 = vmatpush1.bf16.msra.mxu0 %v971
    %3905 = vmatprep.subr.bf16.mxu0 %v976
    %3906 = vmatpush1.bf16.msra.mxu0 %v975
    %3907 = vmatprep.subr.bf16.mxu0 %v980
    %3908 = vmatpush1.bf16.msra.mxu0 %v979
    %3909 = vmatprep.subr.bf16.mxu0 %v984
    %3910 = vmatpush1.bf16.msra.mxu0 %v983
    %3911 = vmatprep.subr.bf16.mxu0 %v988
    %3912 = vmatpush1.bf16.msra.mxu0 %v987
    %3913 = vmatprep.subr.bf16.mxu0 %v992
    %3914 = vmatpush1.bf16.msra.mxu0 %v991
    %3915 = vmatprep.subr.bf16.mxu0 %v996
    %3916 = vmatpush1.bf16.msra.mxu0 %v995
    %3917 = vmatprep.subr.bf16.mxu0 %v1000
    %3918 = vmatpush1.bf16.msra.mxu0 %v999
    %3919 = vmatprep.subr.bf16.mxu0 %v1004
    %3920 = vmatpush1.bf16.msra.mxu0 %v1003
    %3921 = vmatprep.mubr.bf16.mxu0 %v3886
    %3922 = vmatmul.mubr.bf16.gmra.mrb[0].mxu0 %v3878
    %v3923 = vpop.f32.mrb[0].mxu0
    %v3924 = vadd.f32 %v1201, %v3923
    %v3925 = vpop.f32.mrb[0].mxu0
    %v3926 = vadd.f32 %v1205, %v3925
    %v3927 = vpop.f32.mrb[0].mxu0
    %v3928 = vpop.f32.mrb[0].mxu0
    %3929 = vdwg.mxu0
    %3930 = vmatprep.subr.bf16.mxu0 %v946
    %3931 = vmatpush1.bf16.msra.mxu0 %v945
    %3932 = vmatprep.subr.bf16.mxu0 %v950
    %3933 = vmatpush1.bf16.msra.mxu0 %v949
    %3934 = vmatprep.subr.bf16.mxu0 %v954
    %3935 = vmatpush1.bf16.msra.mxu0 %v953
    %3936 = vmatprep.subr.bf16.mxu0 %v958
    %3937 = vmatpush1.bf16.msra.mxu0 %v957
    %3938 = vmatprep.subr.bf16.mxu0 %v962
    %3939 = vmatpush1.bf16.msra.mxu0 %v961
    %3940 = vmatprep.subr.bf16.mxu0 %v966
    %3941 = vmatpush1.bf16.msra.mxu0 %v965
    %3942 = vmatprep.subr.bf16.mxu0 %v970
    %3943 = vmatpush1.bf16.msra.mxu0 %v969
    %3944 = vmatprep.subr.bf16.mxu0 %v974
    %3945 = vmatpush1.bf16.msra.mxu0 %v973
    %3946 = vmatprep.subr.bf16.mxu0 %v978
    %3947 = vmatpush1.bf16.msra.mxu0 %v977
    %3948 = vmatprep.subr.bf16.mxu0 %v982
    %3949 = vmatpush1.bf16.msra.mxu0 %v981
    %3950 = vmatprep.subr.bf16.mxu0 %v986
    %3951 = vmatpush1.bf16.msra.mxu0 %v985
    %3952 = vmatprep.subr.bf16.mxu0 %v990
    %3953 = vmatpush1.bf16.msra.mxu0 %v989
    %3954 = vmatprep.subr.bf16.mxu0 %v994
    %3955 = vmatpush1.bf16.msra.mxu0 %v993
    %3956 = vmatprep.subr.bf16.mxu0 %v998
    %3957 = vmatpush1.bf16.msra.mxu0 %v997
    %3958 = vmatprep.subr.bf16.mxu0 %v1002
    %3959 = vmatpush1.bf16.msra.mxu0 %v1001
    %3960 = vmatprep.subr.bf16.mxu0 %v1006
    %3961 = vmatpush1.bf16.msra.mxu0 %v1005
    %3962 = vmatprep.mubr.bf16.mxu0 %v3886
    %3963 = vmatmul.mubr.bf16.gmra.mrb[0].mxu0 %v3878
    %v3964 = vpop.f32.mrb[0].mxu0
    %v3965 = vadd.f32 %v1209, %v3964
    %v3966 = vpop.f32.mrb[0].mxu0
    %v3967 = vadd.f32 %v1213, %v3966
    %v3968 = vpop.f32.mrb[0].mxu0
    %v3969 = vpop.f32.mrb[0].mxu0
    %3970 = vdwg.mxu0
    %v3971 = vxor.u32 %v3924, 2147483648
    %v3972 = vmul.f32 %v3971, 1.442695
    %v3973 = vpow.pop %v3972
    %v3974 = vadd.f32 %v3973, 1.0
    %v3975 = vrcp.pop %v3974
    %v3976 = vmul.f32 1.0, %v3975
    %v3977 = vxor.u32 %v3926, 2147483648
    %v3978 = vmul.f32 %v3977, 1.442695
    %v3979 = vpow.pop %v3978
    %v3980 = vadd.f32 %v3979, 1.0
    %v3981 = vrcp.pop %v3980
    %v3982 = vmul.f32 1.0, %v3981
    %v3983 = vtanh.pop %v3965
    %v3984 = vxor.u32 %v3967, 2147483648
    %v3985 = vmul.f32 %v3984, 1.442695
    %v3986 = vpow.pop %v3985
    %v3987 = vadd.f32 %v3986, 1.0
    %v3988 = vrcp.pop %v3987
    %v3989 = vmul.f32 1.0, %v3988
    %v3990 = vmul.f32 %v3982, %v3626
    %v3991 = vmul.f32 %v3976, %v3983
    %v3992 = vadd.f32 %v3990, %v3991
    %v3993 = vtanh.pop %v3992
    %v3994 = vmul.f32 %v3989, %v3993
    %v3995 = vsel %vm3696, 1, 0
    %3996 = vset.pattern.permute.xlu0 0
    %3997 = vperm.xlu0 %3996, %v3995
    %v3998 = vpop.permute.xlu0 %3997
    %vm3999 = vcmp.eq.s32.totalorder %v3998, 1
    %v4000 = vrot.slane %v3859, 7
    %v4001 = vrot.slane %v3860, 6
    %v4002 = vsel %vm1192, %v4001, %v4000
    %v4004 = vsel %vm3999, %v4002, %v3617
    %v4007 = vrot.slane %v3855, 7
    %v4008 = vrot.slane %v3856, 6
    %v4009 = vsel %vm1192, %v4008, %v4007
    %v4011 = vsel %vm3999, %v4009, %v3624
    %v4012 = vsel %vm3999, %v3994, %v3625
    %v4013 = vsel %vm3999, %v3992, %v3626
    %v4014 = vsel %vm3999, %v3994, 0.0
    %v4015 = vpack.c.bf16 %v4014, %v4014
    %4016 = vmatprep.subr.bf16.mxu0 0
    %4017 = vmatpush1.bf16.msra.mxu0 %v1024
    %4018 = vmatprep.subr.bf16.mxu0 0
    %4019 = vmatpush1.bf16.msra.mxu0 %v1025
    %4020 = vmatprep.subr.bf16.mxu0 0
    %4021 = vmatpush1.bf16.msra.mxu0 %v1026
    %4022 = vmatprep.subr.bf16.mxu0 0
    %4023 = vmatpush1.bf16.msra.mxu0 %v1027
    %4024 = vmatprep.subr.bf16.mxu0 0
    %4025 = vmatpush1.bf16.msra.mxu0 %v1028
    %4026 = vmatprep.subr.bf16.mxu0 0
    %4027 = vmatpush1.bf16.msra.mxu0 %v1029
    %4028 = vmatprep.subr.bf16.mxu0 0
    %4029 = vmatpush1.bf16.msra.mxu0 %v1030
    %4030 = vmatprep.subr.bf16.mxu0 0
    %4031 = vmatpush1.bf16.msra.mxu0 %v1031
    %4032 = vmatprep.subr.bf16.mxu0 0
    %4033 = vmatpush1.bf16.msra.mxu0 0
    %4034 = vmatprep.subr.bf16.mxu0 0
    %4035 = vmatpush1.bf16.msra.mxu0 0
    %4036 = vmatprep.subr.bf16.mxu0 0
    %4037 = vmatpush1.bf16.msra.mxu0 0
    %4038 = vmatprep.subr.bf16.mxu0 0
    %4039 = vmatpush1.bf16.msra.mxu0 0
    %4040 = vmatprep.subr.bf16.mxu0 0
    %4041 = vmatpush1.bf16.msra.mxu0 0
    %4042 = vmatprep.subr.bf16.mxu0 0
    %4043 = vmatpush1.bf16.msra.mxu0 0
    %4044 = vmatprep.subr.bf16.mxu0 0
    %4045 = vmatpush1.bf16.msra.mxu0 0
    %4046 = vmatprep.subr.bf16.mxu0 0
    %4047 = vmatpush1.bf16.msra.mxu0 0
    %4048 = vmatprep.mubr.bf16.mxu0 0
    %4049 = vmatmul.mubr.bf16.gmra.mrb[0].mxu0 %v4015
    %v4050 = vpop.f32.mrb[0].mxu0
    %v4051 = vadd.f32 %v1343, %v4050
    %v4052 = vpop.f32.mrb[0].mxu0
    %v4053 = vpop.f32.mrb[0].mxu0
    %v4054 = vpop.f32.mrb[0].mxu0
    %4055 = vdwg.mxu0
    %v4058 = vunpack.c.l.s4 1966171168
    %v4059 = vunpack.c.0.s8 %v4058
    %v4060 = vlaneseq
    %v4061 = vshrl.u32 %v4060, 7
    %v4062 = vsub.s32 %v4059, %v4061
    %v4063 = vrot.slane %v4051, %v4062
    %v4064 = vcombine.high %v4063, %v4063
    %v4066 = vunpack.c.l.s4 1966171168
    %v4067 = vunpack.c.0.s8 %v4066
    %v4068 = vlaneseq
    %v4069 = vshrl.u32 %v4068, 7
    %v4070 = vsub.s32 %v4067, %v4069
    %v4071 = vrot.slane %v4063, %v4070
    %v4073 = vunpack.c.l.s4 1966171168
    %v4074 = vunpack.c.0.s8 %v4073
    %v4075 = vlaneseq
    %v4076 = vshrl.u32 %v4075, 7
    %v4077 = vsub.s32 %v4074, %v4076
    %v4078 = vrot.slane %v4064, %v4077
    %4081 = vst.msk [vmem:[%s13 + $0x7] sm:$0x1] %vm1410, %v4071
    %4082 = vst.msk [vmem:[%s13 + $0xf] sm:$0x1] %vm1410, %v4078
    %4083 = vst [vmem:[#allocation2] sm:$0x3] %v4004
    %s4084 = scalar_lea.vmem [#allocation2], 2
    %4085 = vst [vmem:[%s4084] sm:$0x3] %v4012
    %4086 = vst [vmem:[#allocation4] sm:$0x3] %v4011
    %s4087 = scalar_lea.vmem [#allocation4], 2
    %4088 = vst [vmem:[%s4087] sm:$0x3] %v4013
    // Predicated region
    $region54: #{navrnn_forward.1} parent=1 // pred_check
      _
    $region55: #{navrnn_forward.1} parent=1 // pred_check_branch
      %4090 = sbr.rel (0) target = $region57
    $region56: #{navrnn_forward.1} parent=1 // pred_region
      _
    $region57: #{navrnn_forward.1} parent=1 // pred_fallthru
      _
    // Predicated region
    $region58: #{navrnn_forward.1} parent=1 // pred_check
      _
    $region59: #{navrnn_forward.1} parent=1 // pred_check_branch
      %4092 = sbr.rel (0) target = $region61
    $region60: #{navrnn_forward.1} parent=1 // pred_region
      %s4094 = ssub.s32 64, 64
      %4095 = vsyncadd [#allocation3], %s4094
      %s4096 = sshll.u32 [#allocation2], 4
      %s4097 = int_to_ptr.vmem [resolvable:$true] %s4096
      %4102 = dma.vmem_to_hbm [thread:$0]  %s4097, 64, %s14, [#allocation3], 32, 32, 2
    $region61: #{navrnn_forward.1} parent=1 // pred_fallthru
      _
    // Predicated region
    $region62: #{navrnn_forward.1} parent=1 // pred_check
      _
    $region63: #{navrnn_forward.1} parent=1 // pred_check_branch
      %4104 = sbr.rel (0) target = $region65
    $region64: #{navrnn_forward.1} parent=1 // pred_region
      %s4106 = ssub.s32 64, 64
      %4107 = vsyncadd [#allocation5], %s4106
      %s4108 = sshll.u32 [#allocation4], 4
      %s4109 = int_to_ptr.vmem [resolvable:$true] %s4108
      %4114 = dma.vmem_to_hbm [thread:$0]  %s4109, 64, %s15, [#allocation5], 32, 32, 2
    $region65: #{navrnn_forward.1} parent=1 // pred_fallthru
      _
    // Predicated region
    $region66: #{navrnn_forward.1} parent=1 // pred_check
      _
    $region67: #{navrnn_forward.1} parent=1 // pred_check_branch
      %4116 = sbr.rel (0) target = $region69
    $region68: #{navrnn_forward.1} parent=1 // pred_region
      _
    $region69: #{navrnn_forward.1} parent=1 // pred_fallthru
      _
    // Predicated region
    $region70: #{navrnn_forward.1} parent=1 // pred_check
      _
    $region71: #{navrnn_forward.1} parent=1 // pred_check_branch
      %4118 = sbr.rel (0) target = $region73
    $region72: #{navrnn_forward.1} parent=1 // pred_region
      %4119 = dma.done [#allocation3], 64
    $region73: #{navrnn_forward.1} parent=1 // pred_fallthru
      _
    // Predicated region
    $region74: #{navrnn_forward.1} parent=1 // pred_check
      _
    $region75: #{navrnn_forward.1} parent=1 // pred_check_branch
      %4121 = sbr.rel (0) target = $region77
    $region76: #{navrnn_forward.1} parent=1 // pred_region
      %4122 = dma.done [#allocation5], 64
    $region77: #{navrnn_forward.1} parent=1 // pred_fallthru
      _
    %4123 = vsyncpa [#allocation3], 1
    %4124 = vsyncpa [#allocation5], 1

</llo_original>
